<compile_context>
chip_gen: v7x
topology: tpu7x:2x2x1
jax: 0.10.0
libtpu: 0.0.40
codegen_flags: <defaults>
</compile_context>

<pallas_src>
import jax
import jax.numpy as jnp
from jax import lax
from jax.experimental import pallas as pl
from jax.experimental.pallas import tpu as pltpu


_BATCH_BLOCK = 128  # rows per grid step when the batch is large


def _semantic_predictor_kernel(x_ref, w1_ref, b1_ref, w2t_ref, b2_ref, out_ref):
    """Fused fc1 -> ReLU -> fc2 -> ReLU on one batch tile; all operands in VMEM."""
    # fc1: (bm, vf) @ (vf, H).  Feed the MXU in the weight dtype (bf16),
    # accumulate in f32.
    x = x_ref[...].astype(w1_ref.dtype)
    h1 = jnp.dot(x, w1_ref[...], preferred_element_type=jnp.float32)
    h1 = jnp.maximum(h1 + b1_ref[...], 0.0)

    # fc2 with the weight stored transposed as (sf, H): contract h1 dim 1 with
    # w2t dim 1 -> (bm, sf).  Lane-dense weight tiles, dense DMA.
    h1 = h1.astype(w2t_ref.dtype)
    h2 = lax.dot_general(
        h1, w2t_ref[...],
        dimension_numbers=(((1,), (1,)), ((), ())),
        preferred_element_type=jnp.float32,
    )
    h2 = jnp.maximum(h2 + b2_ref[...], 0.0)
    out_ref[...] = h2.astype(out_ref.dtype)


@jax.jit
def semantic_predictor_forward(x, w1, b1_row, w2_t, b2_row):
    """x: (B, vf); w1: (vf, H) bf16; b1_row: (1, H) f32; w2_t: (sf, H) bf16; b2_row: (1, sf) f32."""
    B, d_in = x.shape
    H = w1.shape[1]
    n_out = w2_t.shape[0]

    nbytes = lambda a: a.size * a.dtype.itemsize
    cost = pl.CostEstimate(
        flops=2 * B * d_in * H + 2 * B * H * n_out,
        transcendentals=0,
        bytes_accessed=(nbytes(x) + nbytes(w1) + nbytes(w2_t)
                        + nbytes(b1_row) + nbytes(b2_row)
                        + B * n_out * x.dtype.itemsize),
    )
    out_shape = jax.ShapeDtypeStruct((B, n_out), x.dtype)

    if B % _BATCH_BLOCK == 0 and B // _BATCH_BLOCK >= 2:
        # Large batch: 1-D grid over batch rows.  Weights/biases map to block
        # (0, 0) every step (stay resident, no re-DMA); "parallel" lets v7x
        # shard grid steps across both TensorCores.
        return pl.pallas_call(
            _semantic_predictor_kernel,
            out_shape=out_shape,
            grid=(B // _BATCH_BLOCK,),
            in_specs=[
                pl.BlockSpec((_BATCH_BLOCK, d_in), lambda i: (i, 0)),
                pl.BlockSpec((d_in, H), lambda i: (0, 0)),
                pl.BlockSpec((1, H), lambda i: (0, 0)),
                pl.BlockSpec((n_out, H), lambda i: (0, 0)),
                pl.BlockSpec((1, n_out), lambda i: (0, 0)),
            ],
            out_specs=pl.BlockSpec((_BATCH_BLOCK, n_out), lambda i: (i, 0)),
            compiler_params=pltpu.CompilerParams(
                dimension_semantics=("parallel",)),
            cost_estimate=cost,
        )(x, w1, b1_row, w2_t, b2_row)

    # Small batch: single grid-less invocation, everything (~0.4 MiB) resident
    # in VMEM -> no per-step overhead, no scratch, no accumulator.
    vmem = pl.BlockSpec(memory_space=pltpu.MemorySpace.VMEM)
    return pl.pallas_call(
        _semantic_predictor_kernel,
        out_shape=out_shape,
        in_specs=[vmem] * 5,
        out_specs=vmem,
        cost_estimate=cost,
    )(x, w1, b1_row, w2_t, b2_row)


if __name__ == "__main__":
    # Module-consistent shapes: vf_size=32, hidden=4096, sf_size=16.
    VF, HIDDEN, SF = 32, 4096, 16
    key = jax.random.PRNGKey(0)
    k_x, k_w1, k_b1, k_w2, k_b2 = jax.random.split(key, 5)

    # Parameter prep (done ONCE, outside the jitted forward):
    #   weights stored (in, out) == PyTorch weight.T; w2 additionally stored
    #   transposed as (sf, H); both in bf16.  Biases pre-shaped to (1, N) f32.
    w1_f32 = jax.random.normal(k_w1, (VF, HIDDEN), dtype=jnp.float32) * 0.02
    b1 = jax.random.normal(k_b1, (HIDDEN,), dtype=jnp.float32) * 0.01
    w2_f32 = jax.random.normal(k_w2, (HIDDEN, SF), dtype=jnp.float32) * 0.02
    b2 = jax.random.normal(k_b2, (SF,), dtype=jnp.float32) * 0.01

    w1 = w1_f32.astype(jnp.bfloat16)                       # (VF, HIDDEN)
    w2_t = jnp.transpose(w2_f32).astype(jnp.bfloat16)      # (SF, HIDDEN), lane-dense
    b1_row = b1.reshape(1, HIDDEN)
    b2_row = b2.reshape(1, SF)

    def check(x, out):
        # Ref 1: numerics matched to the kernel (bf16-rounded operands, f32 math).
        xr = x.astype(jnp.bfloat16).astype(jnp.float32)
        h1 = jnp.maximum(xr @ w1.astype(jnp.float32) + b1, 0.0)
        h1 = h1.astype(jnp.bfloat16).astype(jnp.float32)
        ref_bf16 = jnp.maximum(h1 @ w2_t.astype(jnp.float32).T + b2, 0.0)
        assert jnp.allclose(out, ref_bf16, atol=5e-3, rtol=5e-3), "mismatch vs bf16-matched ref"
        # Ref 2: pure-f32 PyTorch semantics; tolerance widened for bf16 weights.
        h1f = jnp.maximum(x @ w1_f32 + b1, 0.0)
        ref_f32 = jnp.maximum(h1f @ w2_f32 + b2, 0.0)
        assert jnp.allclose(out, ref_f32, atol=3e-2, rtol=3e-2), "mismatch vs f32 ref"

    # Small-batch path: grid-less, fully VMEM-resident.
    B_small = 128
    x_small = jax.random.normal(k_x, (B_small, VF), dtype=jnp.float32)
    out_small = semantic_predictor_forward(x_small, w1, b1_row, w2_t, b2_row)
    jax.block_until_ready(out_small)
    check(x_small, out_small)

    # Large-batch path: grid over batch, "parallel" -> both v7x TensorCores.
    B_big = 512
    x_big = jax.random.normal(jax.random.fold_in(k_x, 1), (B_big, VF), dtype=jnp.float32)
    out_big = semantic_predictor_forward(x_big, w1, b1_row, w2_t, b2_row)
    jax.block_until_ready(out_big)
    check(x_big, out_big)

    print("KERNEL_OK")
</pallas_src>

<mosaic_0001>
module attributes {stable_mosaic.version = 11 : i64} {
  func.func @_semantic_predictor_kernel(%arg0: memref<128x32xf32, #tpu.memory_space<vmem>>, %arg1: memref<32x4096xbf16, #tpu.memory_space<vmem>>, %arg2: memref<1x4096xf32, #tpu.memory_space<vmem>>, %arg3: memref<16x4096xbf16, #tpu.memory_space<vmem>>, %arg4: memref<1x16xf32, #tpu.memory_space<vmem>>, %arg5: memref<128x16xf32, #tpu.memory_space<vmem>>) attributes {dimension_semantics = [], scalar_prefetch = 0 : i64, scratch_operands = 0 : i64, tpu.core_type = #tpu.core_type<tc>} {
    %c0 = arith.constant 0 : index
    %c0_0 = arith.constant 0 : index
    %0 = vector.load %arg0[%c0, %c0_0] : memref<128x32xf32, #tpu.memory_space<vmem>>, vector<128x32xf32>
    %1 = arith.truncf %0 : vector<128x32xf32> to vector<128x32xbf16>
    %c0_1 = arith.constant 0 : index
    %c0_2 = arith.constant 0 : index
    %2 = vector.load %arg1[%c0_1, %c0_2] : memref<32x4096xbf16, #tpu.memory_space<vmem>>, vector<32x4096xbf16>
    %cst = arith.constant dense<0.000000e+00> : vector<128x4096xf32>
    %3 = tpu.matmul %1, %2, %cst {dimension_numbers = #tpu.dot_dimension_numbers<[1], [0], [0], [1], [0, 0, 1, 1], [], []>} : vector<128x32xbf16>, vector<32x4096xbf16>, vector<128x4096xf32> -> vector<128x4096xf32>
    %c0_3 = arith.constant 0 : index
    %c0_4 = arith.constant 0 : index
    %4 = vector.load %arg2[%c0_3, %c0_4] : memref<1x4096xf32, #tpu.memory_space<vmem>>, vector<1x4096xf32>
    %5 = vector.broadcast %4 : vector<1x4096xf32> to vector<128x4096xf32>
    %6 = arith.addf %3, %5 : vector<128x4096xf32>
    %cst_5 = arith.constant 0.000000e+00 : f32
    %7 = vector.broadcast %cst_5 : f32 to vector<128x4096xf32>
    %8 = arith.maximumf %6, %7 : vector<128x4096xf32>
    %9 = arith.truncf %8 : vector<128x4096xf32> to vector<128x4096xbf16>
    %c0_6 = arith.constant 0 : index
    %c0_7 = arith.constant 0 : index
    %10 = vector.load %arg3[%c0_6, %c0_7] : memref<16x4096xbf16, #tpu.memory_space<vmem>>, vector<16x4096xbf16>
    %cst_8 = arith.constant dense<0.000000e+00> : vector<128x16xf32>
    %11 = tpu.matmul %9, %10, %cst_8 {dimension_numbers = #tpu.dot_dimension_numbers<[1], [1], [0], [0], [0, 0, 1, 0], [], []>} : vector<128x4096xbf16>, vector<16x4096xbf16>, vector<128x16xf32> -> vector<128x16xf32>
    %c0_9 = arith.constant 0 : index
    %c0_10 = arith.constant 0 : index
    %12 = vector.load %arg4[%c0_9, %c0_10] : memref<1x16xf32, #tpu.memory_space<vmem>>, vector<1x16xf32>
    %13 = vector.broadcast %12 : vector<1x16xf32> to vector<128x16xf32>
    %14 = arith.addf %11, %13 : vector<128x16xf32>
    %cst_11 = arith.constant 0.000000e+00 : f32
    %15 = vector.broadcast %cst_11 : f32 to vector<128x16xf32>
    %16 = arith.maximumf %14, %15 : vector<128x16xf32>
    %c0_12 = arith.constant 0 : index
    %c0_13 = arith.constant 0 : index
    %17 = vector.load %arg5[%c0_12, %c0_13] : memref<128x16xf32, #tpu.memory_space<vmem>>, vector<128x16xf32>
    tpu.vector_store %arg5[%c0_12, %c0_13], %16 {strides = array<i32>} : memref<128x16xf32, #tpu.memory_space<vmem>>, vector<128x16xf32>,
    return
  }
}

</mosaic_0001>

<llo_original>
// kernel: semantic_predictor_forward.1
$region0: #{semantic_predictor_forward.1}
  #allocation0 [shape = 'u32[]', space=smem, size = 0x4, offset = 0x4, fixed_abs, tag = 'smem constant byte address 0x4 - core index']
  #allocation1 [shape = 'u32[144,128]{1,0:T(1,128)}', space=vmem, size = 0x12000, scoped, tag = 'internal scratch']
  %s0 = inlined_call_operand.vmem [shape: f32[128,32], index: 0, kind: input, shape index: {}]
  %s1 = inlined_call_operand.hbm [shape: bf16[32,4096], index: 1, kind: input, shape index: {}]
  %s2 = inlined_call_operand.vmem [shape: f32[1,4096], index: 2, kind: input, shape index: {}]
  %s3 = inlined_call_operand.hbm [shape: bf16[16,4096], index: 3, kind: input, shape index: {}]
  %s4 = inlined_call_operand.vmem [shape: f32[1,16], index: 4, kind: input, shape index: {}]
  %s5 = inlined_call_operand.vmem [shape: f32[128,16], index: 5, kind: output, shape index: {}]
  %s6 = sld [smem:[#allocation0]]
  $region38: #{semantic_predictor_forward.1} parent=0
    _
  %s8 = ssub.s32 1, %s6
  %s9 = scalar_select 0, %s8, %s6
  $region1: #{semantic_predictor_forward.1} parent=0
    #allocation2 [shape = 'u8[262144]{0}', space=vmem, size = 0x40000, scoped, tag = 'input window, operand 1, single buffered']
    #allocation3 [shape = 's32[1]{0}', space=sflag, size = 0x4, scoped, tag = 'scoped memory for semantic_predictor_forward.1']
    #allocation4 [shape = 'u8[131072]{0}', space=vmem, size = 0x20000, scoped, tag = 'input window, operand 3, single buffered']
    #allocation5 [shape = 's32[1]{0}', space=sflag, size = 0x4, scoped, tag = 'scoped memory for semantic_predictor_forward.1']
    %10 = vsyncpa [#allocation3], 0
    %11 = vsyncpa [#allocation5], 0
    // Predicated region
    $region2: #{semantic_predictor_forward.1} parent=1 // pred_check
      _
    $region3: #{semantic_predictor_forward.1} parent=1 // pred_check_branch
      %13 = sbr.rel (0) target = $region5
    $region4: #{semantic_predictor_forward.1} parent=1 // pred_region
      _
    $region5: #{semantic_predictor_forward.1} parent=1 // pred_fallthru
      _
    // Predicated region
    $region6: #{semantic_predictor_forward.1} parent=1 // pred_check
      _
    $region7: #{semantic_predictor_forward.1} parent=1 // pred_check_branch
      %15 = sbr.rel (0) target = $region9
    $region8: #{semantic_predictor_forward.1} parent=1 // pred_region
      %s17 = ssub.s32 8192, 8192
      %18 = vsyncadd [#allocation3], %s17
      %s19 = sshll.u32 [#allocation2], 4
      %s20 = int_to_ptr.vmem [resolvable:$true] %s19
      %25 = dma.hbm_to_vmem [thread:$0]  %s1, 8192, %s20, [#allocation3], 2048, 2048, 128
    $region9: #{semantic_predictor_forward.1} parent=1 // pred_fallthru
      _
    // Predicated region
    $region10: #{semantic_predictor_forward.1} parent=1 // pred_check
      _
    $region11: #{semantic_predictor_forward.1} parent=1 // pred_check_branch
      %27 = sbr.rel (0) target = $region13
    $region12: #{semantic_predictor_forward.1} parent=1 // pred_region
      _
    $region13: #{semantic_predictor_forward.1} parent=1 // pred_fallthru
      _
    // Predicated region
    $region14: #{semantic_predictor_forward.1} parent=1 // pred_check
      _
    $region15: #{semantic_predictor_forward.1} parent=1 // pred_check_branch
      %29 = sbr.rel (0) target = $region17
    $region16: #{semantic_predictor_forward.1} parent=1 // pred_region
      %s31 = ssub.s32 4096, 4096
      %32 = vsyncadd [#allocation5], %s31
      %s33 = sshll.u32 [#allocation4], 4
      %s34 = int_to_ptr.vmem [resolvable:$true] %s33
      %39 = dma.hbm_to_vmem [thread:$0]  %s3, 4096, %s34, [#allocation5], 2048, 2048, 128
    $region17: #{semantic_predictor_forward.1} parent=1 // pred_fallthru
      _
    // Predicated region
    $region18: #{semantic_predictor_forward.1} parent=1 // pred_check
      _
    $region19: #{semantic_predictor_forward.1} parent=1 // pred_check_branch
      %41 = sbr.rel (0) target = $region21
    $region20: #{semantic_predictor_forward.1} parent=1 // pred_region
      _
    $region21: #{semantic_predictor_forward.1} parent=1 // pred_fallthru
      _
    // Predicated region
    $region22: #{semantic_predictor_forward.1} parent=1 // pred_check
      _
    $region23: #{semantic_predictor_forward.1} parent=1 // pred_check_branch
      %43 = sbr.rel (0) target = $region25
    $region24: #{semantic_predictor_forward.1} parent=1 // pred_region
      %44 = dma.done [#allocation3], 8192
    $region25: #{semantic_predictor_forward.1} parent=1 // pred_fallthru
      _
    // Predicated region
    $region26: #{semantic_predictor_forward.1} parent=1 // pred_check
      _
    $region27: #{semantic_predictor_forward.1} parent=1 // pred_check_branch
      %46 = sbr.rel (0) target = $region29
    $region28: #{semantic_predictor_forward.1} parent=1 // pred_region
      %47 = dma.done [#allocation5], 4096
    $region29: #{semantic_predictor_forward.1} parent=1 // pred_fallthru
      _
    %v49 = vld [vmem:[%s0] sm:$0xff]
    %v50 = vld [vmem:[%s0 + $0x8] sm:$0xff]
    %v51 = vld [vmem:[%s0 + $0x10] sm:$0xff]
    %v52 = vld [vmem:[%s0 + $0x18] sm:$0xff]
    %v53 = vld [vmem:[%s0 + $0x20] sm:$0xff]
    %v54 = vld [vmem:[%s0 + $0x28] sm:$0xff]
    %v55 = vld [vmem:[%s0 + $0x30] sm:$0xff]
    %v56 = vld [vmem:[%s0 + $0x38] sm:$0xff]
    %v57 = vld [vmem:[%s0 + $0x40] sm:$0xff]
    %v58 = vld [vmem:[%s0 + $0x48] sm:$0xff]
    %v59 = vld [vmem:[%s0 + $0x50] sm:$0xff]
    %v60 = vld [vmem:[%s0 + $0x58] sm:$0xff]
    %v61 = vld [vmem:[%s0 + $0x60] sm:$0xff]
    %v62 = vld [vmem:[%s0 + $0x68] sm:$0xff]
    %v63 = vld [vmem:[%s0 + $0x70] sm:$0xff]
    %v64 = vld [vmem:[%s0 + $0x78] sm:$0xff]
    %v65 = vpack.c.bf16 %v50, %v49
    %v66 = vpack.c.bf16 %v52, %v51
    %v67 = vpack.c.bf16 %v54, %v53
    %v68 = vpack.c.bf16 %v56, %v55
    %v69 = vpack.c.bf16 %v58, %v57
    %v70 = vpack.c.bf16 %v60, %v59
    %v71 = vpack.c.bf16 %v62, %v61
    %v72 = vpack.c.bf16 %v64, %v63
    %v73 = vld [vmem:[#allocation2] sm:$0xff]
    %v74 = vld [vmem:[#allocation2 + $0x8] sm:$0xff]
    %v75 = vld [vmem:[#allocation2 + $0x10] sm:$0xff]
    %v76 = vld [vmem:[#allocation2 + $0x18] sm:$0xff]
    %v77 = vld [vmem:[#allocation2 + $0x20] sm:$0xff]
    %v78 = vld [vmem:[#allocation2 + $0x28] sm:$0xff]
    %v79 = vld [vmem:[#allocation2 + $0x30] sm:$0xff]
    %v80 = vld [vmem:[#allocation2 + $0x38] sm:$0xff]
    %v81 = vld [vmem:[#allocation2 + $0x40] sm:$0xff]
    %v82 = vld [vmem:[#allocation2 + $0x48] sm:$0xff]
    %v83 = vld [vmem:[#allocation2 + $0x50] sm:$0xff]
    %v84 = vld [vmem:[#allocation2 + $0x58] sm:$0xff]
    %v85 = vld [vmem:[#allocation2 + $0x60] sm:$0xff]
    %v86 = vld [vmem:[#allocation2 + $0x68] sm:$0xff]
    %v87 = vld [vmem:[#allocation2 + $0x70] sm:$0xff]
    %v88 = vld [vmem:[#allocation2 + $0x78] sm:$0xff]
    %v89 = vld [vmem:[#allocation2 + $0x80] sm:$0xff]
    %v90 = vld [vmem:[#allocation2 + $0x88] sm:$0xff]
    %v91 = vld [vmem:[#allocation2 + $0x90] sm:$0xff]
    %v92 = vld [vmem:[#allocation2 + $0x98] sm:$0xff]
    %v93 = vld [vmem:[#allocation2 + $0xa0] sm:$0xff]
    %v94 = vld [vmem:[#allocation2 + $0xa8] sm:$0xff]
    %v95 = vld [vmem:[#allocation2 + $0xb0] sm:$0xff]
    %v96 = vld [vmem:[#allocation2 + $0xb8] sm:$0xff]
    %v97 = vld [vmem:[#allocation2 + $0xc0] sm:$0xff]
    %v98 = vld [vmem:[#allocation2 + $0xc8] sm:$0xff]
    %v99 = vld [vmem:[#allocation2 + $0xd0] sm:$0xff]
    %v100 = vld [vmem:[#allocation2 + $0xd8] sm:$0xff]
    %v101 = vld [vmem:[#allocation2 + $0xe0] sm:$0xff]
    %v102 = vld [vmem:[#allocation2 + $0xe8] sm:$0xff]
    %v103 = vld [vmem:[#allocation2 + $0xf0] sm:$0xff]
    %v104 = vld [vmem:[#allocation2 + $0xf8] sm:$0xff]
    %v105 = vld [vmem:[#allocation2 + $0x100] sm:$0xff]
    %v106 = vld [vmem:[#allocation2 + $0x108] sm:$0xff]
    %v107 = vld [vmem:[#allocation2 + $0x110] sm:$0xff]
    %v108 = vld [vmem:[#allocation2 + $0x118] sm:$0xff]
    %v109 = vld [vmem:[#allocation2 + $0x120] sm:$0xff]
    %v110 = vld [vmem:[#allocation2 + $0x128] sm:$0xff]
    %v111 = vld [vmem:[#allocation2 + $0x130] sm:$0xff]
    %v112 = vld [vmem:[#allocation2 + $0x138] sm:$0xff]
    %v113 = vld [vmem:[#allocation2 + $0x140] sm:$0xff]
    %v114 = vld [vmem:[#allocation2 + $0x148] sm:$0xff]
    %v115 = vld [vmem:[#allocation2 + $0x150] sm:$0xff]
    %v116 = vld [vmem:[#allocation2 + $0x158] sm:$0xff]
    %v117 = vld [vmem:[#allocation2 + $0x160] sm:$0xff]
    %v118 = vld [vmem:[#allocation2 + $0x168] sm:$0xff]
    %v119 = vld [vmem:[#allocation2 + $0x170] sm:$0xff]
    %v120 = vld [vmem:[#allocation2 + $0x178] sm:$0xff]
    %v121 = vld [vmem:[#allocation2 + $0x180] sm:$0xff]
    %v122 = vld [vmem:[#allocation2 + $0x188] sm:$0xff]
    %v123 = vld [vmem:[#allocation2 + $0x190] sm:$0xff]
    %v124 = vld [vmem:[#allocation2 + $0x198] sm:$0xff]
    %v125 = vld [vmem:[#allocation2 + $0x1a0] sm:$0xff]
    %v126 = vld [vmem:[#allocation2 + $0x1a8] sm:$0xff]
    %v127 = vld [vmem:[#allocation2 + $0x1b0] sm:$0xff]
    %v128 = vld [vmem:[#allocation2 + $0x1b8] sm:$0xff]
    %v129 = vld [vmem:[#allocation2 + $0x1c0] sm:$0xff]
    %v130 = vld [vmem:[#allocation2 + $0x1c8] sm:$0xff]
    %v131 = vld [vmem:[#allocation2 + $0x1d0] sm:$0xff]
    %v132 = vld [vmem:[#allocation2 + $0x1d8] sm:$0xff]
    %v133 = vld [vmem:[#allocation2 + $0x1e0] sm:$0xff]
    %v134 = vld [vmem:[#allocation2 + $0x1e8] sm:$0xff]
    %v135 = vld [vmem:[#allocation2 + $0x1f0] sm:$0xff]
    %v136 = vld [vmem:[#allocation2 + $0x1f8] sm:$0xff]
    %v137 = vld [vmem:[%s2] sm:$0xff]
    %v138 = vld [vmem:[%s2 + $0x8] sm:$0xff]
    %v139 = vld [vmem:[%s2 + $0x10] sm:$0xff]
    %v140 = vld [vmem:[%s2 + $0x18] sm:$0xff]
    %v145 = vlaneseq
    %v146 = vshrl.u32 %v145, 7
    %v147 = vsub.s32 0, %v146
    %v148 = vrot.slane %v137, %v147
    %v149 = vlaneseq
    %v150 = vshrl.u32 %v149, 7
    %v151 = vsub.s32 1, %v150
    %v152 = vrot.slane %v137, %v151
    %v153 = vlaneseq
    %v154 = vshrl.u32 %v153, 7
    %v155 = vsub.s32 2, %v154
    %v156 = vrot.slane %v137, %v155
    %v157 = vlaneseq
    %v158 = vshrl.u32 %v157, 7
    %v159 = vsub.s32 3, %v158
    %v160 = vrot.slane %v137, %v159
    %v161 = vlaneseq
    %v162 = vshrl.u32 %v161, 7
    %v163 = vsub.s32 4, %v162
    %v164 = vrot.slane %v137, %v163
    %v165 = vlaneseq
    %v166 = vshrl.u32 %v165, 7
    %v167 = vsub.s32 5, %v166
    %v168 = vrot.slane %v137, %v167
    %v169 = vlaneseq
    %v170 = vshrl.u32 %v169, 7
    %v171 = vsub.s32 6, %v170
    %v172 = vrot.slane %v137, %v171
    %v173 = vlaneseq
    %v174 = vshrl.u32 %v173, 7
    %v175 = vsub.s32 7, %v174
    %v176 = vrot.slane %v137, %v175
    %v177 = vlaneseq
    %v178 = vshrl.u32 %v177, 7
    %v179 = vsub.s32 0, %v178
    %v180 = vrot.slane %v138, %v179
    %v181 = vlaneseq
    %v182 = vshrl.u32 %v181, 7
    %v183 = vsub.s32 1, %v182
    %v184 = vrot.slane %v138, %v183
    %v185 = vlaneseq
    %v186 = vshrl.u32 %v185, 7
    %v187 = vsub.s32 2, %v186
    %v188 = vrot.slane %v138, %v187
    %v189 = vlaneseq
    %v190 = vshrl.u32 %v189, 7
    %v191 = vsub.s32 3, %v190
    %v192 = vrot.slane %v138, %v191
    %v193 = vlaneseq
    %v194 = vshrl.u32 %v193, 7
    %v195 = vsub.s32 4, %v194
    %v196 = vrot.slane %v138, %v195
    %v197 = vlaneseq
    %v198 = vshrl.u32 %v197, 7
    %v199 = vsub.s32 5, %v198
    %v200 = vrot.slane %v138, %v199
    %v201 = vlaneseq
    %v202 = vshrl.u32 %v201, 7
    %v203 = vsub.s32 6, %v202
    %v204 = vrot.slane %v138, %v203
    %v205 = vlaneseq
    %v206 = vshrl.u32 %v205, 7
    %v207 = vsub.s32 7, %v206
    %v208 = vrot.slane %v138, %v207
    %v209 = vlaneseq
    %v210 = vshrl.u32 %v209, 7
    %v211 = vsub.s32 0, %v210
    %v212 = vrot.slane %v139, %v211
    %v213 = vlaneseq
    %v214 = vshrl.u32 %v213, 7
    %v215 = vsub.s32 1, %v214
    %v216 = vrot.slane %v139, %v215
    %v217 = vlaneseq
    %v218 = vshrl.u32 %v217, 7
    %v219 = vsub.s32 2, %v218
    %v220 = vrot.slane %v139, %v219
    %v221 = vlaneseq
    %v222 = vshrl.u32 %v221, 7
    %v223 = vsub.s32 3, %v222
    %v224 = vrot.slane %v139, %v223
    %v225 = vlaneseq
    %v226 = vshrl.u32 %v225, 7
    %v227 = vsub.s32 4, %v226
    %v228 = vrot.slane %v139, %v227
    %v229 = vlaneseq
    %v230 = vshrl.u32 %v229, 7
    %v231 = vsub.s32 5, %v230
    %v232 = vrot.slane %v139, %v231
    %v233 = vlaneseq
    %v234 = vshrl.u32 %v233, 7
    %v235 = vsub.s32 6, %v234
    %v236 = vrot.slane %v139, %v235
    %v237 = vlaneseq
    %v238 = vshrl.u32 %v237, 7
    %v239 = vsub.s32 7, %v238
    %v240 = vrot.slane %v139, %v239
    %v241 = vlaneseq
    %v242 = vshrl.u32 %v241, 7
    %v243 = vsub.s32 0, %v242
    %v244 = vrot.slane %v140, %v243
    %v245 = vlaneseq
    %v246 = vshrl.u32 %v245, 7
    %v247 = vsub.s32 1, %v246
    %v248 = vrot.slane %v140, %v247
    %v249 = vlaneseq
    %v250 = vshrl.u32 %v249, 7
    %v251 = vsub.s32 2, %v250
    %v252 = vrot.slane %v140, %v251
    %v253 = vlaneseq
    %v254 = vshrl.u32 %v253, 7
    %v255 = vsub.s32 3, %v254
    %v256 = vrot.slane %v140, %v255
    %v257 = vlaneseq
    %v258 = vshrl.u32 %v257, 7
    %v259 = vsub.s32 4, %v258
    %v260 = vrot.slane %v140, %v259
    %v261 = vlaneseq
    %v262 = vshrl.u32 %v261, 7
    %v263 = vsub.s32 5, %v262
    %v264 = vrot.slane %v140, %v263
    %v265 = vlaneseq
    %v266 = vshrl.u32 %v265, 7
    %v267 = vsub.s32 6, %v266
    %v268 = vrot.slane %v140, %v267
    %v269 = vlaneseq
    %v270 = vshrl.u32 %v269, 7
    %v271 = vsub.s32 7, %v270
    %v272 = vrot.slane %v140, %v271
    %v369 = vunpack.c.l.b16 %v73
    %v370 = vunpack.c.h.b16 %v73
    %v371 = vunpack.c.l.b16 %v74
    %v372 = vunpack.c.h.b16 %v74
    %v373 = vunpack.c.l.b16 %v75
    %v374 = vunpack.c.h.b16 %v75
    %v375 = vunpack.c.l.b16 %v76
    %v376 = vunpack.c.h.b16 %v76
    %v377 = vunpack.c.l.b16 %v77
    %v378 = vunpack.c.h.b16 %v77
    %v379 = vunpack.c.l.b16 %v78
    %v380 = vunpack.c.h.b16 %v78
    %v381 = vunpack.c.l.b16 %v79
    %v382 = vunpack.c.h.b16 %v79
    %v383 = vunpack.c.l.b16 %v80
    %v384 = vunpack.c.h.b16 %v80
    %v385 = vunpack.c.l.b16 %v81
    %v386 = vunpack.c.h.b16 %v81
    %v387 = vunpack.c.l.b16 %v82
    %v388 = vunpack.c.h.b16 %v82
    %v389 = vunpack.c.l.b16 %v83
    %v390 = vunpack.c.h.b16 %v83
    %v391 = vunpack.c.l.b16 %v84
    %v392 = vunpack.c.h.b16 %v84
    %v393 = vunpack.c.l.b16 %v85
    %v394 = vunpack.c.h.b16 %v85
    %v395 = vunpack.c.l.b16 %v86
    %v396 = vunpack.c.h.b16 %v86
    %v397 = vunpack.c.l.b16 %v87
    %v398 = vunpack.c.h.b16 %v87
    %v399 = vunpack.c.l.b16 %v88
    %v400 = vunpack.c.h.b16 %v88
    %v401 = vunpack.c.l.b16 %v89
    %v402 = vunpack.c.h.b16 %v89
    %v403 = vunpack.c.l.b16 %v90
    %v404 = vunpack.c.h.b16 %v90
    %v405 = vunpack.c.l.b16 %v91
    %v406 = vunpack.c.h.b16 %v91
    %v407 = vunpack.c.l.b16 %v92
    %v408 = vunpack.c.h.b16 %v92
    %v409 = vunpack.c.l.b16 %v93
    %v410 = vunpack.c.h.b16 %v93
    %v411 = vunpack.c.l.b16 %v94
    %v412 = vunpack.c.h.b16 %v94
    %v413 = vunpack.c.l.b16 %v95
    %v414 = vunpack.c.h.b16 %v95
    %v415 = vunpack.c.l.b16 %v96
    %v416 = vunpack.c.h.b16 %v96
    %v417 = vunpack.c.l.b16 %v97
    %v418 = vunpack.c.h.b16 %v97
    %v419 = vunpack.c.l.b16 %v98
    %v420 = vunpack.c.h.b16 %v98
    %v421 = vunpack.c.l.b16 %v99
    %v422 = vunpack.c.h.b16 %v99
    %v423 = vunpack.c.l.b16 %v100
    %v424 = vunpack.c.h.b16 %v100
    %v425 = vunpack.c.l.b16 %v101
    %v426 = vunpack.c.h.b16 %v101
    %v427 = vunpack.c.l.b16 %v102
    %v428 = vunpack.c.h.b16 %v102
    %v429 = vunpack.c.l.b16 %v103
    %v430 = vunpack.c.h.b16 %v103
    %v431 = vunpack.c.l.b16 %v104
    %v432 = vunpack.c.h.b16 %v104
    %v433 = vunpack.c.l.b16 %v105
    %v434 = vunpack.c.h.b16 %v105
    %v435 = vunpack.c.l.b16 %v106
    %v436 = vunpack.c.h.b16 %v106
    %v437 = vunpack.c.l.b16 %v107
    %v438 = vunpack.c.h.b16 %v107
    %v439 = vunpack.c.l.b16 %v108
    %v440 = vunpack.c.h.b16 %v108
    %v441 = vunpack.c.l.b16 %v109
    %v442 = vunpack.c.h.b16 %v109
    %v443 = vunpack.c.l.b16 %v110
    %v444 = vunpack.c.h.b16 %v110
    %v445 = vunpack.c.l.b16 %v111
    %v446 = vunpack.c.h.b16 %v111
    %v447 = vunpack.c.l.b16 %v112
    %v448 = vunpack.c.h.b16 %v112
    %v449 = vunpack.c.l.b16 %v113
    %v450 = vunpack.c.h.b16 %v113
    %v451 = vunpack.c.l.b16 %v114
    %v452 = vunpack.c.h.b16 %v114
    %v453 = vunpack.c.l.b16 %v115
    %v454 = vunpack.c.h.b16 %v115
    %v455 = vunpack.c.l.b16 %v116
    %v456 = vunpack.c.h.b16 %v116
    %v457 = vunpack.c.l.b16 %v117
    %v458 = vunpack.c.h.b16 %v117
    %v459 = vunpack.c.l.b16 %v118
    %v460 = vunpack.c.h.b16 %v118
    %v461 = vunpack.c.l.b16 %v119
    %v462 = vunpack.c.h.b16 %v119
    %v463 = vunpack.c.l.b16 %v120
    %v464 = vunpack.c.h.b16 %v120
    %v465 = vunpack.c.l.b16 %v121
    %v466 = vunpack.c.h.b16 %v121
    %v467 = vunpack.c.l.b16 %v122
    %v468 = vunpack.c.h.b16 %v122
    %v469 = vunpack.c.l.b16 %v123
    %v470 = vunpack.c.h.b16 %v123
    %v471 = vunpack.c.l.b16 %v124
    %v472 = vunpack.c.h.b16 %v124
    %v473 = vunpack.c.l.b16 %v125
    %v474 = vunpack.c.h.b16 %v125
    %v475 = vunpack.c.l.b16 %v126
    %v476 = vunpack.c.h.b16 %v126
    %v477 = vunpack.c.l.b16 %v127
    %v478 = vunpack.c.h.b16 %v127
    %v479 = vunpack.c.l.b16 %v128
    %v480 = vunpack.c.h.b16 %v128
    %v481 = vunpack.c.l.b16 %v129
    %v482 = vunpack.c.h.b16 %v129
    %v483 = vunpack.c.l.b16 %v130
    %v484 = vunpack.c.h.b16 %v130
    %v485 = vunpack.c.l.b16 %v131
    %v486 = vunpack.c.h.b16 %v131
    %v487 = vunpack.c.l.b16 %v132
    %v488 = vunpack.c.h.b16 %v132
    %v489 = vunpack.c.l.b16 %v133
    %v490 = vunpack.c.h.b16 %v133
    %v491 = vunpack.c.l.b16 %v134
    %v492 = vunpack.c.h.b16 %v134
    %v493 = vunpack.c.l.b16 %v135
    %v494 = vunpack.c.h.b16 %v135
    %v495 = vunpack.c.l.b16 %v136
    %v496 = vunpack.c.h.b16 %v136
    %v497 = vpack.c.b16 %v401, %v369
    %v498 = vpack.c.b16 %v402, %v370
    %v499 = vpack.c.b16 %v403, %v371
    %v500 = vpack.c.b16 %v404, %v372
    %v501 = vpack.c.b16 %v405, %v373
    %v502 = vpack.c.b16 %v406, %v374
    %v503 = vpack.c.b16 %v407, %v375
    %v504 = vpack.c.b16 %v408, %v376
    %v505 = vpack.c.b16 %v409, %v377
    %v506 = vpack.c.b16 %v410, %v378
    %v507 = vpack.c.b16 %v411, %v379
    %v508 = vpack.c.b16 %v412, %v380
    %v509 = vpack.c.b16 %v413, %v381
    %v510 = vpack.c.b16 %v414, %v382
    %v511 = vpack.c.b16 %v415, %v383
    %v512 = vpack.c.b16 %v416, %v384
    %v513 = vpack.c.b16 %v417, %v385
    %v514 = vpack.c.b16 %v418, %v386
    %v515 = vpack.c.b16 %v419, %v387
    %v516 = vpack.c.b16 %v420, %v388
    %v517 = vpack.c.b16 %v421, %v389
    %v518 = vpack.c.b16 %v422, %v390
    %v519 = vpack.c.b16 %v423, %v391
    %v520 = vpack.c.b16 %v424, %v392
    %v521 = vpack.c.b16 %v425, %v393
    %v522 = vpack.c.b16 %v426, %v394
    %v523 = vpack.c.b16 %v427, %v395
    %v524 = vpack.c.b16 %v428, %v396
    %v525 = vpack.c.b16 %v429, %v397
    %v526 = vpack.c.b16 %v430, %v398
    %v527 = vpack.c.b16 %v431, %v399
    %v528 = vpack.c.b16 %v432, %v400
    %v529 = vpack.c.b16 %v465, %v433
    %v530 = vpack.c.b16 %v466, %v434
    %v531 = vpack.c.b16 %v467, %v435
    %v532 = vpack.c.b16 %v468, %v436
    %v533 = vpack.c.b16 %v469, %v437
    %v534 = vpack.c.b16 %v470, %v438
    %v535 = vpack.c.b16 %v471, %v439
    %v536 = vpack.c.b16 %v472, %v440
    %v537 = vpack.c.b16 %v473, %v441
    %v538 = vpack.c.b16 %v474, %v442
    %v539 = vpack.c.b16 %v475, %v443
    %v540 = vpack.c.b16 %v476, %v444
    %v541 = vpack.c.b16 %v477, %v445
    %v542 = vpack.c.b16 %v478, %v446
    %v543 = vpack.c.b16 %v479, %v447
    %v544 = vpack.c.b16 %v480, %v448
    %v545 = vpack.c.b16 %v481, %v449
    %v546 = vpack.c.b16 %v482, %v450
    %v547 = vpack.c.b16 %v483, %v451
    %v548 = vpack.c.b16 %v484, %v452
    %v549 = vpack.c.b16 %v485, %v453
    %v550 = vpack.c.b16 %v486, %v454
    %v551 = vpack.c.b16 %v487, %v455
    %v552 = vpack.c.b16 %v488, %v456
    %v553 = vpack.c.b16 %v489, %v457
    %v554 = vpack.c.b16 %v490, %v458
    %v555 = vpack.c.b16 %v491, %v459
    %v556 = vpack.c.b16 %v492, %v460
    %v557 = vpack.c.b16 %v493, %v461
    %v558 = vpack.c.b16 %v494, %v462
    %v559 = vpack.c.b16 %v495, %v463
    %v560 = vpack.c.b16 %v496, %v464
    %vm625 = vcmask 261120
    %v627 = vsel %vm625, %v65, 0
    %v630 = vsel %vm625, %v66, 0
    %v633 = vsel %vm625, %v67, 0
    %v636 = vsel %vm625, %v68, 0
    %v639 = vsel %vm625, %v69, 0
    %v642 = vsel %vm625, %v70, 0
    %v645 = vsel %vm625, %v71, 0
    %v648 = vsel %vm625, %v72, 0
    %650 = vmatprep.subr.bf16.mxu0 %v498
    %651 = vmatpush1.bf16.msra.mxu0 %v497
    %652 = vmatprep.subr.bf16.mxu0 %v530
    %653 = vmatpush1.bf16.msra.mxu0 %v529
    %654 = vmatprep.subr.bf16.mxu0 0
    %655 = vmatpush1.bf16.msra.mxu0 0
    %656 = vmatprep.subr.bf16.mxu0 0
    %657 = vmatpush1.bf16.msra.mxu0 0
    %658 = vmatprep.subr.bf16.mxu0 0
    %659 = vmatpush1.bf16.msra.mxu0 0
    %660 = vmatprep.subr.bf16.mxu0 0
    %661 = vmatpush1.bf16.msra.mxu0 0
    %662 = vmatprep.subr.bf16.mxu0 0
    %663 = vmatpush1.bf16.msra.mxu0 0
    %664 = vmatprep.subr.bf16.mxu0 0
    %665 = vmatpush1.bf16.msra.mxu0 0
    %666 = vmatprep.subr.bf16.mxu0 0
    %667 = vmatpush1.bf16.msra.mxu0 0
    %668 = vmatprep.subr.bf16.mxu0 0
    %669 = vmatpush1.bf16.msra.mxu0 0
    %670 = vmatprep.subr.bf16.mxu0 0
    %671 = vmatpush1.bf16.msra.mxu0 0
    %672 = vmatprep.subr.bf16.mxu0 0
    %673 = vmatpush1.bf16.msra.mxu0 0
    %674 = vmatprep.subr.bf16.mxu0 0
    %675 = vmatpush1.bf16.msra.mxu0 0
    %676 = vmatprep.subr.bf16.mxu0 0
    %677 = vmatpush1.bf16.msra.mxu0 0
    %678 = vmatprep.subr.bf16.mxu0 0
    %679 = vmatpush1.bf16.msra.mxu0 0
    %680 = vmatprep.subr.bf16.mxu0 0
    %681 = vmatpush1.bf16.msra.mxu0 0
    %682 = vmatprep.mubr.bf16.mxu0 0
    %683 = vmatmul.mubr.bf16.gmra.mrb[0].mxu0 %v627
    %v684 = vpop.f32.mrb[0].mxu0
    %v685 = vadd.f32 %v148, %v684
    %v686 = vpop.f32.mrb[0].mxu0
    %v687 = vadd.f32 %v152, %v686
    %v688 = vpop.f32.mrb[0].mxu0
    %v689 = vadd.f32 %v148, %v688
    %v690 = vpop.f32.mrb[0].mxu0
    %v691 = vadd.f32 %v152, %v690
    %692 = vmatprep.mubr.bf16.mxu0 0
    %693 = vmatmul.mubr.bf16.gmra.mrb[0].mxu0 %v630
    %v694 = vpop.f32.mrb[0].mxu0
    %v695 = vadd.f32 %v148, %v694
    %v696 = vpop.f32.mrb[0].mxu0
    %v697 = vadd.f32 %v152, %v696
    %v698 = vpop.f32.mrb[0].mxu0
    %v699 = vadd.f32 %v148, %v698
    %v700 = vpop.f32.mrb[0].mxu0
    %v701 = vadd.f32 %v152, %v700
    %702 = vmatprep.mubr.bf16.mxu0 0
    %703 = vmatmul.mubr.bf16.gmra.mrb[0].mxu0 %v633
    %v704 = vpop.f32.mrb[0].mxu0
    %v705 = vadd.f32 %v148, %v704
    %v706 = vpop.f32.mrb[0].mxu0
    %v707 = vadd.f32 %v152, %v706
    %v708 = vpop.f32.mrb[0].mxu0
    %v709 = vadd.f32 %v148, %v708
    %v710 = vpop.f32.mrb[0].mxu0
    %v711 = vadd.f32 %v152, %v710
    %712 = vmatprep.mubr.bf16.mxu0 0
    %713 = vmatmul.mubr.bf16.gmra.mrb[0].mxu0 %v636
    %v714 = vpop.f32.mrb[0].mxu0
    %v715 = vadd.f32 %v148, %v714
    %v716 = vpop.f32.mrb[0].mxu0
    %v717 = vadd.f32 %v152, %v716
    %v718 = vpop.f32.mrb[0].mxu0
    %v719 = vadd.f32 %v148, %v718
    %v720 = vpop.f32.mrb[0].mxu0
    %v721 = vadd.f32 %v152, %v720
    %722 = vmatprep.mubr.bf16.mxu0 0
    %723 = vmatmul.mubr.bf16.gmra.mrb[0].mxu0 %v639
    %v724 = vpop.f32.mrb[0].mxu0
    %v725 = vadd.f32 %v148, %v724
    %v726 = vpop.f32.mrb[0].mxu0
    %v727 = vadd.f32 %v152, %v726
    %v728 = vpop.f32.mrb[0].mxu0
    %v729 = vadd.f32 %v148, %v728
    %v730 = vpop.f32.mrb[0].mxu0
    %v731 = vadd.f32 %v152, %v730
    %732 = vmatprep.mubr.bf16.mxu0 0
    %733 = vmatmul.mubr.bf16.gmra.mrb[0].mxu0 %v642
    %v734 = vpop.f32.mrb[0].mxu0
    %v735 = vadd.f32 %v148, %v734
    %v736 = vpop.f32.mrb[0].mxu0
    %v737 = vadd.f32 %v152, %v736
    %v738 = vpop.f32.mrb[0].mxu0
    %v739 = vadd.f32 %v148, %v738
    %v740 = vpop.f32.mrb[0].mxu0
    %v741 = vadd.f32 %v152, %v740
    %742 = vmatprep.mubr.bf16.mxu0 0
    %743 = vmatmul.mubr.bf16.gmra.mrb[0].mxu0 %v645
    %v744 = vpop.f32.mrb[0].mxu0
    %v745 = vadd.f32 %v148, %v744
    %v746 = vpop.f32.mrb[0].mxu0
    %v747 = vadd.f32 %v152, %v746
    %v748 = vpop.f32.mrb[0].mxu0
    %v749 = vadd.f32 %v148, %v748
    %v750 = vpop.f32.mrb[0].mxu0
    %v751 = vadd.f32 %v152, %v750
    %752 = vmatprep.mubr.bf16.mxu0 0
    %753 = vmatmul.mubr.bf16.gmra.mrb[0].mxu0 %v648
    %v754 = vpop.f32.mrb[0].mxu0
    %v755 = vadd.f32 %v148, %v754
    %v756 = vpop.f32.mrb[0].mxu0
    %v757 = vadd.f32 %v152, %v756
    %v758 = vpop.f32.mrb[0].mxu0
    %v759 = vadd.f32 %v148, %v758
    %v760 = vpop.f32.mrb[0].mxu0
    %v761 = vadd.f32 %v152, %v760
    %762 = vdwg.mxu0
    %763 = vmatprep.subr.bf16.mxu0 %v500
    %764 = vmatpush1.bf16.msra.mxu0 %v499
    %765 = vmatprep.subr.bf16.mxu0 %v532
    %766 = vmatpush1.bf16.msra.mxu0 %v531
    %767 = vmatprep.subr.bf16.mxu0 0
    %768 = vmatpush1.bf16.msra.mxu0 0
    %769 = vmatprep.subr.bf16.mxu0 0
    %770 = vmatpush1.bf16.msra.mxu0 0
    %771 = vmatprep.subr.bf16.mxu0 0
    %772 = vmatpush1.bf16.msra.mxu0 0
    %773 = vmatprep.subr.bf16.mxu0 0
    %774 = vmatpush1.bf16.msra.mxu0 0
    %775 = vmatprep.subr.bf16.mxu0 0
    %776 = vmatpush1.bf16.msra.mxu0 0
    %777 = vmatprep.subr.bf16.mxu0 0
    %778 = vmatpush1.bf16.msra.mxu0 0
    %779 = vmatprep.subr.bf16.mxu0 0
    %780 = vmatpush1.bf16.msra.mxu0 0
    %781 = vmatprep.subr.bf16.mxu0 0
    %782 = vmatpush1.bf16.msra.mxu0 0
    %783 = vmatprep.subr.bf16.mxu0 0
    %784 = vmatpush1.bf16.msra.mxu0 0
    %785 = vmatprep.subr.bf16.mxu0 0
    %786 = vmatpush1.bf16.msra.mxu0 0
    %787 = vmatprep.subr.bf16.mxu0 0
    %788 = vmatpush1.bf16.msra.mxu0 0
    %789 = vmatprep.subr.bf16.mxu0 0
    %790 = vmatpush1.bf16.msra.mxu0 0
    %791 = vmatprep.subr.bf16.mxu0 0
    %792 = vmatpush1.bf16.msra.mxu0 0
    %793 = vmatprep.subr.bf16.mxu0 0
    %794 = vmatpush1.bf16.msra.mxu0 0
    %795 = vmatprep.mubr.bf16.mxu0 0
    %796 = vmatmul.mubr.bf16.gmra.mrb[0].mxu0 %v627
    %v797 = vpop.f32.mrb[0].mxu0
    %v798 = vadd.f32 %v156, %v797
    %v799 = vpop.f32.mrb[0].mxu0
    %v800 = vadd.f32 %v160, %v799
    %v801 = vpop.f32.mrb[0].mxu0
    %v802 = vadd.f32 %v156, %v801
    %v803 = vpop.f32.mrb[0].mxu0
    %v804 = vadd.f32 %v160, %v803
    %805 = vmatprep.mubr.bf16.mxu0 0
    %806 = vmatmul.mubr.bf16.gmra.mrb[0].mxu0 %v630
    %v807 = vpop.f32.mrb[0].mxu0
    %v808 = vadd.f32 %v156, %v807
    %v809 = vpop.f32.mrb[0].mxu0
    %v810 = vadd.f32 %v160, %v809
    %v811 = vpop.f32.mrb[0].mxu0
    %v812 = vadd.f32 %v156, %v811
    %v813 = vpop.f32.mrb[0].mxu0
    %v814 = vadd.f32 %v160, %v813
    %815 = vmatprep.mubr.bf16.mxu0 0
    %816 = vmatmul.mubr.bf16.gmra.mrb[0].mxu0 %v633
    %v817 = vpop.f32.mrb[0].mxu0
    %v818 = vadd.f32 %v156, %v817
    %v819 = vpop.f32.mrb[0].mxu0
    %v820 = vadd.f32 %v160, %v819
    %v821 = vpop.f32.mrb[0].mxu0
    %v822 = vadd.f32 %v156, %v821
    %v823 = vpop.f32.mrb[0].mxu0
    %v824 = vadd.f32 %v160, %v823
    %825 = vmatprep.mubr.bf16.mxu0 0
    %826 = vmatmul.mubr.bf16.gmra.mrb[0].mxu0 %v636
    %v827 = vpop.f32.mrb[0].mxu0
    %v828 = vadd.f32 %v156, %v827
    %v829 = vpop.f32.mrb[0].mxu0
    %v830 = vadd.f32 %v160, %v829
    %v831 = vpop.f32.mrb[0].mxu0
    %v832 = vadd.f32 %v156, %v831
    %v833 = vpop.f32.mrb[0].mxu0
    %v834 = vadd.f32 %v160, %v833
    %835 = vmatprep.mubr.bf16.mxu0 0
    %836 = vmatmul.mubr.bf16.gmra.mrb[0].mxu0 %v639
    %v837 = vpop.f32.mrb[0].mxu0
    %v838 = vadd.f32 %v156, %v837
    %v839 = vpop.f32.mrb[0].mxu0
    %v840 = vadd.f32 %v160, %v839
    %v841 = vpop.f32.mrb[0].mxu0
    %v842 = vadd.f32 %v156, %v841
    %v843 = vpop.f32.mrb[0].mxu0
    %v844 = vadd.f32 %v160, %v843
    %845 = vmatprep.mubr.bf16.mxu0 0
    %846 = vmatmul.mubr.bf16.gmra.mrb[0].mxu0 %v642
    %v847 = vpop.f32.mrb[0].mxu0
    %v848 = vadd.f32 %v156, %v847
    %v849 = vpop.f32.mrb[0].mxu0
    %v850 = vadd.f32 %v160, %v849
    %v851 = vpop.f32.mrb[0].mxu0
    %v852 = vadd.f32 %v156, %v851
    %v853 = vpop.f32.mrb[0].mxu0
    %v854 = vadd.f32 %v160, %v853
    %855 = vmatprep.mubr.bf16.mxu0 0
    %856 = vmatmul.mubr.bf16.gmra.mrb[0].mxu0 %v645
    %v857 = vpop.f32.mrb[0].mxu0
    %v858 = vadd.f32 %v156, %v857
    %v859 = vpop.f32.mrb[0].mxu0
    %v860 = vadd.f32 %v160, %v859
    %v861 = vpop.f32.mrb[0].mxu0
    %v862 = vadd.f32 %v156, %v861
    %v863 = vpop.f32.mrb[0].mxu0
    %v864 = vadd.f32 %v160, %v863
    %865 = vmatprep.mubr.bf16.mxu0 0
    %866 = vmatmul.mubr.bf16.gmra.mrb[0].mxu0 %v648
    %v867 = vpop.f32.mrb[0].mxu0
    %v868 = vadd.f32 %v156, %v867
    %v869 = vpop.f32.mrb[0].mxu0
    %v870 = vadd.f32 %v160, %v869
    %v871 = vpop.f32.mrb[0].mxu0
    %v872 = vadd.f32 %v156, %v871
    %v873 = vpop.f32.mrb[0].mxu0
    %v874 = vadd.f32 %v160, %v873
    %875 = vdwg.mxu0
    %876 = vmatprep.subr.bf16.mxu0 %v502
    %877 = vmatpush1.bf16.msra.mxu0 %v501
    %878 = vmatprep.subr.bf16.mxu0 %v534
    %879 = vmatpush1.bf16.msra.mxu0 %v533
    %880 = vmatprep.subr.bf16.mxu0 0
    %881 = vmatpush1.bf16.msra.mxu0 0
    %882 = vmatprep.subr.bf16.mxu0 0
    %883 = vmatpush1.bf16.msra.mxu0 0
    %884 = vmatprep.subr.bf16.mxu0 0
    %885 = vmatpush1.bf16.msra.mxu0 0
    %886 = vmatprep.subr.bf16.mxu0 0
    %887 = vmatpush1.bf16.msra.mxu0 0
    %888 = vmatprep.subr.bf16.mxu0 0
    %889 = vmatpush1.bf16.msra.mxu0 0
    %890 = vmatprep.subr.bf16.mxu0 0
    %891 = vmatpush1.bf16.msra.mxu0 0
    %892 = vmatprep.subr.bf16.mxu0 0
    %893 = vmatpush1.bf16.msra.mxu0 0
    %894 = vmatprep.subr.bf16.mxu0 0
    %895 = vmatpush1.bf16.msra.mxu0 0
    %896 = vmatprep.subr.bf16.mxu0 0
    %897 = vmatpush1.bf16.msra.mxu0 0
    %898 = vmatprep.subr.bf16.mxu0 0
    %899 = vmatpush1.bf16.msra.mxu0 0
    %900 = vmatprep.subr.bf16.mxu0 0
    %901 = vmatpush1.bf16.msra.mxu0 0
    %902 = vmatprep.subr.bf16.mxu0 0
    %903 = vmatpush1.bf16.msra.mxu0 0
    %904 = vmatprep.subr.bf16.mxu0 0
    %905 = vmatpush1.bf16.msra.mxu0 0
    %906 = vmatprep.subr.bf16.mxu0 0
    %907 = vmatpush1.bf16.msra.mxu0 0
    %908 = vmatprep.mubr.bf16.mxu0 0
    %909 = vmatmul.mubr.bf16.gmra.mrb[0].mxu0 %v627
    %v910 = vpop.f32.mrb[0].mxu0
    %v911 = vadd.f32 %v164, %v910
    %v912 = vpop.f32.mrb[0].mxu0
    %v913 = vadd.f32 %v168, %v912
    %v914 = vpop.f32.mrb[0].mxu0
    %v915 = vadd.f32 %v164, %v914
    %v916 = vpop.f32.mrb[0].mxu0
    %v917 = vadd.f32 %v168, %v916
    %918 = vmatprep.mubr.bf16.mxu0 0
    %919 = vmatmul.mubr.bf16.gmra.mrb[0].mxu0 %v630
    %v920 = vpop.f32.mrb[0].mxu0
    %v921 = vadd.f32 %v164, %v920
    %v922 = vpop.f32.mrb[0].mxu0
    %v923 = vadd.f32 %v168, %v922
    %v924 = vpop.f32.mrb[0].mxu0
    %v925 = vadd.f32 %v164, %v924
    %v926 = vpop.f32.mrb[0].mxu0
    %v927 = vadd.f32 %v168, %v926
    %928 = vmatprep.mubr.bf16.mxu0 0
    %929 = vmatmul.mubr.bf16.gmra.mrb[0].mxu0 %v633
    %v930 = vpop.f32.mrb[0].mxu0
    %v931 = vadd.f32 %v164, %v930
    %v932 = vpop.f32.mrb[0].mxu0
    %v933 = vadd.f32 %v168, %v932
    %v934 = vpop.f32.mrb[0].mxu0
    %v935 = vadd.f32 %v164, %v934
    %v936 = vpop.f32.mrb[0].mxu0
    %v937 = vadd.f32 %v168, %v936
    %938 = vmatprep.mubr.bf16.mxu0 0
    %939 = vmatmul.mubr.bf16.gmra.mrb[0].mxu0 %v636
    %v940 = vpop.f32.mrb[0].mxu0
    %v941 = vadd.f32 %v164, %v940
    %v942 = vpop.f32.mrb[0].mxu0
    %v943 = vadd.f32 %v168, %v942
    %v944 = vpop.f32.mrb[0].mxu0
    %v945 = vadd.f32 %v164, %v944
    %v946 = vpop.f32.mrb[0].mxu0
    %v947 = vadd.f32 %v168, %v946
    %948 = vmatprep.mubr.bf16.mxu0 0
    %949 = vmatmul.mubr.bf16.gmra.mrb[0].mxu0 %v639
    %v950 = vpop.f32.mrb[0].mxu0
    %v951 = vadd.f32 %v164, %v950
    %v952 = vpop.f32.mrb[0].mxu0
    %v953 = vadd.f32 %v168, %v952
    %v954 = vpop.f32.mrb[0].mxu0
    %v955 = vadd.f32 %v164, %v954
    %v956 = vpop.f32.mrb[0].mxu0
    %v957 = vadd.f32 %v168, %v956
    %958 = vmatprep.mubr.bf16.mxu0 0
    %959 = vmatmul.mubr.bf16.gmra.mrb[0].mxu0 %v642
    %v960 = vpop.f32.mrb[0].mxu0
    %v961 = vadd.f32 %v164, %v960
    %v962 = vpop.f32.mrb[0].mxu0
    %v963 = vadd.f32 %v168, %v962
    %v964 = vpop.f32.mrb[0].mxu0
    %v965 = vadd.f32 %v164, %v964
    %v966 = vpop.f32.mrb[0].mxu0
    %v967 = vadd.f32 %v168, %v966
    %968 = vmatprep.mubr.bf16.mxu0 0
    %969 = vmatmul.mubr.bf16.gmra.mrb[0].mxu0 %v645
    %v970 = vpop.f32.mrb[0].mxu0
    %v971 = vadd.f32 %v164, %v970
    %v972 = vpop.f32.mrb[0].mxu0
    %v973 = vadd.f32 %v168, %v972
    %v974 = vpop.f32.mrb[0].mxu0
    %v975 = vadd.f32 %v164, %v974
    %v976 = vpop.f32.mrb[0].mxu0
    %v977 = vadd.f32 %v168, %v976
    %978 = vmatprep.mubr.bf16.mxu0 0
    %979 = vmatmul.mubr.bf16.gmra.mrb[0].mxu0 %v648
    %v980 = vpop.f32.mrb[0].mxu0
    %v981 = vadd.f32 %v164, %v980
    %v982 = vpop.f32.mrb[0].mxu0
    %v983 = vadd.f32 %v168, %v982
    %v984 = vpop.f32.mrb[0].mxu0
    %v985 = vadd.f32 %v164, %v984
    %v986 = vpop.f32.mrb[0].mxu0
    %v987 = vadd.f32 %v168, %v986
    %988 = vdwg.mxu0
    %989 = vmatprep.subr.bf16.mxu0 %v504
    %990 = vmatpush1.bf16.msra.mxu0 %v503
    %991 = vmatprep.subr.bf16.mxu0 %v536
    %992 = vmatpush1.bf16.msra.mxu0 %v535
    %993 = vmatprep.subr.bf16.mxu0 0
    %994 = vmatpush1.bf16.msra.mxu0 0
    %995 = vmatprep.subr.bf16.mxu0 0
    %996 = vmatpush1.bf16.msra.mxu0 0
    %997 = vmatprep.subr.bf16.mxu0 0
    %998 = vmatpush1.bf16.msra.mxu0 0
    %999 = vmatprep.subr.bf16.mxu0 0
    %1000 = vmatpush1.bf16.msra.mxu0 0
    %1001 = vmatprep.subr.bf16.mxu0 0
    %1002 = vmatpush1.bf16.msra.mxu0 0
    %1003 = vmatprep.subr.bf16.mxu0 0
    %1004 = vmatpush1.bf16.msra.mxu0 0
    %1005 = vmatprep.subr.bf16.mxu0 0
    %1006 = vmatpush1.bf16.msra.mxu0 0
    %1007 = vmatprep.subr.bf16.mxu0 0
    %1008 = vmatpush1.bf16.msra.mxu0 0
    %1009 = vmatprep.subr.bf16.mxu0 0
    %1010 = vmatpush1.bf16.msra.mxu0 0
    %1011 = vmatprep.subr.bf16.mxu0 0
    %1012 = vmatpush1.bf16.msra.mxu0 0
    %1013 = vmatprep.subr.bf16.mxu0 0
    %1014 = vmatpush1.bf16.msra.mxu0 0
    %1015 = vmatprep.subr.bf16.mxu0 0
    %1016 = vmatpush1.bf16.msra.mxu0 0
    %1017 = vmatprep.subr.bf16.mxu0 0
    %1018 = vmatpush1.bf16.msra.mxu0 0
    %1019 = vmatprep.subr.bf16.mxu0 0
    %1020 = vmatpush1.bf16.msra.mxu0 0
    %1021 = vmatprep.mubr.bf16.mxu0 0
    %1022 = vmatmul.mubr.bf16.gmra.mrb[0].mxu0 %v627
    %v1023 = vpop.f32.mrb[0].mxu0
    %v1024 = vadd.f32 %v172, %v1023
    %v1025 = vpop.f32.mrb[0].mxu0
    %v1026 = vadd.f32 %v176, %v1025
    %v1027 = vpop.f32.mrb[0].mxu0
    %v1028 = vadd.f32 %v172, %v1027
    %v1029 = vpop.f32.mrb[0].mxu0
    %v1030 = vadd.f32 %v176, %v1029
    %1031 = vmatprep.mubr.bf16.mxu0 0
    %1032 = vmatmul.mubr.bf16.gmra.mrb[0].mxu0 %v630
    %v1033 = vpop.f32.mrb[0].mxu0
    %v1034 = vadd.f32 %v172, %v1033
    %v1035 = vpop.f32.mrb[0].mxu0
    %v1036 = vadd.f32 %v176, %v1035
    %v1037 = vpop.f32.mrb[0].mxu0
    %v1038 = vadd.f32 %v172, %v1037
    %v1039 = vpop.f32.mrb[0].mxu0
    %v1040 = vadd.f32 %v176, %v1039
    %1041 = vmatprep.mubr.bf16.mxu0 0
    %1042 = vmatmul.mubr.bf16.gmra.mrb[0].mxu0 %v633
    %v1043 = vpop.f32.mrb[0].mxu0
    %v1044 = vadd.f32 %v172, %v1043
    %v1045 = vpop.f32.mrb[0].mxu0
    %v1046 = vadd.f32 %v176, %v1045
    %v1047 = vpop.f32.mrb[0].mxu0
    %v1048 = vadd.f32 %v172, %v1047
    %v1049 = vpop.f32.mrb[0].mxu0
    %v1050 = vadd.f32 %v176, %v1049
    %1051 = vmatprep.mubr.bf16.mxu0 0
    %1052 = vmatmul.mubr.bf16.gmra.mrb[0].mxu0 %v636
    %v1053 = vpop.f32.mrb[0].mxu0
    %v1054 = vadd.f32 %v172, %v1053
    %v1055 = vpop.f32.mrb[0].mxu0
    %v1056 = vadd.f32 %v176, %v1055
    %v1057 = vpop.f32.mrb[0].mxu0
    %v1058 = vadd.f32 %v172, %v1057
    %v1059 = vpop.f32.mrb[0].mxu0
    %v1060 = vadd.f32 %v176, %v1059
    %1061 = vmatprep.mubr.bf16.mxu0 0
    %1062 = vmatmul.mubr.bf16.gmra.mrb[0].mxu0 %v639
    %v1063 = vpop.f32.mrb[0].mxu0
    %v1064 = vadd.f32 %v172, %v1063
    %v1065 = vpop.f32.mrb[0].mxu0
    %v1066 = vadd.f32 %v176, %v1065
    %v1067 = vpop.f32.mrb[0].mxu0
    %v1068 = vadd.f32 %v172, %v1067
    %v1069 = vpop.f32.mrb[0].mxu0
    %v1070 = vadd.f32 %v176, %v1069
    %1071 = vmatprep.mubr.bf16.mxu0 0
    %1072 = vmatmul.mubr.bf16.gmra.mrb[0].mxu0 %v642
    %v1073 = vpop.f32.mrb[0].mxu0
    %v1074 = vadd.f32 %v172, %v1073
    %v1075 = vpop.f32.mrb[0].mxu0
    %v1076 = vadd.f32 %v176, %v1075
    %v1077 = vpop.f32.mrb[0].mxu0
    %v1078 = vadd.f32 %v172, %v1077
    %v1079 = vpop.f32.mrb[0].mxu0
    %v1080 = vadd.f32 %v176, %v1079
    %1081 = vmatprep.mubr.bf16.mxu0 0
    %1082 = vmatmul.mubr.bf16.gmra.mrb[0].mxu0 %v645
    %v1083 = vpop.f32.mrb[0].mxu0
    %v1084 = vadd.f32 %v172, %v1083
    %v1085 = vpop.f32.mrb[0].mxu0
    %v1086 = vadd.f32 %v176, %v1085
    %v1087 = vpop.f32.mrb[0].mxu0
    %v1088 = vadd.f32 %v172, %v1087
    %v1089 = vpop.f32.mrb[0].mxu0
    %v1090 = vadd.f32 %v176, %v1089
    %1091 = vmatprep.mubr.bf16.mxu0 0
    %1092 = vmatmul.mubr.bf16.gmra.mrb[0].mxu0 %v648
    %v1093 = vpop.f32.mrb[0].mxu0
    %v1094 = vadd.f32 %v172, %v1093
    %v1095 = vpop.f32.mrb[0].mxu0
    %v1096 = vadd.f32 %v176, %v1095
    %v1097 = vpop.f32.mrb[0].mxu0
    %v1098 = vadd.f32 %v172, %v1097
    %v1099 = vpop.f32.mrb[0].mxu0
    %v1100 = vadd.f32 %v176, %v1099
    %1101 = vdwg.mxu0
    %1102 = vmatprep.subr.bf16.mxu0 %v506
    %1103 = vmatpush1.bf16.msra.mxu0 %v505
    %1104 = vmatprep.subr.bf16.mxu0 %v538
    %1105 = vmatpush1.bf16.msra.mxu0 %v537
    %1106 = vmatprep.subr.bf16.mxu0 0
    %1107 = vmatpush1.bf16.msra.mxu0 0
    %1108 = vmatprep.subr.bf16.mxu0 0
    %1109 = vmatpush1.bf16.msra.mxu0 0
    %1110 = vmatprep.subr.bf16.mxu0 0
    %1111 = vmatpush1.bf16.msra.mxu0 0
    %1112 = vmatprep.subr.bf16.mxu0 0
    %1113 = vmatpush1.bf16.msra.mxu0 0
    %1114 = vmatprep.subr.bf16.mxu0 0
    %1115 = vmatpush1.bf16.msra.mxu0 0
    %1116 = vmatprep.subr.bf16.mxu0 0
    %1117 = vmatpush1.bf16.msra.mxu0 0
    %1118 = vmatprep.subr.bf16.mxu0 0
    %1119 = vmatpush1.bf16.msra.mxu0 0
    %1120 = vmatprep.subr.bf16.mxu0 0
    %1121 = vmatpush1.bf16.msra.mxu0 0
    %1122 = vmatprep.subr.bf16.mxu0 0
    %1123 = vmatpush1.bf16.msra.mxu0 0
    %1124 = vmatprep.subr.bf16.mxu0 0
    %1125 = vmatpush1.bf16.msra.mxu0 0
    %1126 = vmatprep.subr.bf16.mxu0 0
    %1127 = vmatpush1.bf16.msra.mxu0 0
    %1128 = vmatprep.subr.bf16.mxu0 0
    %1129 = vmatpush1.bf16.msra.mxu0 0
    %1130 = vmatprep.subr.bf16.mxu0 0
    %1131 = vmatpush1.bf16.msra.mxu0 0
    %1132 = vmatprep.subr.bf16.mxu0 0
    %1133 = vmatpush1.bf16.msra.mxu0 0
    %1134 = vmatprep.mubr.bf16.mxu0 0
    %1135 = vmatmul.mubr.bf16.gmra.mrb[0].mxu0 %v627
    %v1136 = vpop.f32.mrb[0].mxu0
    %v1137 = vadd.f32 %v180, %v1136
    %v1138 = vpop.f32.mrb[0].mxu0
    %v1139 = vadd.f32 %v184, %v1138
    %v1140 = vpop.f32.mrb[0].mxu0
    %v1141 = vadd.f32 %v180, %v1140
    %v1142 = vpop.f32.mrb[0].mxu0
    %v1143 = vadd.f32 %v184, %v1142
    %1144 = vmatprep.mubr.bf16.mxu0 0
    %1145 = vmatmul.mubr.bf16.gmra.mrb[0].mxu0 %v630
    %v1146 = vpop.f32.mrb[0].mxu0
    %v1147 = vadd.f32 %v180, %v1146
    %v1148 = vpop.f32.mrb[0].mxu0
    %v1149 = vadd.f32 %v184, %v1148
    %v1150 = vpop.f32.mrb[0].mxu0
    %v1151 = vadd.f32 %v180, %v1150
    %v1152 = vpop.f32.mrb[0].mxu0
    %v1153 = vadd.f32 %v184, %v1152
    %1154 = vmatprep.mubr.bf16.mxu0 0
    %1155 = vmatmul.mubr.bf16.gmra.mrb[0].mxu0 %v633
    %v1156 = vpop.f32.mrb[0].mxu0
    %v1157 = vadd.f32 %v180, %v1156
    %v1158 = vpop.f32.mrb[0].mxu0
    %v1159 = vadd.f32 %v184, %v1158
    %v1160 = vpop.f32.mrb[0].mxu0
    %v1161 = vadd.f32 %v180, %v1160
    %v1162 = vpop.f32.mrb[0].mxu0
    %v1163 = vadd.f32 %v184, %v1162
    %1164 = vmatprep.mubr.bf16.mxu0 0
    %1165 = vmatmul.mubr.bf16.gmra.mrb[0].mxu0 %v636
    %v1166 = vpop.f32.mrb[0].mxu0
    %v1167 = vadd.f32 %v180, %v1166
    %v1168 = vpop.f32.mrb[0].mxu0
    %v1169 = vadd.f32 %v184, %v1168
    %v1170 = vpop.f32.mrb[0].mxu0
    %v1171 = vadd.f32 %v180, %v1170
    %v1172 = vpop.f32.mrb[0].mxu0
    %v1173 = vadd.f32 %v184, %v1172
    %1174 = vmatprep.mubr.bf16.mxu0 0
    %1175 = vmatmul.mubr.bf16.gmra.mrb[0].mxu0 %v639
    %v1176 = vpop.f32.mrb[0].mxu0
    %v1177 = vadd.f32 %v180, %v1176
    %v1178 = vpop.f32.mrb[0].mxu0
    %v1179 = vadd.f32 %v184, %v1178
    %v1180 = vpop.f32.mrb[0].mxu0
    %v1181 = vadd.f32 %v180, %v1180
    %v1182 = vpop.f32.mrb[0].mxu0
    %v1183 = vadd.f32 %v184, %v1182
    %1184 = vmatprep.mubr.bf16.mxu0 0
    %1185 = vmatmul.mubr.bf16.gmra.mrb[0].mxu0 %v642
    %v1186 = vpop.f32.mrb[0].mxu0
    %v1187 = vadd.f32 %v180, %v1186
    %v1188 = vpop.f32.mrb[0].mxu0
    %v1189 = vadd.f32 %v184, %v1188
    %v1190 = vpop.f32.mrb[0].mxu0
    %v1191 = vadd.f32 %v180, %v1190
    %v1192 = vpop.f32.mrb[0].mxu0
    %v1193 = vadd.f32 %v184, %v1192
    %1194 = vmatprep.mubr.bf16.mxu0 0
    %1195 = vmatmul.mubr.bf16.gmra.mrb[0].mxu0 %v645
    %v1196 = vpop.f32.mrb[0].mxu0
    %v1197 = vadd.f32 %v180, %v1196
    %v1198 = vpop.f32.mrb[0].mxu0
    %v1199 = vadd.f32 %v184, %v1198
    %v1200 = vpop.f32.mrb[0].mxu0
    %v1201 = vadd.f32 %v180, %v1200
    %v1202 = vpop.f32.mrb[0].mxu0
    %v1203 = vadd.f32 %v184, %v1202
    %1204 = vmatprep.mubr.bf16.mxu0 0
    %1205 = vmatmul.mubr.bf16.gmra.mrb[0].mxu0 %v648
    %v1206 = vpop.f32.mrb[0].mxu0
    %v1207 = vadd.f32 %v180, %v1206
    %v1208 = vpop.f32.mrb[0].mxu0
    %v1209 = vadd.f32 %v184, %v1208
    %v1210 = vpop.f32.mrb[0].mxu0
    %v1211 = vadd.f32 %v180, %v1210
    %v1212 = vpop.f32.mrb[0].mxu0
    %v1213 = vadd.f32 %v184, %v1212
    %1214 = vdwg.mxu0
    %1215 = vmatprep.subr.bf16.mxu0 %v508
    %1216 = vmatpush1.bf16.msra.mxu0 %v507
    %1217 = vmatprep.subr.bf16.mxu0 %v540
    %1218 = vmatpush1.bf16.msra.mxu0 %v539
    %1219 = vmatprep.subr.bf16.mxu0 0
    %1220 = vmatpush1.bf16.msra.mxu0 0
    %1221 = vmatprep.subr.bf16.mxu0 0
    %1222 = vmatpush1.bf16.msra.mxu0 0
    %1223 = vmatprep.subr.bf16.mxu0 0
    %1224 = vmatpush1.bf16.msra.mxu0 0
    %1225 = vmatprep.subr.bf16.mxu0 0
    %1226 = vmatpush1.bf16.msra.mxu0 0
    %1227 = vmatprep.subr.bf16.mxu0 0
    %1228 = vmatpush1.bf16.msra.mxu0 0
    %1229 = vmatprep.subr.bf16.mxu0 0
    %1230 = vmatpush1.bf16.msra.mxu0 0
    %1231 = vmatprep.subr.bf16.mxu0 0
    %1232 = vmatpush1.bf16.msra.mxu0 0
    %1233 = vmatprep.subr.bf16.mxu0 0
    %1234 = vmatpush1.bf16.msra.mxu0 0
    %1235 = vmatprep.subr.bf16.mxu0 0
    %1236 = vmatpush1.bf16.msra.mxu0 0
    %1237 = vmatprep.subr.bf16.mxu0 0
    %1238 = vmatpush1.bf16.msra.mxu0 0
    %1239 = vmatprep.subr.bf16.mxu0 0
    %1240 = vmatpush1.bf16.msra.mxu0 0
    %1241 = vmatprep.subr.bf16.mxu0 0
    %1242 = vmatpush1.bf16.msra.mxu0 0
    %1243 = vmatprep.subr.bf16.mxu0 0
    %1244 = vmatpush1.bf16.msra.mxu0 0
    %1245 = vmatprep.subr.bf16.mxu0 0
    %1246 = vmatpush1.bf16.msra.mxu0 0
    %1247 = vmatprep.mubr.bf16.mxu0 0
    %1248 = vmatmul.mubr.bf16.gmra.mrb[0].mxu0 %v627
    %v1249 = vpop.f32.mrb[0].mxu0
    %v1250 = vadd.f32 %v188, %v1249
    %v1251 = vpop.f32.mrb[0].mxu0
    %v1252 = vadd.f32 %v192, %v1251
    %v1253 = vpop.f32.mrb[0].mxu0
    %v1254 = vadd.f32 %v188, %v1253
    %v1255 = vpop.f32.mrb[0].mxu0
    %v1256 = vadd.f32 %v192, %v1255
    %1257 = vmatprep.mubr.bf16.mxu0 0
    %1258 = vmatmul.mubr.bf16.gmra.mrb[0].mxu0 %v630
    %v1259 = vpop.f32.mrb[0].mxu0
    %v1260 = vadd.f32 %v188, %v1259
    %v1261 = vpop.f32.mrb[0].mxu0
    %v1262 = vadd.f32 %v192, %v1261
    %v1263 = vpop.f32.mrb[0].mxu0
    %v1264 = vadd.f32 %v188, %v1263
    %v1265 = vpop.f32.mrb[0].mxu0
    %v1266 = vadd.f32 %v192, %v1265
    %1267 = vmatprep.mubr.bf16.mxu0 0
    %1268 = vmatmul.mubr.bf16.gmra.mrb[0].mxu0 %v633
    %v1269 = vpop.f32.mrb[0].mxu0
    %v1270 = vadd.f32 %v188, %v1269
    %v1271 = vpop.f32.mrb[0].mxu0
    %v1272 = vadd.f32 %v192, %v1271
    %v1273 = vpop.f32.mrb[0].mxu0
    %v1274 = vadd.f32 %v188, %v1273
    %v1275 = vpop.f32.mrb[0].mxu0
    %v1276 = vadd.f32 %v192, %v1275
    %1277 = vmatprep.mubr.bf16.mxu0 0
    %1278 = vmatmul.mubr.bf16.gmra.mrb[0].mxu0 %v636
    %v1279 = vpop.f32.mrb[0].mxu0
    %v1280 = vadd.f32 %v188, %v1279
    %v1281 = vpop.f32.mrb[0].mxu0
    %v1282 = vadd.f32 %v192, %v1281
    %v1283 = vpop.f32.mrb[0].mxu0
    %v1284 = vadd.f32 %v188, %v1283
    %v1285 = vpop.f32.mrb[0].mxu0
    %v1286 = vadd.f32 %v192, %v1285
    %1287 = vmatprep.mubr.bf16.mxu0 0
    %1288 = vmatmul.mubr.bf16.gmra.mrb[0].mxu0 %v639
    %v1289 = vpop.f32.mrb[0].mxu0
    %v1290 = vadd.f32 %v188, %v1289
    %v1291 = vpop.f32.mrb[0].mxu0
    %v1292 = vadd.f32 %v192, %v1291
    %v1293 = vpop.f32.mrb[0].mxu0
    %v1294 = vadd.f32 %v188, %v1293
    %v1295 = vpop.f32.mrb[0].mxu0
    %v1296 = vadd.f32 %v192, %v1295
    %1297 = vmatprep.mubr.bf16.mxu0 0
    %1298 = vmatmul.mubr.bf16.gmra.mrb[0].mxu0 %v642
    %v1299 = vpop.f32.mrb[0].mxu0
    %v1300 = vadd.f32 %v188, %v1299
    %v1301 = vpop.f32.mrb[0].mxu0
    %v1302 = vadd.f32 %v192, %v1301
    %v1303 = vpop.f32.mrb[0].mxu0
    %v1304 = vadd.f32 %v188, %v1303
    %v1305 = vpop.f32.mrb[0].mxu0
    %v1306 = vadd.f32 %v192, %v1305
    %1307 = vmatprep.mubr.bf16.mxu0 0
    %1308 = vmatmul.mubr.bf16.gmra.mrb[0].mxu0 %v645
    %v1309 = vpop.f32.mrb[0].mxu0
    %v1310 = vadd.f32 %v188, %v1309
    %v1311 = vpop.f32.mrb[0].mxu0
    %v1312 = vadd.f32 %v192, %v1311
    %v1313 = vpop.f32.mrb[0].mxu0
    %v1314 = vadd.f32 %v188, %v1313
    %v1315 = vpop.f32.mrb[0].mxu0
    %v1316 = vadd.f32 %v192, %v1315
    %1317 = vmatprep.mubr.bf16.mxu0 0
    %1318 = vmatmul.mubr.bf16.gmra.mrb[0].mxu0 %v648
    %v1319 = vpop.f32.mrb[0].mxu0
    %v1320 = vadd.f32 %v188, %v1319
    %v1321 = vpop.f32.mrb[0].mxu0
    %v1322 = vadd.f32 %v192, %v1321
    %v1323 = vpop.f32.mrb[0].mxu0
    %v1324 = vadd.f32 %v188, %v1323
    %v1325 = vpop.f32.mrb[0].mxu0
    %v1326 = vadd.f32 %v192, %v1325
    %1327 = vdwg.mxu0
    %1328 = vmatprep.subr.bf16.mxu0 %v510
    %1329 = vmatpush1.bf16.msra.mxu0 %v509
    %1330 = vmatprep.subr.bf16.mxu0 %v542
    %1331 = vmatpush1.bf16.msra.mxu0 %v541
    %1332 = vmatprep.subr.bf16.mxu0 0
    %1333 = vmatpush1.bf16.msra.mxu0 0
    %1334 = vmatprep.subr.bf16.mxu0 0
    %1335 = vmatpush1.bf16.msra.mxu0 0
    %1336 = vmatprep.subr.bf16.mxu0 0
    %1337 = vmatpush1.bf16.msra.mxu0 0
    %1338 = vmatprep.subr.bf16.mxu0 0
    %1339 = vmatpush1.bf16.msra.mxu0 0
    %1340 = vmatprep.subr.bf16.mxu0 0
    %1341 = vmatpush1.bf16.msra.mxu0 0
    %1342 = vmatprep.subr.bf16.mxu0 0
    %1343 = vmatpush1.bf16.msra.mxu0 0
    %1344 = vmatprep.subr.bf16.mxu0 0
    %1345 = vmatpush1.bf16.msra.mxu0 0
    %1346 = vmatprep.subr.bf16.mxu0 0
    %1347 = vmatpush1.bf16.msra.mxu0 0
    %1348 = vmatprep.subr.bf16.mxu0 0
    %1349 = vmatpush1.bf16.msra.mxu0 0
    %1350 = vmatprep.subr.bf16.mxu0 0
    %1351 = vmatpush1.bf16.msra.mxu0 0
    %1352 = vmatprep.subr.bf16.mxu0 0
    %1353 = vmatpush1.bf16.msra.mxu0 0
    %1354 = vmatprep.subr.bf16.mxu0 0
    %1355 = vmatpush1.bf16.msra.mxu0 0
    %1356 = vmatprep.subr.bf16.mxu0 0
    %1357 = vmatpush1.bf16.msra.mxu0 0
    %1358 = vmatprep.subr.bf16.mxu0 0
    %1359 = vmatpush1.bf16.msra.mxu0 0
    %1360 = vmatprep.mubr.bf16.mxu0 0
    %1361 = vmatmul.mubr.bf16.gmra.mrb[0].mxu0 %v627
    %v1362 = vpop.f32.mrb[0].mxu0
    %v1363 = vadd.f32 %v196, %v1362
    %v1364 = vpop.f32.mrb[0].mxu0
    %v1365 = vadd.f32 %v200, %v1364
    %v1366 = vpop.f32.mrb[0].mxu0
    %v1367 = vadd.f32 %v196, %v1366
    %v1368 = vpop.f32.mrb[0].mxu0
    %v1369 = vadd.f32 %v200, %v1368
    %1370 = vmatprep.mubr.bf16.mxu0 0
    %1371 = vmatmul.mubr.bf16.gmra.mrb[0].mxu0 %v630
    %v1372 = vpop.f32.mrb[0].mxu0
    %v1373 = vadd.f32 %v196, %v1372
    %v1374 = vpop.f32.mrb[0].mxu0
    %v1375 = vadd.f32 %v200, %v1374
    %v1376 = vpop.f32.mrb[0].mxu0
    %v1377 = vadd.f32 %v196, %v1376
    %v1378 = vpop.f32.mrb[0].mxu0
    %v1379 = vadd.f32 %v200, %v1378
    %1380 = vmatprep.mubr.bf16.mxu0 0
    %1381 = vmatmul.mubr.bf16.gmra.mrb[0].mxu0 %v633
    %v1382 = vpop.f32.mrb[0].mxu0
    %v1383 = vadd.f32 %v196, %v1382
    %v1384 = vpop.f32.mrb[0].mxu0
    %v1385 = vadd.f32 %v200, %v1384
    %v1386 = vpop.f32.mrb[0].mxu0
    %v1387 = vadd.f32 %v196, %v1386
    %v1388 = vpop.f32.mrb[0].mxu0
    %v1389 = vadd.f32 %v200, %v1388
    %1390 = vmatprep.mubr.bf16.mxu0 0
    %1391 = vmatmul.mubr.bf16.gmra.mrb[0].mxu0 %v636
    %v1392 = vpop.f32.mrb[0].mxu0
    %v1393 = vadd.f32 %v196, %v1392
    %v1394 = vpop.f32.mrb[0].mxu0
    %v1395 = vadd.f32 %v200, %v1394
    %v1396 = vpop.f32.mrb[0].mxu0
    %v1397 = vadd.f32 %v196, %v1396
    %v1398 = vpop.f32.mrb[0].mxu0
    %v1399 = vadd.f32 %v200, %v1398
    %1400 = vmatprep.mubr.bf16.mxu0 0
    %1401 = vmatmul.mubr.bf16.gmra.mrb[0].mxu0 %v639
    %v1402 = vpop.f32.mrb[0].mxu0
    %v1403 = vadd.f32 %v196, %v1402
    %v1404 = vpop.f32.mrb[0].mxu0
    %v1405 = vadd.f32 %v200, %v1404
    %v1406 = vpop.f32.mrb[0].mxu0
    %v1407 = vadd.f32 %v196, %v1406
    %v1408 = vpop.f32.mrb[0].mxu0
    %v1409 = vadd.f32 %v200, %v1408
    %1410 = vmatprep.mubr.bf16.mxu0 0
    %1411 = vmatmul.mubr.bf16.gmra.mrb[0].mxu0 %v642
    %v1412 = vpop.f32.mrb[0].mxu0
    %v1413 = vadd.f32 %v196, %v1412
    %v1414 = vpop.f32.mrb[0].mxu0
    %v1415 = vadd.f32 %v200, %v1414
    %v1416 = vpop.f32.mrb[0].mxu0
    %v1417 = vadd.f32 %v196, %v1416
    %v1418 = vpop.f32.mrb[0].mxu0
    %v1419 = vadd.f32 %v200, %v1418
    %1420 = vmatprep.mubr.bf16.mxu0 0
    %1421 = vmatmul.mubr.bf16.gmra.mrb[0].mxu0 %v645
    %v1422 = vpop.f32.mrb[0].mxu0
    %v1423 = vadd.f32 %v196, %v1422
    %v1424 = vpop.f32.mrb[0].mxu0
    %v1425 = vadd.f32 %v200, %v1424
    %v1426 = vpop.f32.mrb[0].mxu0
    %v1427 = vadd.f32 %v196, %v1426
    %v1428 = vpop.f32.mrb[0].mxu0
    %v1429 = vadd.f32 %v200, %v1428
    %1430 = vmatprep.mubr.bf16.mxu0 0
    %1431 = vmatmul.mubr.bf16.gmra.mrb[0].mxu0 %v648
    %v1432 = vpop.f32.mrb[0].mxu0
    %v1433 = vadd.f32 %v196, %v1432
    %v1434 = vpop.f32.mrb[0].mxu0
    %v1435 = vadd.f32 %v200, %v1434
    %v1436 = vpop.f32.mrb[0].mxu0
    %v1437 = vadd.f32 %v196, %v1436
    %v1438 = vpop.f32.mrb[0].mxu0
    %v1439 = vadd.f32 %v200, %v1438
    %1440 = vdwg.mxu0
    %1441 = vmatprep.subr.bf16.mxu0 %v512
    %1442 = vmatpush1.bf16.msra.mxu0 %v511
    %1443 = vmatprep.subr.bf16.mxu0 %v544
    %1444 = vmatpush1.bf16.msra.mxu0 %v543
    %1445 = vmatprep.subr.bf16.mxu0 0
    %1446 = vmatpush1.bf16.msra.mxu0 0
    %1447 = vmatprep.subr.bf16.mxu0 0
    %1448 = vmatpush1.bf16.msra.mxu0 0
    %1449 = vmatprep.subr.bf16.mxu0 0
    %1450 = vmatpush1.bf16.msra.mxu0 0
    %1451 = vmatprep.subr.bf16.mxu0 0
    %1452 = vmatpush1.bf16.msra.mxu0 0
    %1453 = vmatprep.subr.bf16.mxu0 0
    %1454 = vmatpush1.bf16.msra.mxu0 0
    %1455 = vmatprep.subr.bf16.mxu0 0
    %1456 = vmatpush1.bf16.msra.mxu0 0
    %1457 = vmatprep.subr.bf16.mxu0 0
    %1458 = vmatpush1.bf16.msra.mxu0 0
    %1459 = vmatprep.subr.bf16.mxu0 0
    %1460 = vmatpush1.bf16.msra.mxu0 0
    %1461 = vmatprep.subr.bf16.mxu0 0
    %1462 = vmatpush1.bf16.msra.mxu0 0
    %1463 = vmatprep.subr.bf16.mxu0 0
    %1464 = vmatpush1.bf16.msra.mxu0 0
    %1465 = vmatprep.subr.bf16.mxu0 0
    %1466 = vmatpush1.bf16.msra.mxu0 0
    %1467 = vmatprep.subr.bf16.mxu0 0
    %1468 = vmatpush1.bf16.msra.mxu0 0
    %1469 = vmatprep.subr.bf16.mxu0 0
    %1470 = vmatpush1.bf16.msra.mxu0 0
    %1471 = vmatprep.subr.bf16.mxu0 0
    %1472 = vmatpush1.bf16.msra.mxu0 0
    %1473 = vmatprep.mubr.bf16.mxu0 0
    %1474 = vmatmul.mubr.bf16.gmra.mrb[0].mxu0 %v627
    %v1475 = vpop.f32.mrb[0].mxu0
    %v1476 = vadd.f32 %v204, %v1475
    %v1477 = vpop.f32.mrb[0].mxu0
    %v1478 = vadd.f32 %v208, %v1477
    %v1479 = vpop.f32.mrb[0].mxu0
    %v1480 = vadd.f32 %v204, %v1479
    %v1481 = vpop.f32.mrb[0].mxu0
    %v1482 = vadd.f32 %v208, %v1481
    %1483 = vmatprep.mubr.bf16.mxu0 0
    %1484 = vmatmul.mubr.bf16.gmra.mrb[0].mxu0 %v630
    %v1485 = vpop.f32.mrb[0].mxu0
    %v1486 = vadd.f32 %v204, %v1485
    %v1487 = vpop.f32.mrb[0].mxu0
    %v1488 = vadd.f32 %v208, %v1487
    %v1489 = vpop.f32.mrb[0].mxu0
    %v1490 = vadd.f32 %v204, %v1489
    %v1491 = vpop.f32.mrb[0].mxu0
    %v1492 = vadd.f32 %v208, %v1491
    %1493 = vmatprep.mubr.bf16.mxu0 0
    %1494 = vmatmul.mubr.bf16.gmra.mrb[0].mxu0 %v633
    %v1495 = vpop.f32.mrb[0].mxu0
    %v1496 = vadd.f32 %v204, %v1495
    %v1497 = vpop.f32.mrb[0].mxu0
    %v1498 = vadd.f32 %v208, %v1497
    %v1499 = vpop.f32.mrb[0].mxu0
    %v1500 = vadd.f32 %v204, %v1499
    %v1501 = vpop.f32.mrb[0].mxu0
    %v1502 = vadd.f32 %v208, %v1501
    %1503 = vmatprep.mubr.bf16.mxu0 0
    %1504 = vmatmul.mubr.bf16.gmra.mrb[0].mxu0 %v636
    %v1505 = vpop.f32.mrb[0].mxu0
    %v1506 = vadd.f32 %v204, %v1505
    %v1507 = vpop.f32.mrb[0].mxu0
    %v1508 = vadd.f32 %v208, %v1507
    %v1509 = vpop.f32.mrb[0].mxu0
    %v1510 = vadd.f32 %v204, %v1509
    %v1511 = vpop.f32.mrb[0].mxu0
    %v1512 = vadd.f32 %v208, %v1511
    %1513 = vmatprep.mubr.bf16.mxu0 0
    %1514 = vmatmul.mubr.bf16.gmra.mrb[0].mxu0 %v639
    %v1515 = vpop.f32.mrb[0].mxu0
    %v1516 = vadd.f32 %v204, %v1515
    %v1517 = vpop.f32.mrb[0].mxu0
    %v1518 = vadd.f32 %v208, %v1517
    %v1519 = vpop.f32.mrb[0].mxu0
    %v1520 = vadd.f32 %v204, %v1519
    %v1521 = vpop.f32.mrb[0].mxu0
    %v1522 = vadd.f32 %v208, %v1521
    %1523 = vmatprep.mubr.bf16.mxu0 0
    %1524 = vmatmul.mubr.bf16.gmra.mrb[0].mxu0 %v642
    %v1525 = vpop.f32.mrb[0].mxu0
    %v1526 = vadd.f32 %v204, %v1525
    %v1527 = vpop.f32.mrb[0].mxu0
    %v1528 = vadd.f32 %v208, %v1527
    %v1529 = vpop.f32.mrb[0].mxu0
    %v1530 = vadd.f32 %v204, %v1529
    %v1531 = vpop.f32.mrb[0].mxu0
    %v1532 = vadd.f32 %v208, %v1531
    %1533 = vmatprep.mubr.bf16.mxu0 0
    %1534 = vmatmul.mubr.bf16.gmra.mrb[0].mxu0 %v645
    %v1535 = vpop.f32.mrb[0].mxu0
    %v1536 = vadd.f32 %v204, %v1535
    %v1537 = vpop.f32.mrb[0].mxu0
    %v1538 = vadd.f32 %v208, %v1537
    %v1539 = vpop.f32.mrb[0].mxu0
    %v1540 = vadd.f32 %v204, %v1539
    %v1541 = vpop.f32.mrb[0].mxu0
    %v1542 = vadd.f32 %v208, %v1541
    %1543 = vmatprep.mubr.bf16.mxu0 0
    %1544 = vmatmul.mubr.bf16.gmra.mrb[0].mxu0 %v648
    %v1545 = vpop.f32.mrb[0].mxu0
    %v1546 = vadd.f32 %v204, %v1545
    %v1547 = vpop.f32.mrb[0].mxu0
    %v1548 = vadd.f32 %v208, %v1547
    %v1549 = vpop.f32.mrb[0].mxu0
    %v1550 = vadd.f32 %v204, %v1549
    %v1551 = vpop.f32.mrb[0].mxu0
    %v1552 = vadd.f32 %v208, %v1551
    %1553 = vdwg.mxu0
    %1554 = vmatprep.subr.bf16.mxu0 %v514
    %1555 = vmatpush1.bf16.msra.mxu0 %v513
    %1556 = vmatprep.subr.bf16.mxu0 %v546
    %1557 = vmatpush1.bf16.msra.mxu0 %v545
    %1558 = vmatprep.subr.bf16.mxu0 0
    %1559 = vmatpush1.bf16.msra.mxu0 0
    %1560 = vmatprep.subr.bf16.mxu0 0
    %1561 = vmatpush1.bf16.msra.mxu0 0
    %1562 = vmatprep.subr.bf16.mxu0 0
    %1563 = vmatpush1.bf16.msra.mxu0 0
    %1564 = vmatprep.subr.bf16.mxu0 0
    %1565 = vmatpush1.bf16.msra.mxu0 0
    %1566 = vmatprep.subr.bf16.mxu0 0
    %1567 = vmatpush1.bf16.msra.mxu0 0
    %1568 = vmatprep.subr.bf16.mxu0 0
    %1569 = vmatpush1.bf16.msra.mxu0 0
    %1570 = vmatprep.subr.bf16.mxu0 0
    %1571 = vmatpush1.bf16.msra.mxu0 0
    %1572 = vmatprep.subr.bf16.mxu0 0
    %1573 = vmatpush1.bf16.msra.mxu0 0
    %1574 = vmatprep.subr.bf16.mxu0 0
    %1575 = vmatpush1.bf16.msra.mxu0 0
    %1576 = vmatprep.subr.bf16.mxu0 0
    %1577 = vmatpush1.bf16.msra.mxu0 0
    %1578 = vmatprep.subr.bf16.mxu0 0
    %1579 = vmatpush1.bf16.msra.mxu0 0
    %1580 = vmatprep.subr.bf16.mxu0 0
    %1581 = vmatpush1.bf16.msra.mxu0 0
    %1582 = vmatprep.subr.bf16.mxu0 0
    %1583 = vmatpush1.bf16.msra.mxu0 0
    %1584 = vmatprep.subr.bf16.mxu0 0
    %1585 = vmatpush1.bf16.msra.mxu0 0
    %1586 = vmatprep.mubr.bf16.mxu0 0
    %1587 = vmatmul.mubr.bf16.gmra.mrb[0].mxu0 %v627
    %v1588 = vpop.f32.mrb[0].mxu0
    %v1589 = vadd.f32 %v212, %v1588
    %v1590 = vpop.f32.mrb[0].mxu0
    %v1591 = vadd.f32 %v216, %v1590
    %v1592 = vpop.f32.mrb[0].mxu0
    %v1593 = vadd.f32 %v212, %v1592
    %v1594 = vpop.f32.mrb[0].mxu0
    %v1595 = vadd.f32 %v216, %v1594
    %1596 = vmatprep.mubr.bf16.mxu0 0
    %1597 = vmatmul.mubr.bf16.gmra.mrb[0].mxu0 %v630
    %v1598 = vpop.f32.mrb[0].mxu0
    %v1599 = vadd.f32 %v212, %v1598
    %v1600 = vpop.f32.mrb[0].mxu0
    %v1601 = vadd.f32 %v216, %v1600
    %v1602 = vpop.f32.mrb[0].mxu0
    %v1603 = vadd.f32 %v212, %v1602
    %v1604 = vpop.f32.mrb[0].mxu0
    %v1605 = vadd.f32 %v216, %v1604
    %1606 = vmatprep.mubr.bf16.mxu0 0
    %1607 = vmatmul.mubr.bf16.gmra.mrb[0].mxu0 %v633
    %v1608 = vpop.f32.mrb[0].mxu0
    %v1609 = vadd.f32 %v212, %v1608
    %v1610 = vpop.f32.mrb[0].mxu0
    %v1611 = vadd.f32 %v216, %v1610
    %v1612 = vpop.f32.mrb[0].mxu0
    %v1613 = vadd.f32 %v212, %v1612
    %v1614 = vpop.f32.mrb[0].mxu0
    %v1615 = vadd.f32 %v216, %v1614
    %1616 = vmatprep.mubr.bf16.mxu0 0
    %1617 = vmatmul.mubr.bf16.gmra.mrb[0].mxu0 %v636
    %v1618 = vpop.f32.mrb[0].mxu0
    %v1619 = vadd.f32 %v212, %v1618
    %v1620 = vpop.f32.mrb[0].mxu0
    %v1621 = vadd.f32 %v216, %v1620
    %v1622 = vpop.f32.mrb[0].mxu0
    %v1623 = vadd.f32 %v212, %v1622
    %v1624 = vpop.f32.mrb[0].mxu0
    %v1625 = vadd.f32 %v216, %v1624
    %1626 = vmatprep.mubr.bf16.mxu0 0
    %1627 = vmatmul.mubr.bf16.gmra.mrb[0].mxu0 %v639
    %v1628 = vpop.f32.mrb[0].mxu0
    %v1629 = vadd.f32 %v212, %v1628
    %v1630 = vpop.f32.mrb[0].mxu0
    %v1631 = vadd.f32 %v216, %v1630
    %v1632 = vpop.f32.mrb[0].mxu0
    %v1633 = vadd.f32 %v212, %v1632
    %v1634 = vpop.f32.mrb[0].mxu0
    %v1635 = vadd.f32 %v216, %v1634
    %1636 = vmatprep.mubr.bf16.mxu0 0
    %1637 = vmatmul.mubr.bf16.gmra.mrb[0].mxu0 %v642
    %v1638 = vpop.f32.mrb[0].mxu0
    %v1639 = vadd.f32 %v212, %v1638
    %v1640 = vpop.f32.mrb[0].mxu0
    %v1641 = vadd.f32 %v216, %v1640
    %v1642 = vpop.f32.mrb[0].mxu0
    %v1643 = vadd.f32 %v212, %v1642
    %v1644 = vpop.f32.mrb[0].mxu0
    %v1645 = vadd.f32 %v216, %v1644
    %1646 = vmatprep.mubr.bf16.mxu0 0
    %1647 = vmatmul.mubr.bf16.gmra.mrb[0].mxu0 %v645
    %v1648 = vpop.f32.mrb[0].mxu0
    %v1649 = vadd.f32 %v212, %v1648
    %v1650 = vpop.f32.mrb[0].mxu0
    %v1651 = vadd.f32 %v216, %v1650
    %v1652 = vpop.f32.mrb[0].mxu0
    %v1653 = vadd.f32 %v212, %v1652
    %v1654 = vpop.f32.mrb[0].mxu0
    %v1655 = vadd.f32 %v216, %v1654
    %1656 = vmatprep.mubr.bf16.mxu0 0
    %1657 = vmatmul.mubr.bf16.gmra.mrb[0].mxu0 %v648
    %v1658 = vpop.f32.mrb[0].mxu0
    %v1659 = vadd.f32 %v212, %v1658
    %v1660 = vpop.f32.mrb[0].mxu0
    %v1661 = vadd.f32 %v216, %v1660
    %v1662 = vpop.f32.mrb[0].mxu0
    %v1663 = vadd.f32 %v212, %v1662
    %v1664 = vpop.f32.mrb[0].mxu0
    %v1665 = vadd.f32 %v216, %v1664
    %1666 = vdwg.mxu0
    %1667 = vmatprep.subr.bf16.mxu0 %v516
    %1668 = vmatpush1.bf16.msra.mxu0 %v515
    %1669 = vmatprep.subr.bf16.mxu0 %v548
    %1670 = vmatpush1.bf16.msra.mxu0 %v547
    %1671 = vmatprep.subr.bf16.mxu0 0
    %1672 = vmatpush1.bf16.msra.mxu0 0
    %1673 = vmatprep.subr.bf16.mxu0 0
    %1674 = vmatpush1.bf16.msra.mxu0 0
    %1675 = vmatprep.subr.bf16.mxu0 0
    %1676 = vmatpush1.bf16.msra.mxu0 0
    %1677 = vmatprep.subr.bf16.mxu0 0
    %1678 = vmatpush1.bf16.msra.mxu0 0
    %1679 = vmatprep.subr.bf16.mxu0 0
    %1680 = vmatpush1.bf16.msra.mxu0 0
    %1681 = vmatprep.subr.bf16.mxu0 0
    %1682 = vmatpush1.bf16.msra.mxu0 0
    %1683 = vmatprep.subr.bf16.mxu0 0
    %1684 = vmatpush1.bf16.msra.mxu0 0
    %1685 = vmatprep.subr.bf16.mxu0 0
    %1686 = vmatpush1.bf16.msra.mxu0 0
    %1687 = vmatprep.subr.bf16.mxu0 0
    %1688 = vmatpush1.bf16.msra.mxu0 0
    %1689 = vmatprep.subr.bf16.mxu0 0
    %1690 = vmatpush1.bf16.msra.mxu0 0
    %1691 = vmatprep.subr.bf16.mxu0 0
    %1692 = vmatpush1.bf16.msra.mxu0 0
    %1693 = vmatprep.subr.bf16.mxu0 0
    %1694 = vmatpush1.bf16.msra.mxu0 0
    %1695 = vmatprep.subr.bf16.mxu0 0
    %1696 = vmatpush1.bf16.msra.mxu0 0
    %1697 = vmatprep.subr.bf16.mxu0 0
    %1698 = vmatpush1.bf16.msra.mxu0 0
    %1699 = vmatprep.mubr.bf16.mxu0 0
    %1700 = vmatmul.mubr.bf16.gmra.mrb[0].mxu0 %v627
    %v1701 = vpop.f32.mrb[0].mxu0
    %v1702 = vadd.f32 %v220, %v1701
    %v1703 = vpop.f32.mrb[0].mxu0
    %v1704 = vadd.f32 %v224, %v1703
    %v1705 = vpop.f32.mrb[0].mxu0
    %v1706 = vadd.f32 %v220, %v1705
    %v1707 = vpop.f32.mrb[0].mxu0
    %v1708 = vadd.f32 %v224, %v1707
    %1709 = vmatprep.mubr.bf16.mxu0 0
    %1710 = vmatmul.mubr.bf16.gmra.mrb[0].mxu0 %v630
    %v1711 = vpop.f32.mrb[0].mxu0
    %v1712 = vadd.f32 %v220, %v1711
    %v1713 = vpop.f32.mrb[0].mxu0
    %v1714 = vadd.f32 %v224, %v1713
    %v1715 = vpop.f32.mrb[0].mxu0
    %v1716 = vadd.f32 %v220, %v1715
    %v1717 = vpop.f32.mrb[0].mxu0
    %v1718 = vadd.f32 %v224, %v1717
    %1719 = vmatprep.mubr.bf16.mxu0 0
    %1720 = vmatmul.mubr.bf16.gmra.mrb[0].mxu0 %v633
    %v1721 = vpop.f32.mrb[0].mxu0
    %v1722 = vadd.f32 %v220, %v1721
    %v1723 = vpop.f32.mrb[0].mxu0
    %v1724 = vadd.f32 %v224, %v1723
    %v1725 = vpop.f32.mrb[0].mxu0
    %v1726 = vadd.f32 %v220, %v1725
    %v1727 = vpop.f32.mrb[0].mxu0
    %v1728 = vadd.f32 %v224, %v1727
    %1729 = vmatprep.mubr.bf16.mxu0 0
    %1730 = vmatmul.mubr.bf16.gmra.mrb[0].mxu0 %v636
    %v1731 = vpop.f32.mrb[0].mxu0
    %v1732 = vadd.f32 %v220, %v1731
    %v1733 = vpop.f32.mrb[0].mxu0
    %v1734 = vadd.f32 %v224, %v1733
    %v1735 = vpop.f32.mrb[0].mxu0
    %v1736 = vadd.f32 %v220, %v1735
    %v1737 = vpop.f32.mrb[0].mxu0
    %v1738 = vadd.f32 %v224, %v1737
    %1739 = vmatprep.mubr.bf16.mxu0 0
    %1740 = vmatmul.mubr.bf16.gmra.mrb[0].mxu0 %v639
    %v1741 = vpop.f32.mrb[0].mxu0
    %v1742 = vadd.f32 %v220, %v1741
    %v1743 = vpop.f32.mrb[0].mxu0
    %v1744 = vadd.f32 %v224, %v1743
    %v1745 = vpop.f32.mrb[0].mxu0
    %v1746 = vadd.f32 %v220, %v1745
    %v1747 = vpop.f32.mrb[0].mxu0
    %v1748 = vadd.f32 %v224, %v1747
    %1749 = vmatprep.mubr.bf16.mxu0 0
    %1750 = vmatmul.mubr.bf16.gmra.mrb[0].mxu0 %v642
    %v1751 = vpop.f32.mrb[0].mxu0
    %v1752 = vadd.f32 %v220, %v1751
    %v1753 = vpop.f32.mrb[0].mxu0
    %v1754 = vadd.f32 %v224, %v1753
    %v1755 = vpop.f32.mrb[0].mxu0
    %v1756 = vadd.f32 %v220, %v1755
    %v1757 = vpop.f32.mrb[0].mxu0
    %v1758 = vadd.f32 %v224, %v1757
    %1759 = vmatprep.mubr.bf16.mxu0 0
    %1760 = vmatmul.mubr.bf16.gmra.mrb[0].mxu0 %v645
    %v1761 = vpop.f32.mrb[0].mxu0
    %v1762 = vadd.f32 %v220, %v1761
    %v1763 = vpop.f32.mrb[0].mxu0
    %v1764 = vadd.f32 %v224, %v1763
    %v1765 = vpop.f32.mrb[0].mxu0
    %v1766 = vadd.f32 %v220, %v1765
    %v1767 = vpop.f32.mrb[0].mxu0
    %v1768 = vadd.f32 %v224, %v1767
    %1769 = vmatprep.mubr.bf16.mxu0 0
    %1770 = vmatmul.mubr.bf16.gmra.mrb[0].mxu0 %v648
    %v1771 = vpop.f32.mrb[0].mxu0
    %v1772 = vadd.f32 %v220, %v1771
    %v1773 = vpop.f32.mrb[0].mxu0
    %v1774 = vadd.f32 %v224, %v1773
    %v1775 = vpop.f32.mrb[0].mxu0
    %v1776 = vadd.f32 %v220, %v1775
    %v1777 = vpop.f32.mrb[0].mxu0
    %v1778 = vadd.f32 %v224, %v1777
    %1779 = vdwg.mxu0
    %1780 = vmatprep.subr.bf16.mxu0 %v518
    %1781 = vmatpush1.bf16.msra.mxu0 %v517
    %1782 = vmatprep.subr.bf16.mxu0 %v550
    %1783 = vmatpush1.bf16.msra.mxu0 %v549
    %1784 = vmatprep.subr.bf16.mxu0 0
    %1785 = vmatpush1.bf16.msra.mxu0 0
    %1786 = vmatprep.subr.bf16.mxu0 0
    %1787 = vmatpush1.bf16.msra.mxu0 0
    %1788 = vmatprep.subr.bf16.mxu0 0
    %1789 = vmatpush1.bf16.msra.mxu0 0
    %1790 = vmatprep.subr.bf16.mxu0 0
    %1791 = vmatpush1.bf16.msra.mxu0 0
    %1792 = vmatprep.subr.bf16.mxu0 0
    %1793 = vmatpush1.bf16.msra.mxu0 0
    %1794 = vmatprep.subr.bf16.mxu0 0
    %1795 = vmatpush1.bf16.msra.mxu0 0
    %1796 = vmatprep.subr.bf16.mxu0 0
    %1797 = vmatpush1.bf16.msra.mxu0 0
    %1798 = vmatprep.subr.bf16.mxu0 0
    %1799 = vmatpush1.bf16.msra.mxu0 0
    %1800 = vmatprep.subr.bf16.mxu0 0
    %1801 = vmatpush1.bf16.msra.mxu0 0
    %1802 = vmatprep.subr.bf16.mxu0 0
    %1803 = vmatpush1.bf16.msra.mxu0 0
    %1804 = vmatprep.subr.bf16.mxu0 0
    %1805 = vmatpush1.bf16.msra.mxu0 0
    %1806 = vmatprep.subr.bf16.mxu0 0
    %1807 = vmatpush1.bf16.msra.mxu0 0
    %1808 = vmatprep.subr.bf16.mxu0 0
    %1809 = vmatpush1.bf16.msra.mxu0 0
    %1810 = vmatprep.subr.bf16.mxu0 0
    %1811 = vmatpush1.bf16.msra.mxu0 0
    %1812 = vmatprep.mubr.bf16.mxu0 0
    %1813 = vmatmul.mubr.bf16.gmra.mrb[0].mxu0 %v627
    %v1814 = vpop.f32.mrb[0].mxu0
    %v1815 = vadd.f32 %v228, %v1814
    %v1816 = vpop.f32.mrb[0].mxu0
    %v1817 = vadd.f32 %v232, %v1816
    %v1818 = vpop.f32.mrb[0].mxu0
    %v1819 = vadd.f32 %v228, %v1818
    %v1820 = vpop.f32.mrb[0].mxu0
    %v1821 = vadd.f32 %v232, %v1820
    %1822 = vmatprep.mubr.bf16.mxu0 0
    %1823 = vmatmul.mubr.bf16.gmra.mrb[0].mxu0 %v630
    %v1824 = vpop.f32.mrb[0].mxu0
    %v1825 = vadd.f32 %v228, %v1824
    %v1826 = vpop.f32.mrb[0].mxu0
    %v1827 = vadd.f32 %v232, %v1826
    %v1828 = vpop.f32.mrb[0].mxu0
    %v1829 = vadd.f32 %v228, %v1828
    %v1830 = vpop.f32.mrb[0].mxu0
    %v1831 = vadd.f32 %v232, %v1830
    %1832 = vmatprep.mubr.bf16.mxu0 0
    %1833 = vmatmul.mubr.bf16.gmra.mrb[0].mxu0 %v633
    %v1834 = vpop.f32.mrb[0].mxu0
    %v1835 = vadd.f32 %v228, %v1834
    %v1836 = vpop.f32.mrb[0].mxu0
    %v1837 = vadd.f32 %v232, %v1836
    %v1838 = vpop.f32.mrb[0].mxu0
    %v1839 = vadd.f32 %v228, %v1838
    %v1840 = vpop.f32.mrb[0].mxu0
    %v1841 = vadd.f32 %v232, %v1840
    %1842 = vmatprep.mubr.bf16.mxu0 0
    %1843 = vmatmul.mubr.bf16.gmra.mrb[0].mxu0 %v636
    %v1844 = vpop.f32.mrb[0].mxu0
    %v1845 = vadd.f32 %v228, %v1844
    %v1846 = vpop.f32.mrb[0].mxu0
    %v1847 = vadd.f32 %v232, %v1846
    %v1848 = vpop.f32.mrb[0].mxu0
    %v1849 = vadd.f32 %v228, %v1848
    %v1850 = vpop.f32.mrb[0].mxu0
    %v1851 = vadd.f32 %v232, %v1850
    %1852 = vmatprep.mubr.bf16.mxu0 0
    %1853 = vmatmul.mubr.bf16.gmra.mrb[0].mxu0 %v639
    %v1854 = vpop.f32.mrb[0].mxu0
    %v1855 = vadd.f32 %v228, %v1854
    %v1856 = vpop.f32.mrb[0].mxu0
    %v1857 = vadd.f32 %v232, %v1856
    %v1858 = vpop.f32.mrb[0].mxu0
    %v1859 = vadd.f32 %v228, %v1858
    %v1860 = vpop.f32.mrb[0].mxu0
    %v1861 = vadd.f32 %v232, %v1860
    %1862 = vmatprep.mubr.bf16.mxu0 0
    %1863 = vmatmul.mubr.bf16.gmra.mrb[0].mxu0 %v642
    %v1864 = vpop.f32.mrb[0].mxu0
    %v1865 = vadd.f32 %v228, %v1864
    %v1866 = vpop.f32.mrb[0].mxu0
    %v1867 = vadd.f32 %v232, %v1866
    %v1868 = vpop.f32.mrb[0].mxu0
    %v1869 = vadd.f32 %v228, %v1868
    %v1870 = vpop.f32.mrb[0].mxu0
    %v1871 = vadd.f32 %v232, %v1870
    %1872 = vmatprep.mubr.bf16.mxu0 0
    %1873 = vmatmul.mubr.bf16.gmra.mrb[0].mxu0 %v645
    %v1874 = vpop.f32.mrb[0].mxu0
    %v1875 = vadd.f32 %v228, %v1874
    %v1876 = vpop.f32.mrb[0].mxu0
    %v1877 = vadd.f32 %v232, %v1876
    %v1878 = vpop.f32.mrb[0].mxu0
    %v1879 = vadd.f32 %v228, %v1878
    %v1880 = vpop.f32.mrb[0].mxu0
    %v1881 = vadd.f32 %v232, %v1880
    %1882 = vmatprep.mubr.bf16.mxu0 0
    %1883 = vmatmul.mubr.bf16.gmra.mrb[0].mxu0 %v648
    %v1884 = vpop.f32.mrb[0].mxu0
    %v1885 = vadd.f32 %v228, %v1884
    %v1886 = vpop.f32.mrb[0].mxu0
    %v1887 = vadd.f32 %v232, %v1886
    %v1888 = vpop.f32.mrb[0].mxu0
    %v1889 = vadd.f32 %v228, %v1888
    %v1890 = vpop.f32.mrb[0].mxu0
    %v1891 = vadd.f32 %v232, %v1890
    %1892 = vdwg.mxu0
    %1893 = vmatprep.subr.bf16.mxu0 %v520
    %1894 = vmatpush1.bf16.msra.mxu0 %v519
    %1895 = vmatprep.subr.bf16.mxu0 %v552
    %1896 = vmatpush1.bf16.msra.mxu0 %v551
    %1897 = vmatprep.subr.bf16.mxu0 0
    %1898 = vmatpush1.bf16.msra.mxu0 0
    %1899 = vmatprep.subr.bf16.mxu0 0
    %1900 = vmatpush1.bf16.msra.mxu0 0
    %1901 = vmatprep.subr.bf16.mxu0 0
    %1902 = vmatpush1.bf16.msra.mxu0 0
    %1903 = vmatprep.subr.bf16.mxu0 0
    %1904 = vmatpush1.bf16.msra.mxu0 0
    %1905 = vmatprep.subr.bf16.mxu0 0
    %1906 = vmatpush1.bf16.msra.mxu0 0
    %1907 = vmatprep.subr.bf16.mxu0 0
    %1908 = vmatpush1.bf16.msra.mxu0 0
    %1909 = vmatprep.subr.bf16.mxu0 0
    %1910 = vmatpush1.bf16.msra.mxu0 0
    %1911 = vmatprep.subr.bf16.mxu0 0
    %1912 = vmatpush1.bf16.msra.mxu0 0
    %1913 = vmatprep.subr.bf16.mxu0 0
    %1914 = vmatpush1.bf16.msra.mxu0 0
    %1915 = vmatprep.subr.bf16.mxu0 0
    %1916 = vmatpush1.bf16.msra.mxu0 0
    %1917 = vmatprep.subr.bf16.mxu0 0
    %1918 = vmatpush1.bf16.msra.mxu0 0
    %1919 = vmatprep.subr.bf16.mxu0 0
    %1920 = vmatpush1.bf16.msra.mxu0 0
    %1921 = vmatprep.subr.bf16.mxu0 0
    %1922 = vmatpush1.bf16.msra.mxu0 0
    %1923 = vmatprep.subr.bf16.mxu0 0
    %1924 = vmatpush1.bf16.msra.mxu0 0
    %1925 = vmatprep.mubr.bf16.mxu0 0
    %1926 = vmatmul.mubr.bf16.gmra.mrb[0].mxu0 %v627
    %v1927 = vpop.f32.mrb[0].mxu0
    %v1928 = vadd.f32 %v236, %v1927
    %v1929 = vpop.f32.mrb[0].mxu0
    %v1930 = vadd.f32 %v240, %v1929
    %v1931 = vpop.f32.mrb[0].mxu0
    %v1932 = vadd.f32 %v236, %v1931
    %v1933 = vpop.f32.mrb[0].mxu0
    %v1934 = vadd.f32 %v240, %v1933
    %1935 = vmatprep.mubr.bf16.mxu0 0
    %1936 = vmatmul.mubr.bf16.gmra.mrb[0].mxu0 %v630
    %v1937 = vpop.f32.mrb[0].mxu0
    %v1938 = vadd.f32 %v236, %v1937
    %v1939 = vpop.f32.mrb[0].mxu0
    %v1940 = vadd.f32 %v240, %v1939
    %v1941 = vpop.f32.mrb[0].mxu0
    %v1942 = vadd.f32 %v236, %v1941
    %v1943 = vpop.f32.mrb[0].mxu0
    %v1944 = vadd.f32 %v240, %v1943
    %1945 = vmatprep.mubr.bf16.mxu0 0
    %1946 = vmatmul.mubr.bf16.gmra.mrb[0].mxu0 %v633
    %v1947 = vpop.f32.mrb[0].mxu0
    %v1948 = vadd.f32 %v236, %v1947
    %v1949 = vpop.f32.mrb[0].mxu0
    %v1950 = vadd.f32 %v240, %v1949
    %v1951 = vpop.f32.mrb[0].mxu0
    %v1952 = vadd.f32 %v236, %v1951
    %v1953 = vpop.f32.mrb[0].mxu0
    %v1954 = vadd.f32 %v240, %v1953
    %1955 = vmatprep.mubr.bf16.mxu0 0
    %1956 = vmatmul.mubr.bf16.gmra.mrb[0].mxu0 %v636
    %v1957 = vpop.f32.mrb[0].mxu0
    %v1958 = vadd.f32 %v236, %v1957
    %v1959 = vpop.f32.mrb[0].mxu0
    %v1960 = vadd.f32 %v240, %v1959
    %v1961 = vpop.f32.mrb[0].mxu0
    %v1962 = vadd.f32 %v236, %v1961
    %v1963 = vpop.f32.mrb[0].mxu0
    %v1964 = vadd.f32 %v240, %v1963
    %1965 = vmatprep.mubr.bf16.mxu0 0
    %1966 = vmatmul.mubr.bf16.gmra.mrb[0].mxu0 %v639
    %v1967 = vpop.f32.mrb[0].mxu0
    %v1968 = vadd.f32 %v236, %v1967
    %v1969 = vpop.f32.mrb[0].mxu0
    %v1970 = vadd.f32 %v240, %v1969
    %v1971 = vpop.f32.mrb[0].mxu0
    %v1972 = vadd.f32 %v236, %v1971
    %v1973 = vpop.f32.mrb[0].mxu0
    %v1974 = vadd.f32 %v240, %v1973
    %1975 = vmatprep.mubr.bf16.mxu0 0
    %1976 = vmatmul.mubr.bf16.gmra.mrb[0].mxu0 %v642
    %v1977 = vpop.f32.mrb[0].mxu0
    %v1978 = vadd.f32 %v236, %v1977
    %v1979 = vpop.f32.mrb[0].mxu0
    %v1980 = vadd.f32 %v240, %v1979
    %v1981 = vpop.f32.mrb[0].mxu0
    %v1982 = vadd.f32 %v236, %v1981
    %v1983 = vpop.f32.mrb[0].mxu0
    %v1984 = vadd.f32 %v240, %v1983
    %1985 = vmatprep.mubr.bf16.mxu0 0
    %1986 = vmatmul.mubr.bf16.gmra.mrb[0].mxu0 %v645
    %v1987 = vpop.f32.mrb[0].mxu0
    %v1988 = vadd.f32 %v236, %v1987
    %v1989 = vpop.f32.mrb[0].mxu0
    %v1990 = vadd.f32 %v240, %v1989
    %v1991 = vpop.f32.mrb[0].mxu0
    %v1992 = vadd.f32 %v236, %v1991
    %v1993 = vpop.f32.mrb[0].mxu0
    %v1994 = vadd.f32 %v240, %v1993
    %1995 = vmatprep.mubr.bf16.mxu0 0
    %1996 = vmatmul.mubr.bf16.gmra.mrb[0].mxu0 %v648
    %v1997 = vpop.f32.mrb[0].mxu0
    %v1998 = vadd.f32 %v236, %v1997
    %v1999 = vpop.f32.mrb[0].mxu0
    %v2000 = vadd.f32 %v240, %v1999
    %v2001 = vpop.f32.mrb[0].mxu0
    %v2002 = vadd.f32 %v236, %v2001
    %v2003 = vpop.f32.mrb[0].mxu0
    %v2004 = vadd.f32 %v240, %v2003
    %2005 = vdwg.mxu0
    %2006 = vmatprep.subr.bf16.mxu0 %v522
    %2007 = vmatpush1.bf16.msra.mxu0 %v521
    %2008 = vmatprep.subr.bf16.mxu0 %v554
    %2009 = vmatpush1.bf16.msra.mxu0 %v553
    %2010 = vmatprep.subr.bf16.mxu0 0
    %2011 = vmatpush1.bf16.msra.mxu0 0
    %2012 = vmatprep.subr.bf16.mxu0 0
    %2013 = vmatpush1.bf16.msra.mxu0 0
    %2014 = vmatprep.subr.bf16.mxu0 0
    %2015 = vmatpush1.bf16.msra.mxu0 0
    %2016 = vmatprep.subr.bf16.mxu0 0
    %2017 = vmatpush1.bf16.msra.mxu0 0
    %2018 = vmatprep.subr.bf16.mxu0 0
    %2019 = vmatpush1.bf16.msra.mxu0 0
    %2020 = vmatprep.subr.bf16.mxu0 0
    %2021 = vmatpush1.bf16.msra.mxu0 0
    %2022 = vmatprep.subr.bf16.mxu0 0
    %2023 = vmatpush1.bf16.msra.mxu0 0
    %2024 = vmatprep.subr.bf16.mxu0 0
    %2025 = vmatpush1.bf16.msra.mxu0 0
    %2026 = vmatprep.subr.bf16.mxu0 0
    %2027 = vmatpush1.bf16.msra.mxu0 0
    %2028 = vmatprep.subr.bf16.mxu0 0
    %2029 = vmatpush1.bf16.msra.mxu0 0
    %2030 = vmatprep.subr.bf16.mxu0 0
    %2031 = vmatpush1.bf16.msra.mxu0 0
    %2032 = vmatprep.subr.bf16.mxu0 0
    %2033 = vmatpush1.bf16.msra.mxu0 0
    %2034 = vmatprep.subr.bf16.mxu0 0
    %2035 = vmatpush1.bf16.msra.mxu0 0
    %2036 = vmatprep.subr.bf16.mxu0 0
    %2037 = vmatpush1.bf16.msra.mxu0 0
    %2038 = vmatprep.mubr.bf16.mxu0 0
    %2039 = vmatmul.mubr.bf16.gmra.mrb[0].mxu0 %v627
    %v2040 = vpop.f32.mrb[0].mxu0
    %v2041 = vadd.f32 %v244, %v2040
    %v2042 = vpop.f32.mrb[0].mxu0
    %v2043 = vadd.f32 %v248, %v2042
    %v2044 = vpop.f32.mrb[0].mxu0
    %v2045 = vadd.f32 %v244, %v2044
    %v2046 = vpop.f32.mrb[0].mxu0
    %v2047 = vadd.f32 %v248, %v2046
    %2048 = vmatprep.mubr.bf16.mxu0 0
    %2049 = vmatmul.mubr.bf16.gmra.mrb[0].mxu0 %v630
    %v2050 = vpop.f32.mrb[0].mxu0
    %v2051 = vadd.f32 %v244, %v2050
    %v2052 = vpop.f32.mrb[0].mxu0
    %v2053 = vadd.f32 %v248, %v2052
    %v2054 = vpop.f32.mrb[0].mxu0
    %v2055 = vadd.f32 %v244, %v2054
    %v2056 = vpop.f32.mrb[0].mxu0
    %v2057 = vadd.f32 %v248, %v2056
    %2058 = vmatprep.mubr.bf16.mxu0 0
    %2059 = vmatmul.mubr.bf16.gmra.mrb[0].mxu0 %v633
    %v2060 = vpop.f32.mrb[0].mxu0
    %v2061 = vadd.f32 %v244, %v2060
    %v2062 = vpop.f32.mrb[0].mxu0
    %v2063 = vadd.f32 %v248, %v2062
    %v2064 = vpop.f32.mrb[0].mxu0
    %v2065 = vadd.f32 %v244, %v2064
    %v2066 = vpop.f32.mrb[0].mxu0
    %v2067 = vadd.f32 %v248, %v2066
    %2068 = vmatprep.mubr.bf16.mxu0 0
    %2069 = vmatmul.mubr.bf16.gmra.mrb[0].mxu0 %v636
    %v2070 = vpop.f32.mrb[0].mxu0
    %v2071 = vadd.f32 %v244, %v2070
    %v2072 = vpop.f32.mrb[0].mxu0
    %v2073 = vadd.f32 %v248, %v2072
    %v2074 = vpop.f32.mrb[0].mxu0
    %v2075 = vadd.f32 %v244, %v2074
    %v2076 = vpop.f32.mrb[0].mxu0
    %v2077 = vadd.f32 %v248, %v2076
    %2078 = vmatprep.mubr.bf16.mxu0 0
    %2079 = vmatmul.mubr.bf16.gmra.mrb[0].mxu0 %v639
    %v2080 = vpop.f32.mrb[0].mxu0
    %v2081 = vadd.f32 %v244, %v2080
    %v2082 = vpop.f32.mrb[0].mxu0
    %v2083 = vadd.f32 %v248, %v2082
    %v2084 = vpop.f32.mrb[0].mxu0
    %v2085 = vadd.f32 %v244, %v2084
    %v2086 = vpop.f32.mrb[0].mxu0
    %v2087 = vadd.f32 %v248, %v2086
    %2088 = vmatprep.mubr.bf16.mxu0 0
    %2089 = vmatmul.mubr.bf16.gmra.mrb[0].mxu0 %v642
    %v2090 = vpop.f32.mrb[0].mxu0
    %v2091 = vadd.f32 %v244, %v2090
    %v2092 = vpop.f32.mrb[0].mxu0
    %v2093 = vadd.f32 %v248, %v2092
    %v2094 = vpop.f32.mrb[0].mxu0
    %v2095 = vadd.f32 %v244, %v2094
    %v2096 = vpop.f32.mrb[0].mxu0
    %v2097 = vadd.f32 %v248, %v2096
    %2098 = vmatprep.mubr.bf16.mxu0 0
    %2099 = vmatmul.mubr.bf16.gmra.mrb[0].mxu0 %v645
    %v2100 = vpop.f32.mrb[0].mxu0
    %v2101 = vadd.f32 %v244, %v2100
    %v2102 = vpop.f32.mrb[0].mxu0
    %v2103 = vadd.f32 %v248, %v2102
    %v2104 = vpop.f32.mrb[0].mxu0
    %v2105 = vadd.f32 %v244, %v2104
    %v2106 = vpop.f32.mrb[0].mxu0
    %v2107 = vadd.f32 %v248, %v2106
    %2108 = vmatprep.mubr.bf16.mxu0 0
    %2109 = vmatmul.mubr.bf16.gmra.mrb[0].mxu0 %v648
    %v2110 = vpop.f32.mrb[0].mxu0
    %v2111 = vadd.f32 %v244, %v2110
    %v2112 = vpop.f32.mrb[0].mxu0
    %v2113 = vadd.f32 %v248, %v2112
    %v2114 = vpop.f32.mrb[0].mxu0
    %v2115 = vadd.f32 %v244, %v2114
    %v2116 = vpop.f32.mrb[0].mxu0
    %v2117 = vadd.f32 %v248, %v2116
    %2118 = vdwg.mxu0
    %2119 = vmatprep.subr.bf16.mxu0 %v524
    %2120 = vmatpush1.bf16.msra.mxu0 %v523
    %2121 = vmatprep.subr.bf16.mxu0 %v556
    %2122 = vmatpush1.bf16.msra.mxu0 %v555
    %2123 = vmatprep.subr.bf16.mxu0 0
    %2124 = vmatpush1.bf16.msra.mxu0 0
    %2125 = vmatprep.subr.bf16.mxu0 0
    %2126 = vmatpush1.bf16.msra.mxu0 0
    %2127 = vmatprep.subr.bf16.mxu0 0
    %2128 = vmatpush1.bf16.msra.mxu0 0
    %2129 = vmatprep.subr.bf16.mxu0 0
    %2130 = vmatpush1.bf16.msra.mxu0 0
    %2131 = vmatprep.subr.bf16.mxu0 0
    %2132 = vmatpush1.bf16.msra.mxu0 0
    %2133 = vmatprep.subr.bf16.mxu0 0
    %2134 = vmatpush1.bf16.msra.mxu0 0
    %2135 = vmatprep.subr.bf16.mxu0 0
    %2136 = vmatpush1.bf16.msra.mxu0 0
    %2137 = vmatprep.subr.bf16.mxu0 0
    %2138 = vmatpush1.bf16.msra.mxu0 0
    %2139 = vmatprep.subr.bf16.mxu0 0
    %2140 = vmatpush1.bf16.msra.mxu0 0
    %2141 = vmatprep.subr.bf16.mxu0 0
    %2142 = vmatpush1.bf16.msra.mxu0 0
    %2143 = vmatprep.subr.bf16.mxu0 0
    %2144 = vmatpush1.bf16.msra.mxu0 0
    %2145 = vmatprep.subr.bf16.mxu0 0
    %2146 = vmatpush1.bf16.msra.mxu0 0
    %2147 = vmatprep.subr.bf16.mxu0 0
    %2148 = vmatpush1.bf16.msra.mxu0 0
    %2149 = vmatprep.subr.bf16.mxu0 0
    %2150 = vmatpush1.bf16.msra.mxu0 0
    %2151 = vmatprep.mubr.bf16.mxu0 0
    %2152 = vmatmul.mubr.bf16.gmra.mrb[0].mxu0 %v627
    %v2153 = vpop.f32.mrb[0].mxu0
    %v2154 = vadd.f32 %v252, %v2153
    %v2155 = vpop.f32.mrb[0].mxu0
    %v2156 = vadd.f32 %v256, %v2155
    %v2157 = vpop.f32.mrb[0].mxu0
    %v2158 = vadd.f32 %v252, %v2157
    %v2159 = vpop.f32.mrb[0].mxu0
    %v2160 = vadd.f32 %v256, %v2159
    %2161 = vmatprep.mubr.bf16.mxu0 0
    %2162 = vmatmul.mubr.bf16.gmra.mrb[0].mxu0 %v630
    %v2163 = vpop.f32.mrb[0].mxu0
    %v2164 = vadd.f32 %v252, %v2163
    %v2165 = vpop.f32.mrb[0].mxu0
    %v2166 = vadd.f32 %v256, %v2165
    %v2167 = vpop.f32.mrb[0].mxu0
    %v2168 = vadd.f32 %v252, %v2167
    %v2169 = vpop.f32.mrb[0].mxu0
    %v2170 = vadd.f32 %v256, %v2169
    %2171 = vmatprep.mubr.bf16.mxu0 0
    %2172 = vmatmul.mubr.bf16.gmra.mrb[0].mxu0 %v633
    %v2173 = vpop.f32.mrb[0].mxu0
    %v2174 = vadd.f32 %v252, %v2173
    %v2175 = vpop.f32.mrb[0].mxu0
    %v2176 = vadd.f32 %v256, %v2175
    %v2177 = vpop.f32.mrb[0].mxu0
    %v2178 = vadd.f32 %v252, %v2177
    %v2179 = vpop.f32.mrb[0].mxu0
    %v2180 = vadd.f32 %v256, %v2179
    %2181 = vmatprep.mubr.bf16.mxu0 0
    %2182 = vmatmul.mubr.bf16.gmra.mrb[0].mxu0 %v636
    %v2183 = vpop.f32.mrb[0].mxu0
    %v2184 = vadd.f32 %v252, %v2183
    %v2185 = vpop.f32.mrb[0].mxu0
    %v2186 = vadd.f32 %v256, %v2185
    %v2187 = vpop.f32.mrb[0].mxu0
    %v2188 = vadd.f32 %v252, %v2187
    %v2189 = vpop.f32.mrb[0].mxu0
    %v2190 = vadd.f32 %v256, %v2189
    %2191 = vmatprep.mubr.bf16.mxu0 0
    %2192 = vmatmul.mubr.bf16.gmra.mrb[0].mxu0 %v639
    %v2193 = vpop.f32.mrb[0].mxu0
    %v2194 = vadd.f32 %v252, %v2193
    %v2195 = vpop.f32.mrb[0].mxu0
    %v2196 = vadd.f32 %v256, %v2195
    %v2197 = vpop.f32.mrb[0].mxu0
    %v2198 = vadd.f32 %v252, %v2197
    %v2199 = vpop.f32.mrb[0].mxu0
    %v2200 = vadd.f32 %v256, %v2199
    %2201 = vmatprep.mubr.bf16.mxu0 0
    %2202 = vmatmul.mubr.bf16.gmra.mrb[0].mxu0 %v642
    %v2203 = vpop.f32.mrb[0].mxu0
    %v2204 = vadd.f32 %v252, %v2203
    %v2205 = vpop.f32.mrb[0].mxu0
    %v2206 = vadd.f32 %v256, %v2205
    %v2207 = vpop.f32.mrb[0].mxu0
    %v2208 = vadd.f32 %v252, %v2207
    %v2209 = vpop.f32.mrb[0].mxu0
    %v2210 = vadd.f32 %v256, %v2209
    %2211 = vmatprep.mubr.bf16.mxu0 0
    %2212 = vmatmul.mubr.bf16.gmra.mrb[0].mxu0 %v645
    %v2213 = vpop.f32.mrb[0].mxu0
    %v2214 = vadd.f32 %v252, %v2213
    %v2215 = vpop.f32.mrb[0].mxu0
    %v2216 = vadd.f32 %v256, %v2215
    %v2217 = vpop.f32.mrb[0].mxu0
    %v2218 = vadd.f32 %v252, %v2217
    %v2219 = vpop.f32.mrb[0].mxu0
    %v2220 = vadd.f32 %v256, %v2219
    %2221 = vmatprep.mubr.bf16.mxu0 0
    %2222 = vmatmul.mubr.bf16.gmra.mrb[0].mxu0 %v648
    %v2223 = vpop.f32.mrb[0].mxu0
    %v2224 = vadd.f32 %v252, %v2223
    %v2225 = vpop.f32.mrb[0].mxu0
    %v2226 = vadd.f32 %v256, %v2225
    %v2227 = vpop.f32.mrb[0].mxu0
    %v2228 = vadd.f32 %v252, %v2227
    %v2229 = vpop.f32.mrb[0].mxu0
    %v2230 = vadd.f32 %v256, %v2229
    %2231 = vdwg.mxu0
    %2232 = vmatprep.subr.bf16.mxu0 %v526
    %2233 = vmatpush1.bf16.msra.mxu0 %v525
    %2234 = vmatprep.subr.bf16.mxu0 %v558
    %2235 = vmatpush1.bf16.msra.mxu0 %v557
    %2236 = vmatprep.subr.bf16.mxu0 0
    %2237 = vmatpush1.bf16.msra.mxu0 0
    %2238 = vmatprep.subr.bf16.mxu0 0
    %2239 = vmatpush1.bf16.msra.mxu0 0
    %2240 = vmatprep.subr.bf16.mxu0 0
    %2241 = vmatpush1.bf16.msra.mxu0 0
    %2242 = vmatprep.subr.bf16.mxu0 0
    %2243 = vmatpush1.bf16.msra.mxu0 0
    %2244 = vmatprep.subr.bf16.mxu0 0
    %2245 = vmatpush1.bf16.msra.mxu0 0
    %2246 = vmatprep.subr.bf16.mxu0 0
    %2247 = vmatpush1.bf16.msra.mxu0 0
    %2248 = vmatprep.subr.bf16.mxu0 0
    %2249 = vmatpush1.bf16.msra.mxu0 0
    %2250 = vmatprep.subr.bf16.mxu0 0
    %2251 = vmatpush1.bf16.msra.mxu0 0
    %2252 = vmatprep.subr.bf16.mxu0 0
    %2253 = vmatpush1.bf16.msra.mxu0 0
    %2254 = vmatprep.subr.bf16.mxu0 0
    %2255 = vmatpush1.bf16.msra.mxu0 0
    %2256 = vmatprep.subr.bf16.mxu0 0
    %2257 = vmatpush1.bf16.msra.mxu0 0
    %2258 = vmatprep.subr.bf16.mxu0 0
    %2259 = vmatpush1.bf16.msra.mxu0 0
    %2260 = vmatprep.subr.bf16.mxu0 0
    %2261 = vmatpush1.bf16.msra.mxu0 0
    %2262 = vmatprep.subr.bf16.mxu0 0
    %2263 = vmatpush1.bf16.msra.mxu0 0
    %2264 = vmatprep.mubr.bf16.mxu0 0
    %2265 = vmatmul.mubr.bf16.gmra.mrb[0].mxu0 %v627
    %v2266 = vpop.f32.mrb[0].mxu0
    %v2267 = vadd.f32 %v260, %v2266
    %v2268 = vpop.f32.mrb[0].mxu0
    %v2269 = vadd.f32 %v264, %v2268
    %v2270 = vpop.f32.mrb[0].mxu0
    %v2271 = vadd.f32 %v260, %v2270
    %v2272 = vpop.f32.mrb[0].mxu0
    %v2273 = vadd.f32 %v264, %v2272
    %2274 = vmatprep.mubr.bf16.mxu0 0
    %2275 = vmatmul.mubr.bf16.gmra.mrb[0].mxu0 %v630
    %v2276 = vpop.f32.mrb[0].mxu0
    %v2277 = vadd.f32 %v260, %v2276
    %v2278 = vpop.f32.mrb[0].mxu0
    %v2279 = vadd.f32 %v264, %v2278
    %v2280 = vpop.f32.mrb[0].mxu0
    %v2281 = vadd.f32 %v260, %v2280
    %v2282 = vpop.f32.mrb[0].mxu0
    %v2283 = vadd.f32 %v264, %v2282
    %2284 = vmatprep.mubr.bf16.mxu0 0
    %2285 = vmatmul.mubr.bf16.gmra.mrb[0].mxu0 %v633
    %v2286 = vpop.f32.mrb[0].mxu0
    %v2287 = vadd.f32 %v260, %v2286
    %v2288 = vpop.f32.mrb[0].mxu0
    %v2289 = vadd.f32 %v264, %v2288
    %v2290 = vpop.f32.mrb[0].mxu0
    %v2291 = vadd.f32 %v260, %v2290
    %v2292 = vpop.f32.mrb[0].mxu0
    %v2293 = vadd.f32 %v264, %v2292
    %2294 = vmatprep.mubr.bf16.mxu0 0
    %2295 = vmatmul.mubr.bf16.gmra.mrb[0].mxu0 %v636
    %v2296 = vpop.f32.mrb[0].mxu0
    %v2297 = vadd.f32 %v260, %v2296
    %v2298 = vpop.f32.mrb[0].mxu0
    %v2299 = vadd.f32 %v264, %v2298
    %v2300 = vpop.f32.mrb[0].mxu0
    %v2301 = vadd.f32 %v260, %v2300
    %v2302 = vpop.f32.mrb[0].mxu0
    %v2303 = vadd.f32 %v264, %v2302
    %2304 = vmatprep.mubr.bf16.mxu0 0
    %2305 = vmatmul.mubr.bf16.gmra.mrb[0].mxu0 %v639
    %v2306 = vpop.f32.mrb[0].mxu0
    %v2307 = vadd.f32 %v260, %v2306
    %v2308 = vpop.f32.mrb[0].mxu0
    %v2309 = vadd.f32 %v264, %v2308
    %v2310 = vpop.f32.mrb[0].mxu0
    %v2311 = vadd.f32 %v260, %v2310
    %v2312 = vpop.f32.mrb[0].mxu0
    %v2313 = vadd.f32 %v264, %v2312
    %2314 = vmatprep.mubr.bf16.mxu0 0
    %2315 = vmatmul.mubr.bf16.gmra.mrb[0].mxu0 %v642
    %v2316 = vpop.f32.mrb[0].mxu0
    %v2317 = vadd.f32 %v260, %v2316
    %v2318 = vpop.f32.mrb[0].mxu0
    %v2319 = vadd.f32 %v264, %v2318
    %v2320 = vpop.f32.mrb[0].mxu0
    %v2321 = vadd.f32 %v260, %v2320
    %v2322 = vpop.f32.mrb[0].mxu0
    %v2323 = vadd.f32 %v264, %v2322
    %2324 = vmatprep.mubr.bf16.mxu0 0
    %2325 = vmatmul.mubr.bf16.gmra.mrb[0].mxu0 %v645
    %v2326 = vpop.f32.mrb[0].mxu0
    %v2327 = vadd.f32 %v260, %v2326
    %v2328 = vpop.f32.mrb[0].mxu0
    %v2329 = vadd.f32 %v264, %v2328
    %v2330 = vpop.f32.mrb[0].mxu0
    %v2331 = vadd.f32 %v260, %v2330
    %v2332 = vpop.f32.mrb[0].mxu0
    %v2333 = vadd.f32 %v264, %v2332
    %2334 = vmatprep.mubr.bf16.mxu0 0
    %2335 = vmatmul.mubr.bf16.gmra.mrb[0].mxu0 %v648
    %v2336 = vpop.f32.mrb[0].mxu0
    %v2337 = vadd.f32 %v260, %v2336
    %v2338 = vpop.f32.mrb[0].mxu0
    %v2339 = vadd.f32 %v264, %v2338
    %v2340 = vpop.f32.mrb[0].mxu0
    %v2341 = vadd.f32 %v260, %v2340
    %v2342 = vpop.f32.mrb[0].mxu0
    %v2343 = vadd.f32 %v264, %v2342
    %2344 = vdwg.mxu0
    %2345 = vmatprep.subr.bf16.mxu0 %v528
    %2346 = vmatpush1.bf16.msra.mxu0 %v527
    %2347 = vmatprep.subr.bf16.mxu0 %v560
    %2348 = vmatpush1.bf16.msra.mxu0 %v559
    %2349 = vmatprep.subr.bf16.mxu0 0
    %2350 = vmatpush1.bf16.msra.mxu0 0
    %2351 = vmatprep.subr.bf16.mxu0 0
    %2352 = vmatpush1.bf16.msra.mxu0 0
    %2353 = vmatprep.subr.bf16.mxu0 0
    %2354 = vmatpush1.bf16.msra.mxu0 0
    %2355 = vmatprep.subr.bf16.mxu0 0
    %2356 = vmatpush1.bf16.msra.mxu0 0
    %2357 = vmatprep.subr.bf16.mxu0 0
    %2358 = vmatpush1.bf16.msra.mxu0 0
    %2359 = vmatprep.subr.bf16.mxu0 0
    %2360 = vmatpush1.bf16.msra.mxu0 0
    %2361 = vmatprep.subr.bf16.mxu0 0
    %2362 = vmatpush1.bf16.msra.mxu0 0
    %2363 = vmatprep.subr.bf16.mxu0 0
    %2364 = vmatpush1.bf16.msra.mxu0 0
    %2365 = vmatprep.subr.bf16.mxu0 0
    %2366 = vmatpush1.bf16.msra.mxu0 0
    %2367 = vmatprep.subr.bf16.mxu0 0
    %2368 = vmatpush1.bf16.msra.mxu0 0
    %2369 = vmatprep.subr.bf16.mxu0 0
    %2370 = vmatpush1.bf16.msra.mxu0 0
    %2371 = vmatprep.subr.bf16.mxu0 0
    %2372 = vmatpush1.bf16.msra.mxu0 0
    %2373 = vmatprep.subr.bf16.mxu0 0
    %2374 = vmatpush1.bf16.msra.mxu0 0
    %2375 = vmatprep.subr.bf16.mxu0 0
    %2376 = vmatpush1.bf16.msra.mxu0 0
    %2377 = vmatprep.mubr.bf16.mxu0 0
    %2378 = vmatmul.mubr.bf16.gmra.mrb[0].mxu0 %v627
    %v2379 = vpop.f32.mrb[0].mxu0
    %v2380 = vadd.f32 %v268, %v2379
    %v2381 = vpop.f32.mrb[0].mxu0
    %v2382 = vadd.f32 %v272, %v2381
    %v2383 = vpop.f32.mrb[0].mxu0
    %v2384 = vadd.f32 %v268, %v2383
    %v2385 = vpop.f32.mrb[0].mxu0
    %v2386 = vadd.f32 %v272, %v2385
    %2387 = vmatprep.mubr.bf16.mxu0 0
    %2388 = vmatmul.mubr.bf16.gmra.mrb[0].mxu0 %v630
    %v2389 = vpop.f32.mrb[0].mxu0
    %v2390 = vadd.f32 %v268, %v2389
    %v2391 = vpop.f32.mrb[0].mxu0
    %v2392 = vadd.f32 %v272, %v2391
    %v2393 = vpop.f32.mrb[0].mxu0
    %v2394 = vadd.f32 %v268, %v2393
    %v2395 = vpop.f32.mrb[0].mxu0
    %v2396 = vadd.f32 %v272, %v2395
    %2397 = vmatprep.mubr.bf16.mxu0 0
    %2398 = vmatmul.mubr.bf16.gmra.mrb[0].mxu0 %v633
    %v2399 = vpop.f32.mrb[0].mxu0
    %v2400 = vadd.f32 %v268, %v2399
    %v2401 = vpop.f32.mrb[0].mxu0
    %v2402 = vadd.f32 %v272, %v2401
    %v2403 = vpop.f32.mrb[0].mxu0
    %v2404 = vadd.f32 %v268, %v2403
    %v2405 = vpop.f32.mrb[0].mxu0
    %v2406 = vadd.f32 %v272, %v2405
    %2407 = vmatprep.mubr.bf16.mxu0 0
    %2408 = vmatmul.mubr.bf16.gmra.mrb[0].mxu0 %v636
    %v2409 = vpop.f32.mrb[0].mxu0
    %v2410 = vadd.f32 %v268, %v2409
    %v2411 = vpop.f32.mrb[0].mxu0
    %v2412 = vadd.f32 %v272, %v2411
    %v2413 = vpop.f32.mrb[0].mxu0
    %v2414 = vadd.f32 %v268, %v2413
    %v2415 = vpop.f32.mrb[0].mxu0
    %v2416 = vadd.f32 %v272, %v2415
    %2417 = vmatprep.mubr.bf16.mxu0 0
    %2418 = vmatmul.mubr.bf16.gmra.mrb[0].mxu0 %v639
    %v2419 = vpop.f32.mrb[0].mxu0
    %v2420 = vadd.f32 %v268, %v2419
    %v2421 = vpop.f32.mrb[0].mxu0
    %v2422 = vadd.f32 %v272, %v2421
    %v2423 = vpop.f32.mrb[0].mxu0
    %v2424 = vadd.f32 %v268, %v2423
    %v2425 = vpop.f32.mrb[0].mxu0
    %v2426 = vadd.f32 %v272, %v2425
    %2427 = vmatprep.mubr.bf16.mxu0 0
    %2428 = vmatmul.mubr.bf16.gmra.mrb[0].mxu0 %v642
    %v2429 = vpop.f32.mrb[0].mxu0
    %v2430 = vadd.f32 %v268, %v2429
    %v2431 = vpop.f32.mrb[0].mxu0
    %v2432 = vadd.f32 %v272, %v2431
    %v2433 = vpop.f32.mrb[0].mxu0
    %v2434 = vadd.f32 %v268, %v2433
    %v2435 = vpop.f32.mrb[0].mxu0
    %v2436 = vadd.f32 %v272, %v2435
    %2437 = vmatprep.mubr.bf16.mxu0 0
    %2438 = vmatmul.mubr.bf16.gmra.mrb[0].mxu0 %v645
    %v2439 = vpop.f32.mrb[0].mxu0
    %v2440 = vadd.f32 %v268, %v2439
    %v2441 = vpop.f32.mrb[0].mxu0
    %v2442 = vadd.f32 %v272, %v2441
    %v2443 = vpop.f32.mrb[0].mxu0
    %v2444 = vadd.f32 %v268, %v2443
    %v2445 = vpop.f32.mrb[0].mxu0
    %v2446 = vadd.f32 %v272, %v2445
    %2447 = vmatprep.mubr.bf16.mxu0 0
    %2448 = vmatmul.mubr.bf16.gmra.mrb[0].mxu0 %v648
    %v2449 = vpop.f32.mrb[0].mxu0
    %v2450 = vadd.f32 %v268, %v2449
    %v2451 = vpop.f32.mrb[0].mxu0
    %v2452 = vadd.f32 %v272, %v2451
    %v2453 = vpop.f32.mrb[0].mxu0
    %v2454 = vadd.f32 %v268, %v2453
    %v2455 = vpop.f32.mrb[0].mxu0
    %v2456 = vadd.f32 %v272, %v2455
    %2457 = vdwg.mxu0
    %v2458 = vmax.f32 %v685, 0.0
    %v2459 = vmax.f32 %v687, 0.0
    %v2460 = vmax.f32 %v798, 0.0
    %v2461 = vmax.f32 %v800, 0.0
    %v2462 = vmax.f32 %v911, 0.0
    %v2463 = vmax.f32 %v913, 0.0
    %v2464 = vmax.f32 %v1024, 0.0
    %v2465 = vmax.f32 %v1026, 0.0
    %v2466 = vmax.f32 %v1137, 0.0
    %v2467 = vmax.f32 %v1139, 0.0
    %v2468 = vmax.f32 %v1250, 0.0
    %v2469 = vmax.f32 %v1252, 0.0
    %v2470 = vmax.f32 %v1363, 0.0
    %v2471 = vmax.f32 %v1365, 0.0
    %v2472 = vmax.f32 %v1476, 0.0
    %v2473 = vmax.f32 %v1478, 0.0
    %v2474 = vmax.f32 %v1589, 0.0
    %v2475 = vmax.f32 %v1591, 0.0
    %v2476 = vmax.f32 %v1702, 0.0
    %v2477 = vmax.f32 %v1704, 0.0
    %v2478 = vmax.f32 %v1815, 0.0
    %v2479 = vmax.f32 %v1817, 0.0
    %v2480 = vmax.f32 %v1928, 0.0
    %v2481 = vmax.f32 %v1930, 0.0
    %v2482 = vmax.f32 %v2041, 0.0
    %v2483 = vmax.f32 %v2043, 0.0
    %v2484 = vmax.f32 %v2154, 0.0
    %v2485 = vmax.f32 %v2156, 0.0
    %v2486 = vmax.f32 %v2267, 0.0
    %v2487 = vmax.f32 %v2269, 0.0
    %v2488 = vmax.f32 %v2380, 0.0
    %v2489 = vmax.f32 %v2382, 0.0
    %v2490 = vmax.f32 %v689, 0.0
    %v2491 = vmax.f32 %v691, 0.0
    %v2492 = vmax.f32 %v802, 0.0
    %v2493 = vmax.f32 %v804, 0.0
    %v2494 = vmax.f32 %v915, 0.0
    %v2495 = vmax.f32 %v917, 0.0
    %v2496 = vmax.f32 %v1028, 0.0
    %v2497 = vmax.f32 %v1030, 0.0
    %v2498 = vmax.f32 %v1141, 0.0
    %v2499 = vmax.f32 %v1143, 0.0
    %v2500 = vmax.f32 %v1254, 0.0
    %v2501 = vmax.f32 %v1256, 0.0
    %v2502 = vmax.f32 %v1367, 0.0
    %v2503 = vmax.f32 %v1369, 0.0
    %v2504 = vmax.f32 %v1480, 0.0
    %v2505 = vmax.f32 %v1482, 0.0
    %v2506 = vmax.f32 %v1593, 0.0
    %v2507 = vmax.f32 %v1595, 0.0
    %v2508 = vmax.f32 %v1706, 0.0
    %v2509 = vmax.f32 %v1708, 0.0
    %v2510 = vmax.f32 %v1819, 0.0
    %v2511 = vmax.f32 %v1821, 0.0
    %v2512 = vmax.f32 %v1932, 0.0
    %v2513 = vmax.f32 %v1934, 0.0
    %v2514 = vmax.f32 %v2045, 0.0
    %v2515 = vmax.f32 %v2047, 0.0
    %v2516 = vmax.f32 %v2158, 0.0
    %v2517 = vmax.f32 %v2160, 0.0
    %v2518 = vmax.f32 %v2271, 0.0
    %v2519 = vmax.f32 %v2273, 0.0
    %v2520 = vmax.f32 %v2384, 0.0
    %v2521 = vmax.f32 %v2386, 0.0
    %v2522 = vmax.f32 %v695, 0.0
    %v2523 = vmax.f32 %v697, 0.0
    %v2524 = vmax.f32 %v808, 0.0
    %v2525 = vmax.f32 %v810, 0.0
    %v2526 = vmax.f32 %v921, 0.0
    %v2527 = vmax.f32 %v923, 0.0
    %v2528 = vmax.f32 %v1034, 0.0
    %v2529 = vmax.f32 %v1036, 0.0
    %v2530 = vmax.f32 %v1147, 0.0
    %v2531 = vmax.f32 %v1149, 0.0
    %v2532 = vmax.f32 %v1260, 0.0
    %v2533 = vmax.f32 %v1262, 0.0
    %v2534 = vmax.f32 %v1373, 0.0
    %v2535 = vmax.f32 %v1375, 0.0
    %v2536 = vmax.f32 %v1486, 0.0
    %v2537 = vmax.f32 %v1488, 0.0
    %v2538 = vmax.f32 %v1599, 0.0
    %v2539 = vmax.f32 %v1601, 0.0
    %v2540 = vmax.f32 %v1712, 0.0
    %v2541 = vmax.f32 %v1714, 0.0
    %v2542 = vmax.f32 %v1825, 0.0
    %v2543 = vmax.f32 %v1827, 0.0
    %v2544 = vmax.f32 %v1938, 0.0
    %v2545 = vmax.f32 %v1940, 0.0
    %v2546 = vmax.f32 %v2051, 0.0
    %v2547 = vmax.f32 %v2053, 0.0
    %v2548 = vmax.f32 %v2164, 0.0
    %v2549 = vmax.f32 %v2166, 0.0
    %v2550 = vmax.f32 %v2277, 0.0
    %v2551 = vmax.f32 %v2279, 0.0
    %v2552 = vmax.f32 %v2390, 0.0
    %v2553 = vmax.f32 %v2392, 0.0
    %v2554 = vmax.f32 %v699, 0.0
    %v2555 = vmax.f32 %v701, 0.0
    %v2556 = vmax.f32 %v812, 0.0
    %v2557 = vmax.f32 %v814, 0.0
    %v2558 = vmax.f32 %v925, 0.0
    %v2559 = vmax.f32 %v927, 0.0
    %v2560 = vmax.f32 %v1038, 0.0
    %v2561 = vmax.f32 %v1040, 0.0
    %v2562 = vmax.f32 %v1151, 0.0
    %v2563 = vmax.f32 %v1153, 0.0
    %v2564 = vmax.f32 %v1264, 0.0
    %v2565 = vmax.f32 %v1266, 0.0
    %v2566 = vmax.f32 %v1377, 0.0
    %v2567 = vmax.f32 %v1379, 0.0
    %v2568 = vmax.f32 %v1490, 0.0
    %v2569 = vmax.f32 %v1492, 0.0
    %v2570 = vmax.f32 %v1603, 0.0
    %v2571 = vmax.f32 %v1605, 0.0
    %v2572 = vmax.f32 %v1716, 0.0
    %v2573 = vmax.f32 %v1718, 0.0
    %v2574 = vmax.f32 %v1829, 0.0
    %v2575 = vmax.f32 %v1831, 0.0
    %v2576 = vmax.f32 %v1942, 0.0
    %v2577 = vmax.f32 %v1944, 0.0
    %v2578 = vmax.f32 %v2055, 0.0
    %v2579 = vmax.f32 %v2057, 0.0
    %v2580 = vmax.f32 %v2168, 0.0
    %v2581 = vmax.f32 %v2170, 0.0
    %v2582 = vmax.f32 %v2281, 0.0
    %v2583 = vmax.f32 %v2283, 0.0
    %v2584 = vmax.f32 %v2394, 0.0
    %v2585 = vmax.f32 %v2396, 0.0
    %v2586 = vmax.f32 %v705, 0.0
    %v2587 = vmax.f32 %v707, 0.0
    %v2588 = vmax.f32 %v818, 0.0
    %v2589 = vmax.f32 %v820, 0.0
    %v2590 = vmax.f32 %v931, 0.0
    %v2591 = vmax.f32 %v933, 0.0
    %v2592 = vmax.f32 %v1044, 0.0
    %v2593 = vmax.f32 %v1046, 0.0
    %v2594 = vmax.f32 %v1157, 0.0
    %v2595 = vmax.f32 %v1159, 0.0
    %v2596 = vmax.f32 %v1270, 0.0
    %v2597 = vmax.f32 %v1272, 0.0
    %v2598 = vmax.f32 %v1383, 0.0
    %v2599 = vmax.f32 %v1385, 0.0
    %v2600 = vmax.f32 %v1496, 0.0
    %v2601 = vmax.f32 %v1498, 0.0
    %v2602 = vmax.f32 %v1609, 0.0
    %v2603 = vmax.f32 %v1611, 0.0
    %v2604 = vmax.f32 %v1722, 0.0
    %v2605 = vmax.f32 %v1724, 0.0
    %v2606 = vmax.f32 %v1835, 0.0
    %v2607 = vmax.f32 %v1837, 0.0
    %v2608 = vmax.f32 %v1948, 0.0
    %v2609 = vmax.f32 %v1950, 0.0
    %v2610 = vmax.f32 %v2061, 0.0
    %v2611 = vmax.f32 %v2063, 0.0
    %v2612 = vmax.f32 %v2174, 0.0
    %v2613 = vmax.f32 %v2176, 0.0
    %v2614 = vmax.f32 %v2287, 0.0
    %v2615 = vmax.f32 %v2289, 0.0
    %v2616 = vmax.f32 %v2400, 0.0
    %v2617 = vmax.f32 %v2402, 0.0
    %v2618 = vmax.f32 %v709, 0.0
    %v2619 = vmax.f32 %v711, 0.0
    %v2620 = vmax.f32 %v822, 0.0
    %v2621 = vmax.f32 %v824, 0.0
    %v2622 = vmax.f32 %v935, 0.0
    %v2623 = vmax.f32 %v937, 0.0
    %v2624 = vmax.f32 %v1048, 0.0
    %v2625 = vmax.f32 %v1050, 0.0
    %v2626 = vmax.f32 %v1161, 0.0
    %v2627 = vmax.f32 %v1163, 0.0
    %v2628 = vmax.f32 %v1274, 0.0
    %v2629 = vmax.f32 %v1276, 0.0
    %v2630 = vmax.f32 %v1387, 0.0
    %v2631 = vmax.f32 %v1389, 0.0
    %v2632 = vmax.f32 %v1500, 0.0
    %v2633 = vmax.f32 %v1502, 0.0
    %v2634 = vmax.f32 %v1613, 0.0
    %v2635 = vmax.f32 %v1615, 0.0
    %v2636 = vmax.f32 %v1726, 0.0
    %v2637 = vmax.f32 %v1728, 0.0
    %v2638 = vmax.f32 %v1839, 0.0
    %v2639 = vmax.f32 %v1841, 0.0
    %v2640 = vmax.f32 %v1952, 0.0
    %v2641 = vmax.f32 %v1954, 0.0
    %v2642 = vmax.f32 %v2065, 0.0
    %v2643 = vmax.f32 %v2067, 0.0
    %v2644 = vmax.f32 %v2178, 0.0
    %v2645 = vmax.f32 %v2180, 0.0
    %v2646 = vmax.f32 %v2291, 0.0
    %v2647 = vmax.f32 %v2293, 0.0
    %v2648 = vmax.f32 %v2404, 0.0
    %v2649 = vmax.f32 %v2406, 0.0
    %v2650 = vmax.f32 %v715, 0.0
    %v2651 = vmax.f32 %v717, 0.0
    %v2652 = vmax.f32 %v828, 0.0
    %v2653 = vmax.f32 %v830, 0.0
    %v2654 = vmax.f32 %v941, 0.0
    %v2655 = vmax.f32 %v943, 0.0
    %v2656 = vmax.f32 %v1054, 0.0
    %v2657 = vmax.f32 %v1056, 0.0
    %v2658 = vmax.f32 %v1167, 0.0
    %v2659 = vmax.f32 %v1169, 0.0
    %v2660 = vmax.f32 %v1280, 0.0
    %v2661 = vmax.f32 %v1282, 0.0
    %v2662 = vmax.f32 %v1393, 0.0
    %v2663 = vmax.f32 %v1395, 0.0
    %v2664 = vmax.f32 %v1506, 0.0
    %v2665 = vmax.f32 %v1508, 0.0
    %v2666 = vmax.f32 %v1619, 0.0
    %v2667 = vmax.f32 %v1621, 0.0
    %v2668 = vmax.f32 %v1732, 0.0
    %v2669 = vmax.f32 %v1734, 0.0
    %v2670 = vmax.f32 %v1845, 0.0
    %v2671 = vmax.f32 %v1847, 0.0
    %v2672 = vmax.f32 %v1958, 0.0
    %v2673 = vmax.f32 %v1960, 0.0
    %v2674 = vmax.f32 %v2071, 0.0
    %v2675 = vmax.f32 %v2073, 0.0
    %v2676 = vmax.f32 %v2184, 0.0
    %v2677 = vmax.f32 %v2186, 0.0
    %v2678 = vmax.f32 %v2297, 0.0
    %v2679 = vmax.f32 %v2299, 0.0
    %v2680 = vmax.f32 %v2410, 0.0
    %v2681 = vmax.f32 %v2412, 0.0
    %v2682 = vmax.f32 %v719, 0.0
    %v2683 = vmax.f32 %v721, 0.0
    %v2684 = vmax.f32 %v832, 0.0
    %v2685 = vmax.f32 %v834, 0.0
    %v2686 = vmax.f32 %v945, 0.0
    %v2687 = vmax.f32 %v947, 0.0
    %v2688 = vmax.f32 %v1058, 0.0
    %v2689 = vmax.f32 %v1060, 0.0
    %v2690 = vmax.f32 %v1171, 0.0
    %v2691 = vmax.f32 %v1173, 0.0
    %v2692 = vmax.f32 %v1284, 0.0
    %v2693 = vmax.f32 %v1286, 0.0
    %v2694 = vmax.f32 %v1397, 0.0
    %v2695 = vmax.f32 %v1399, 0.0
    %v2696 = vmax.f32 %v1510, 0.0
    %v2697 = vmax.f32 %v1512, 0.0
    %v2698 = vmax.f32 %v1623, 0.0
    %v2699 = vmax.f32 %v1625, 0.0
    %v2700 = vmax.f32 %v1736, 0.0
    %v2701 = vmax.f32 %v1738, 0.0
    %v2702 = vmax.f32 %v1849, 0.0
    %v2703 = vmax.f32 %v1851, 0.0
    %v2704 = vmax.f32 %v1962, 0.0
    %v2705 = vmax.f32 %v1964, 0.0
    %v2706 = vmax.f32 %v2075, 0.0
    %v2707 = vmax.f32 %v2077, 0.0
    %v2708 = vmax.f32 %v2188, 0.0
    %v2709 = vmax.f32 %v2190, 0.0
    %v2710 = vmax.f32 %v2301, 0.0
    %v2711 = vmax.f32 %v2303, 0.0
    %v2712 = vmax.f32 %v2414, 0.0
    %v2713 = vmax.f32 %v2416, 0.0
    %v2714 = vmax.f32 %v725, 0.0
    %v2715 = vmax.f32 %v727, 0.0
    %v2716 = vmax.f32 %v838, 0.0
    %v2717 = vmax.f32 %v840, 0.0
    %v2718 = vmax.f32 %v951, 0.0
    %v2719 = vmax.f32 %v953, 0.0
    %v2720 = vmax.f32 %v1064, 0.0
    %v2721 = vmax.f32 %v1066, 0.0
    %v2722 = vmax.f32 %v1177, 0.0
    %v2723 = vmax.f32 %v1179, 0.0
    %v2724 = vmax.f32 %v1290, 0.0
    %v2725 = vmax.f32 %v1292, 0.0
    %v2726 = vmax.f32 %v1403, 0.0
    %v2727 = vmax.f32 %v1405, 0.0
    %v2728 = vmax.f32 %v1516, 0.0
    %v2729 = vmax.f32 %v1518, 0.0
    %v2730 = vmax.f32 %v1629, 0.0
    %v2731 = vmax.f32 %v1631, 0.0
    %v2732 = vmax.f32 %v1742, 0.0
    %v2733 = vmax.f32 %v1744, 0.0
    %v2734 = vmax.f32 %v1855, 0.0
    %v2735 = vmax.f32 %v1857, 0.0
    %v2736 = vmax.f32 %v1968, 0.0
    %v2737 = vmax.f32 %v1970, 0.0
    %v2738 = vmax.f32 %v2081, 0.0
    %v2739 = vmax.f32 %v2083, 0.0
    %v2740 = vmax.f32 %v2194, 0.0
    %v2741 = vmax.f32 %v2196, 0.0
    %v2742 = vmax.f32 %v2307, 0.0
    %v2743 = vmax.f32 %v2309, 0.0
    %v2744 = vmax.f32 %v2420, 0.0
    %v2745 = vmax.f32 %v2422, 0.0
    %v2746 = vmax.f32 %v729, 0.0
    %v2747 = vmax.f32 %v731, 0.0
    %v2748 = vmax.f32 %v842, 0.0
    %v2749 = vmax.f32 %v844, 0.0
    %v2750 = vmax.f32 %v955, 0.0
    %v2751 = vmax.f32 %v957, 0.0
    %v2752 = vmax.f32 %v1068, 0.0
    %v2753 = vmax.f32 %v1070, 0.0
    %v2754 = vmax.f32 %v1181, 0.0
    %v2755 = vmax.f32 %v1183, 0.0
    %v2756 = vmax.f32 %v1294, 0.0
    %v2757 = vmax.f32 %v1296, 0.0
    %v2758 = vmax.f32 %v1407, 0.0
    %v2759 = vmax.f32 %v1409, 0.0
    %v2760 = vmax.f32 %v1520, 0.0
    %v2761 = vmax.f32 %v1522, 0.0
    %v2762 = vmax.f32 %v1633, 0.0
    %v2763 = vmax.f32 %v1635, 0.0
    %v2764 = vmax.f32 %v1746, 0.0
    %v2765 = vmax.f32 %v1748, 0.0
    %v2766 = vmax.f32 %v1859, 0.0
    %v2767 = vmax.f32 %v1861, 0.0
    %v2768 = vmax.f32 %v1972, 0.0
    %v2769 = vmax.f32 %v1974, 0.0
    %v2770 = vmax.f32 %v2085, 0.0
    %v2771 = vmax.f32 %v2087, 0.0
    %v2772 = vmax.f32 %v2198, 0.0
    %v2773 = vmax.f32 %v2200, 0.0
    %v2774 = vmax.f32 %v2311, 0.0
    %v2775 = vmax.f32 %v2313, 0.0
    %v2776 = vmax.f32 %v2424, 0.0
    %v2777 = vmax.f32 %v2426, 0.0
    %v2778 = vmax.f32 %v735, 0.0
    %v2779 = vmax.f32 %v737, 0.0
    %v2780 = vmax.f32 %v848, 0.0
    %v2781 = vmax.f32 %v850, 0.0
    %v2782 = vmax.f32 %v961, 0.0
    %v2783 = vmax.f32 %v963, 0.0
    %v2784 = vmax.f32 %v1074, 0.0
    %v2785 = vmax.f32 %v1076, 0.0
    %v2786 = vmax.f32 %v1187, 0.0
    %v2787 = vmax.f32 %v1189, 0.0
    %v2788 = vmax.f32 %v1300, 0.0
    %v2789 = vmax.f32 %v1302, 0.0
    %v2790 = vmax.f32 %v1413, 0.0
    %v2791 = vmax.f32 %v1415, 0.0
    %v2792 = vmax.f32 %v1526, 0.0
    %v2793 = vmax.f32 %v1528, 0.0
    %v2794 = vmax.f32 %v1639, 0.0
    %v2795 = vmax.f32 %v1641, 0.0
    %v2796 = vmax.f32 %v1752, 0.0
    %v2797 = vmax.f32 %v1754, 0.0
    %v2798 = vmax.f32 %v1865, 0.0
    %v2799 = vmax.f32 %v1867, 0.0
    %v2800 = vmax.f32 %v1978, 0.0
    %v2801 = vmax.f32 %v1980, 0.0
    %v2802 = vmax.f32 %v2091, 0.0
    %v2803 = vmax.f32 %v2093, 0.0
    %v2804 = vmax.f32 %v2204, 0.0
    %v2805 = vmax.f32 %v2206, 0.0
    %v2806 = vmax.f32 %v2317, 0.0
    %v2807 = vmax.f32 %v2319, 0.0
    %v2808 = vmax.f32 %v2430, 0.0
    %v2809 = vmax.f32 %v2432, 0.0
    %v2810 = vmax.f32 %v739, 0.0
    %v2811 = vmax.f32 %v741, 0.0
    %v2812 = vmax.f32 %v852, 0.0
    %v2813 = vmax.f32 %v854, 0.0
    %v2814 = vmax.f32 %v965, 0.0
    %v2815 = vmax.f32 %v967, 0.0
    %v2816 = vmax.f32 %v1078, 0.0
    %v2817 = vmax.f32 %v1080, 0.0
    %v2818 = vmax.f32 %v1191, 0.0
    %v2819 = vmax.f32 %v1193, 0.0
    %v2820 = vmax.f32 %v1304, 0.0
    %v2821 = vmax.f32 %v1306, 0.0
    %v2822 = vmax.f32 %v1417, 0.0
    %v2823 = vmax.f32 %v1419, 0.0
    %v2824 = vmax.f32 %v1530, 0.0
    %v2825 = vmax.f32 %v1532, 0.0
    %v2826 = vmax.f32 %v1643, 0.0
    %v2827 = vmax.f32 %v1645, 0.0
    %v2828 = vmax.f32 %v1756, 0.0
    %v2829 = vmax.f32 %v1758, 0.0
    %v2830 = vmax.f32 %v1869, 0.0
    %v2831 = vmax.f32 %v1871, 0.0
    %v2832 = vmax.f32 %v1982, 0.0
    %v2833 = vmax.f32 %v1984, 0.0
    %v2834 = vmax.f32 %v2095, 0.0
    %v2835 = vmax.f32 %v2097, 0.0
    %v2836 = vmax.f32 %v2208, 0.0
    %v2837 = vmax.f32 %v2210, 0.0
    %v2838 = vmax.f32 %v2321, 0.0
    %v2839 = vmax.f32 %v2323, 0.0
    %v2840 = vmax.f32 %v2434, 0.0
    %v2841 = vmax.f32 %v2436, 0.0
    %v2842 = vmax.f32 %v745, 0.0
    %v2843 = vmax.f32 %v747, 0.0
    %v2844 = vmax.f32 %v858, 0.0
    %v2845 = vmax.f32 %v860, 0.0
    %v2846 = vmax.f32 %v971, 0.0
    %v2847 = vmax.f32 %v973, 0.0
    %v2848 = vmax.f32 %v1084, 0.0
    %v2849 = vmax.f32 %v1086, 0.0
    %v2850 = vmax.f32 %v1197, 0.0
    %v2851 = vmax.f32 %v1199, 0.0
    %v2852 = vmax.f32 %v1310, 0.0
    %v2853 = vmax.f32 %v1312, 0.0
    %v2854 = vmax.f32 %v1423, 0.0
    %v2855 = vmax.f32 %v1425, 0.0
    %v2856 = vmax.f32 %v1536, 0.0
    %v2857 = vmax.f32 %v1538, 0.0
    %v2858 = vmax.f32 %v1649, 0.0
    %v2859 = vmax.f32 %v1651, 0.0
    %v2860 = vmax.f32 %v1762, 0.0
    %v2861 = vmax.f32 %v1764, 0.0
    %v2862 = vmax.f32 %v1875, 0.0
    %v2863 = vmax.f32 %v1877, 0.0
    %v2864 = vmax.f32 %v1988, 0.0
    %v2865 = vmax.f32 %v1990, 0.0
    %v2866 = vmax.f32 %v2101, 0.0
    %v2867 = vmax.f32 %v2103, 0.0
    %v2868 = vmax.f32 %v2214, 0.0
    %v2869 = vmax.f32 %v2216, 0.0
    %v2870 = vmax.f32 %v2327, 0.0
    %v2871 = vmax.f32 %v2329, 0.0
    %v2872 = vmax.f32 %v2440, 0.0
    %v2873 = vmax.f32 %v2442, 0.0
    %v2874 = vmax.f32 %v749, 0.0
    %v2875 = vmax.f32 %v751, 0.0
    %v2876 = vmax.f32 %v862, 0.0
    %v2877 = vmax.f32 %v864, 0.0
    %v2878 = vmax.f32 %v975, 0.0
    %v2879 = vmax.f32 %v977, 0.0
    %v2880 = vmax.f32 %v1088, 0.0
    %v2881 = vmax.f32 %v1090, 0.0
    %v2882 = vmax.f32 %v1201, 0.0
    %v2883 = vmax.f32 %v1203, 0.0
    %v2884 = vmax.f32 %v1314, 0.0
    %v2885 = vmax.f32 %v1316, 0.0
    %v2886 = vmax.f32 %v1427, 0.0
    %v2887 = vmax.f32 %v1429, 0.0
    %v2888 = vmax.f32 %v1540, 0.0
    %v2889 = vmax.f32 %v1542, 0.0
    %v2890 = vmax.f32 %v1653, 0.0
    %v2891 = vmax.f32 %v1655, 0.0
    %v2892 = vmax.f32 %v1766, 0.0
    %v2893 = vmax.f32 %v1768, 0.0
    %v2894 = vmax.f32 %v1879, 0.0
    %v2895 = vmax.f32 %v1881, 0.0
    %v2896 = vmax.f32 %v1992, 0.0
    %v2897 = vmax.f32 %v1994, 0.0
    %v2898 = vmax.f32 %v2105, 0.0
    %v2899 = vmax.f32 %v2107, 0.0
    %v2900 = vmax.f32 %v2218, 0.0
    %v2901 = vmax.f32 %v2220, 0.0
    %v2902 = vmax.f32 %v2331, 0.0
    %v2903 = vmax.f32 %v2333, 0.0
    %v2904 = vmax.f32 %v2444, 0.0
    %v2905 = vmax.f32 %v2446, 0.0
    %v2906 = vmax.f32 %v755, 0.0
    %v2907 = vmax.f32 %v757, 0.0
    %v2908 = vmax.f32 %v868, 0.0
    %v2909 = vmax.f32 %v870, 0.0
    %v2910 = vmax.f32 %v981, 0.0
    %v2911 = vmax.f32 %v983, 0.0
    %v2912 = vmax.f32 %v1094, 0.0
    %v2913 = vmax.f32 %v1096, 0.0
    %v2914 = vmax.f32 %v1207, 0.0
    %v2915 = vmax.f32 %v1209, 0.0
    %v2916 = vmax.f32 %v1320, 0.0
    %v2917 = vmax.f32 %v1322, 0.0
    %v2918 = vmax.f32 %v1433, 0.0
    %v2919 = vmax.f32 %v1435, 0.0
    %v2920 = vmax.f32 %v1546, 0.0
    %v2921 = vmax.f32 %v1548, 0.0
    %v2922 = vmax.f32 %v1659, 0.0
    %v2923 = vmax.f32 %v1661, 0.0
    %v2924 = vmax.f32 %v1772, 0.0
    %v2925 = vmax.f32 %v1774, 0.0
    %v2926 = vmax.f32 %v1885, 0.0
    %v2927 = vmax.f32 %v1887, 0.0
    %v2928 = vmax.f32 %v1998, 0.0
    %v2929 = vmax.f32 %v2000, 0.0
    %v2930 = vmax.f32 %v2111, 0.0
    %v2931 = vmax.f32 %v2113, 0.0
    %v2932 = vmax.f32 %v2224, 0.0
    %v2933 = vmax.f32 %v2226, 0.0
    %v2934 = vmax.f32 %v2337, 0.0
    %v2935 = vmax.f32 %v2339, 0.0
    %v2936 = vmax.f32 %v2450, 0.0
    %v2937 = vmax.f32 %v2452, 0.0
    %v2938 = vmax.f32 %v759, 0.0
    %v2939 = vmax.f32 %v761, 0.0
    %v2940 = vmax.f32 %v872, 0.0
    %v2941 = vmax.f32 %v874, 0.0
    %v2942 = vmax.f32 %v985, 0.0
    %v2943 = vmax.f32 %v987, 0.0
    %v2944 = vmax.f32 %v1098, 0.0
    %v2945 = vmax.f32 %v1100, 0.0
    %v2946 = vmax.f32 %v1211, 0.0
    %v2947 = vmax.f32 %v1213, 0.0
    %v2948 = vmax.f32 %v1324, 0.0
    %v2949 = vmax.f32 %v1326, 0.0
    %v2950 = vmax.f32 %v1437, 0.0
    %v2951 = vmax.f32 %v1439, 0.0
    %v2952 = vmax.f32 %v1550, 0.0
    %v2953 = vmax.f32 %v1552, 0.0
    %v2954 = vmax.f32 %v1663, 0.0
    %v2955 = vmax.f32 %v1665, 0.0
    %v2956 = vmax.f32 %v1776, 0.0
    %v2957 = vmax.f32 %v1778, 0.0
    %v2958 = vmax.f32 %v1889, 0.0
    %v2959 = vmax.f32 %v1891, 0.0
    %v2960 = vmax.f32 %v2002, 0.0
    %v2961 = vmax.f32 %v2004, 0.0
    %v2962 = vmax.f32 %v2115, 0.0
    %v2963 = vmax.f32 %v2117, 0.0
    %v2964 = vmax.f32 %v2228, 0.0
    %v2965 = vmax.f32 %v2230, 0.0
    %v2966 = vmax.f32 %v2341, 0.0
    %v2967 = vmax.f32 %v2343, 0.0
    %v2968 = vmax.f32 %v2454, 0.0
    %v2969 = vmax.f32 %v2456, 0.0
    %v2970 = vpack.c.bf16 %v2490, %v2458
    %v2971 = vpack.c.bf16 %v2491, %v2459
    %v2972 = vpack.c.bf16 %v2492, %v2460
    %v2973 = vpack.c.bf16 %v2493, %v2461
    %v2974 = vpack.c.bf16 %v2494, %v2462
    %v2975 = vpack.c.bf16 %v2495, %v2463
    %v2976 = vpack.c.bf16 %v2496, %v2464
    %v2977 = vpack.c.bf16 %v2497, %v2465
    %v2978 = vpack.c.bf16 %v2498, %v2466
    %v2979 = vpack.c.bf16 %v2499, %v2467
    %v2980 = vpack.c.bf16 %v2500, %v2468
    %v2981 = vpack.c.bf16 %v2501, %v2469
    %v2982 = vpack.c.bf16 %v2502, %v2470
    %v2983 = vpack.c.bf16 %v2503, %v2471
    %v2984 = vpack.c.bf16 %v2504, %v2472
    %v2985 = vpack.c.bf16 %v2505, %v2473
    %v2986 = vpack.c.bf16 %v2506, %v2474
    %v2987 = vpack.c.bf16 %v2507, %v2475
    %v2988 = vpack.c.bf16 %v2508, %v2476
    %v2989 = vpack.c.bf16 %v2509, %v2477
    %v2990 = vpack.c.bf16 %v2510, %v2478
    %v2991 = vpack.c.bf16 %v2511, %v2479
    %v2992 = vpack.c.bf16 %v2512, %v2480
    %v2993 = vpack.c.bf16 %v2513, %v2481
    %v2994 = vpack.c.bf16 %v2514, %v2482
    %v2995 = vpack.c.bf16 %v2515, %v2483
    %v2996 = vpack.c.bf16 %v2516, %v2484
    %v2997 = vpack.c.bf16 %v2517, %v2485
    %v2998 = vpack.c.bf16 %v2518, %v2486
    %v2999 = vpack.c.bf16 %v2519, %v2487
    %v3000 = vpack.c.bf16 %v2520, %v2488
    %v3001 = vpack.c.bf16 %v2521, %v2489
    %v3002 = vpack.c.bf16 %v2554, %v2522
    %v3003 = vpack.c.bf16 %v2555, %v2523
    %v3004 = vpack.c.bf16 %v2556, %v2524
    %v3005 = vpack.c.bf16 %v2557, %v2525
    %v3006 = vpack.c.bf16 %v2558, %v2526
    %v3007 = vpack.c.bf16 %v2559, %v2527
    %v3008 = vpack.c.bf16 %v2560, %v2528
    %v3009 = vpack.c.bf16 %v2561, %v2529
    %v3010 = vpack.c.bf16 %v2562, %v2530
    %v3011 = vpack.c.bf16 %v2563, %v2531
    %v3012 = vpack.c.bf16 %v2564, %v2532
    %v3013 = vpack.c.bf16 %v2565, %v2533
    %v3014 = vpack.c.bf16 %v2566, %v2534
    %v3015 = vpack.c.bf16 %v2567, %v2535
    %v3016 = vpack.c.bf16 %v2568, %v2536
    %v3017 = vpack.c.bf16 %v2569, %v2537
    %v3018 = vpack.c.bf16 %v2570, %v2538
    %v3019 = vpack.c.bf16 %v2571, %v2539
    %v3020 = vpack.c.bf16 %v2572, %v2540
    %v3021 = vpack.c.bf16 %v2573, %v2541
    %v3022 = vpack.c.bf16 %v2574, %v2542
    %v3023 = vpack.c.bf16 %v2575, %v2543
    %v3024 = vpack.c.bf16 %v2576, %v2544
    %v3025 = vpack.c.bf16 %v2577, %v2545
    %v3026 = vpack.c.bf16 %v2578, %v2546
    %v3027 = vpack.c.bf16 %v2579, %v2547
    %v3028 = vpack.c.bf16 %v2580, %v2548
    %v3029 = vpack.c.bf16 %v2581, %v2549
    %v3030 = vpack.c.bf16 %v2582, %v2550
    %v3031 = vpack.c.bf16 %v2583, %v2551
    %v3032 = vpack.c.bf16 %v2584, %v2552
    %v3033 = vpack.c.bf16 %v2585, %v2553
    %v3034 = vpack.c.bf16 %v2618, %v2586
    %v3035 = vpack.c.bf16 %v2619, %v2587
    %v3036 = vpack.c.bf16 %v2620, %v2588
    %v3037 = vpack.c.bf16 %v2621, %v2589
    %v3038 = vpack.c.bf16 %v2622, %v2590
    %v3039 = vpack.c.bf16 %v2623, %v2591
    %v3040 = vpack.c.bf16 %v2624, %v2592
    %v3041 = vpack.c.bf16 %v2625, %v2593
    %v3042 = vpack.c.bf16 %v2626, %v2594
    %v3043 = vpack.c.bf16 %v2627, %v2595
    %v3044 = vpack.c.bf16 %v2628, %v2596
    %v3045 = vpack.c.bf16 %v2629, %v2597
    %v3046 = vpack.c.bf16 %v2630, %v2598
    %v3047 = vpack.c.bf16 %v2631, %v2599
    %v3048 = vpack.c.bf16 %v2632, %v2600
    %v3049 = vpack.c.bf16 %v2633, %v2601
    %v3050 = vpack.c.bf16 %v2634, %v2602
    %v3051 = vpack.c.bf16 %v2635, %v2603
    %v3052 = vpack.c.bf16 %v2636, %v2604
    %v3053 = vpack.c.bf16 %v2637, %v2605
    %v3054 = vpack.c.bf16 %v2638, %v2606
    %v3055 = vpack.c.bf16 %v2639, %v2607
    %v3056 = vpack.c.bf16 %v2640, %v2608
    %v3057 = vpack.c.bf16 %v2641, %v2609
    %v3058 = vpack.c.bf16 %v2642, %v2610
    %v3059 = vpack.c.bf16 %v2643, %v2611
    %v3060 = vpack.c.bf16 %v2644, %v2612
    %v3061 = vpack.c.bf16 %v2645, %v2613
    %v3062 = vpack.c.bf16 %v2646, %v2614
    %v3063 = vpack.c.bf16 %v2647, %v2615
    %v3064 = vpack.c.bf16 %v2648, %v2616
    %v3065 = vpack.c.bf16 %v2649, %v2617
    %v3066 = vpack.c.bf16 %v2682, %v2650
    %v3067 = vpack.c.bf16 %v2683, %v2651
    %v3068 = vpack.c.bf16 %v2684, %v2652
    %v3069 = vpack.c.bf16 %v2685, %v2653
    %v3070 = vpack.c.bf16 %v2686, %v2654
    %v3071 = vpack.c.bf16 %v2687, %v2655
    %v3072 = vpack.c.bf16 %v2688, %v2656
    %v3073 = vpack.c.bf16 %v2689, %v2657
    %v3074 = vpack.c.bf16 %v2690, %v2658
    %v3075 = vpack.c.bf16 %v2691, %v2659
    %v3076 = vpack.c.bf16 %v2692, %v2660
    %v3077 = vpack.c.bf16 %v2693, %v2661
    %v3078 = vpack.c.bf16 %v2694, %v2662
    %v3079 = vpack.c.bf16 %v2695, %v2663
    %v3080 = vpack.c.bf16 %v2696, %v2664
    %v3081 = vpack.c.bf16 %v2697, %v2665
    %v3082 = vpack.c.bf16 %v2698, %v2666
    %v3083 = vpack.c.bf16 %v2699, %v2667
    %v3084 = vpack.c.bf16 %v2700, %v2668
    %v3085 = vpack.c.bf16 %v2701, %v2669
    %v3086 = vpack.c.bf16 %v2702, %v2670
    %v3087 = vpack.c.bf16 %v2703, %v2671
    %v3088 = vpack.c.bf16 %v2704, %v2672
    %v3089 = vpack.c.bf16 %v2705, %v2673
    %v3090 = vpack.c.bf16 %v2706, %v2674
    %v3091 = vpack.c.bf16 %v2707, %v2675
    %v3092 = vpack.c.bf16 %v2708, %v2676
    %v3093 = vpack.c.bf16 %v2709, %v2677
    %v3094 = vpack.c.bf16 %v2710, %v2678
    %v3095 = vpack.c.bf16 %v2711, %v2679
    %v3096 = vpack.c.bf16 %v2712, %v2680
    %v3097 = vpack.c.bf16 %v2713, %v2681
    %v3098 = vpack.c.bf16 %v2746, %v2714
    %v3099 = vpack.c.bf16 %v2747, %v2715
    %v3100 = vpack.c.bf16 %v2748, %v2716
    %v3101 = vpack.c.bf16 %v2749, %v2717
    %v3102 = vpack.c.bf16 %v2750, %v2718
    %v3103 = vpack.c.bf16 %v2751, %v2719
    %v3104 = vpack.c.bf16 %v2752, %v2720
    %v3105 = vpack.c.bf16 %v2753, %v2721
    %v3106 = vpack.c.bf16 %v2754, %v2722
    %v3107 = vpack.c.bf16 %v2755, %v2723
    %v3108 = vpack.c.bf16 %v2756, %v2724
    %v3109 = vpack.c.bf16 %v2757, %v2725
    %v3110 = vpack.c.bf16 %v2758, %v2726
    %v3111 = vpack.c.bf16 %v2759, %v2727
    %v3112 = vpack.c.bf16 %v2760, %v2728
    %v3113 = vpack.c.bf16 %v2761, %v2729
    %v3114 = vpack.c.bf16 %v2762, %v2730
    %v3115 = vpack.c.bf16 %v2763, %v2731
    %v3116 = vpack.c.bf16 %v2764, %v2732
    %v3117 = vpack.c.bf16 %v2765, %v2733
    %v3118 = vpack.c.bf16 %v2766, %v2734
    %v3119 = vpack.c.bf16 %v2767, %v2735
    %v3120 = vpack.c.bf16 %v2768, %v2736
    %v3121 = vpack.c.bf16 %v2769, %v2737
    %v3122 = vpack.c.bf16 %v2770, %v2738
    %v3123 = vpack.c.bf16 %v2771, %v2739
    %v3124 = vpack.c.bf16 %v2772, %v2740
    %v3125 = vpack.c.bf16 %v2773, %v2741
    %v3126 = vpack.c.bf16 %v2774, %v2742
    %v3127 = vpack.c.bf16 %v2775, %v2743
    %v3128 = vpack.c.bf16 %v2776, %v2744
    %v3129 = vpack.c.bf16 %v2777, %v2745
    %v3130 = vpack.c.bf16 %v2810, %v2778
    %v3131 = vpack.c.bf16 %v2811, %v2779
    %v3132 = vpack.c.bf16 %v2812, %v2780
    %v3133 = vpack.c.bf16 %v2813, %v2781
    %v3134 = vpack.c.bf16 %v2814, %v2782
    %v3135 = vpack.c.bf16 %v2815, %v2783
    %v3136 = vpack.c.bf16 %v2816, %v2784
    %v3137 = vpack.c.bf16 %v2817, %v2785
    %v3138 = vpack.c.bf16 %v2818, %v2786
    %v3139 = vpack.c.bf16 %v2819, %v2787
    %v3140 = vpack.c.bf16 %v2820, %v2788
    %v3141 = vpack.c.bf16 %v2821, %v2789
    %v3142 = vpack.c.bf16 %v2822, %v2790
    %v3143 = vpack.c.bf16 %v2823, %v2791
    %v3144 = vpack.c.bf16 %v2824, %v2792
    %v3145 = vpack.c.bf16 %v2825, %v2793
    %v3146 = vpack.c.bf16 %v2826, %v2794
    %v3147 = vpack.c.bf16 %v2827, %v2795
    %v3148 = vpack.c.bf16 %v2828, %v2796
    %v3149 = vpack.c.bf16 %v2829, %v2797
    %v3150 = vpack.c.bf16 %v2830, %v2798
    %v3151 = vpack.c.bf16 %v2831, %v2799
    %v3152 = vpack.c.bf16 %v2832, %v2800
    %v3153 = vpack.c.bf16 %v2833, %v2801
    %v3154 = vpack.c.bf16 %v2834, %v2802
    %v3155 = vpack.c.bf16 %v2835, %v2803
    %v3156 = vpack.c.bf16 %v2836, %v2804
    %v3157 = vpack.c.bf16 %v2837, %v2805
    %v3158 = vpack.c.bf16 %v2838, %v2806
    %v3159 = vpack.c.bf16 %v2839, %v2807
    %v3160 = vpack.c.bf16 %v2840, %v2808
    %v3161 = vpack.c.bf16 %v2841, %v2809
    %v3162 = vpack.c.bf16 %v2874, %v2842
    %v3163 = vpack.c.bf16 %v2875, %v2843
    %v3164 = vpack.c.bf16 %v2876, %v2844
    %v3165 = vpack.c.bf16 %v2877, %v2845
    %v3166 = vpack.c.bf16 %v2878, %v2846
    %v3167 = vpack.c.bf16 %v2879, %v2847
    %v3168 = vpack.c.bf16 %v2880, %v2848
    %v3169 = vpack.c.bf16 %v2881, %v2849
    %v3170 = vpack.c.bf16 %v2882, %v2850
    %v3171 = vpack.c.bf16 %v2883, %v2851
    %v3172 = vpack.c.bf16 %v2884, %v2852
    %v3173 = vpack.c.bf16 %v2885, %v2853
    %v3174 = vpack.c.bf16 %v2886, %v2854
    %v3175 = vpack.c.bf16 %v2887, %v2855
    %v3176 = vpack.c.bf16 %v2888, %v2856
    %v3177 = vpack.c.bf16 %v2889, %v2857
    %v3178 = vpack.c.bf16 %v2890, %v2858
    %v3179 = vpack.c.bf16 %v2891, %v2859
    %v3180 = vpack.c.bf16 %v2892, %v2860
    %v3181 = vpack.c.bf16 %v2893, %v2861
    %v3182 = vpack.c.bf16 %v2894, %v2862
    %v3183 = vpack.c.bf16 %v2895, %v2863
    %v3184 = vpack.c.bf16 %v2896, %v2864
    %v3185 = vpack.c.bf16 %v2897, %v2865
    %v3186 = vpack.c.bf16 %v2898, %v2866
    %v3187 = vpack.c.bf16 %v2899, %v2867
    %v3188 = vpack.c.bf16 %v2900, %v2868
    %v3189 = vpack.c.bf16 %v2901, %v2869
    %v3190 = vpack.c.bf16 %v2902, %v2870
    %v3191 = vpack.c.bf16 %v2903, %v2871
    %v3192 = vpack.c.bf16 %v2904, %v2872
    %v3193 = vpack.c.bf16 %v2905, %v2873
    %v3194 = vpack.c.bf16 %v2938, %v2906
    %v3195 = vpack.c.bf16 %v2939, %v2907
    %v3196 = vpack.c.bf16 %v2940, %v2908
    %v3197 = vpack.c.bf16 %v2941, %v2909
    %v3198 = vpack.c.bf16 %v2942, %v2910
    %v3199 = vpack.c.bf16 %v2943, %v2911
    %v3200 = vpack.c.bf16 %v2944, %v2912
    %v3201 = vpack.c.bf16 %v2945, %v2913
    %v3202 = vpack.c.bf16 %v2946, %v2914
    %v3203 = vpack.c.bf16 %v2947, %v2915
    %v3204 = vpack.c.bf16 %v2948, %v2916
    %v3205 = vpack.c.bf16 %v2949, %v2917
    %v3206 = vpack.c.bf16 %v2950, %v2918
    %v3207 = vpack.c.bf16 %v2951, %v2919
    %v3208 = vpack.c.bf16 %v2952, %v2920
    %v3209 = vpack.c.bf16 %v2953, %v2921
    %v3210 = vpack.c.bf16 %v2954, %v2922
    %v3211 = vpack.c.bf16 %v2955, %v2923
    %v3212 = vpack.c.bf16 %v2956, %v2924
    %v3213 = vpack.c.bf16 %v2957, %v2925
    %v3214 = vpack.c.bf16 %v2958, %v2926
    %v3215 = vpack.c.bf16 %v2959, %v2927
    %v3216 = vpack.c.bf16 %v2960, %v2928
    %v3217 = vpack.c.bf16 %v2961, %v2929
    %v3218 = vpack.c.bf16 %v2962, %v2930
    %v3219 = vpack.c.bf16 %v2963, %v2931
    %v3220 = vpack.c.bf16 %v2964, %v2932
    %v3221 = vpack.c.bf16 %v2965, %v2933
    %v3222 = vpack.c.bf16 %v2966, %v2934
    %v3223 = vpack.c.bf16 %v2967, %v2935
    %v3224 = vpack.c.bf16 %v2968, %v2936
    %v3225 = vpack.c.bf16 %v2969, %v2937
    %v3226 = vld [vmem:[#allocation4] sm:$0xff]
    %v3227 = vld [vmem:[#allocation4 + $0x8] sm:$0xff]
    %v3228 = vld [vmem:[#allocation4 + $0x10] sm:$0xff]
    %v3229 = vld [vmem:[#allocation4 + $0x18] sm:$0xff]
    %v3230 = vld [vmem:[#allocation4 + $0x20] sm:$0xff]
    %v3231 = vld [vmem:[#allocation4 + $0x28] sm:$0xff]
    %v3232 = vld [vmem:[#allocation4 + $0x30] sm:$0xff]
    %v3233 = vld [vmem:[#allocation4 + $0x38] sm:$0xff]
    %v3234 = vld [vmem:[#allocation4 + $0x40] sm:$0xff]
    %v3235 = vld [vmem:[#allocation4 + $0x48] sm:$0xff]
    %v3236 = vld [vmem:[#allocation4 + $0x50] sm:$0xff]
    %v3237 = vld [vmem:[#allocation4 + $0x58] sm:$0xff]
    %v3238 = vld [vmem:[#allocation4 + $0x60] sm:$0xff]
    %v3239 = vld [vmem:[#allocation4 + $0x68] sm:$0xff]
    %v3240 = vld [vmem:[#allocation4 + $0x70] sm:$0xff]
    %v3241 = vld [vmem:[#allocation4 + $0x78] sm:$0xff]
    %v3242 = vld [vmem:[#allocation4 + $0x80] sm:$0xff]
    %v3243 = vld [vmem:[#allocation4 + $0x88] sm:$0xff]
    %v3244 = vld [vmem:[#allocation4 + $0x90] sm:$0xff]
    %v3245 = vld [vmem:[#allocation4 + $0x98] sm:$0xff]
    %v3246 = vld [vmem:[#allocation4 + $0xa0] sm:$0xff]
    %v3247 = vld [vmem:[#allocation4 + $0xa8] sm:$0xff]
    %v3248 = vld [vmem:[#allocation4 + $0xb0] sm:$0xff]
    %v3249 = vld [vmem:[#allocation4 + $0xb8] sm:$0xff]
    %v3250 = vld [vmem:[#allocation4 + $0xc0] sm:$0xff]
    %v3251 = vld [vmem:[#allocation4 + $0xc8] sm:$0xff]
    %v3252 = vld [vmem:[#allocation4 + $0xd0] sm:$0xff]
    %v3253 = vld [vmem:[#allocation4 + $0xd8] sm:$0xff]
    %v3254 = vld [vmem:[#allocation4 + $0xe0] sm:$0xff]
    %v3255 = vld [vmem:[#allocation4 + $0xe8] sm:$0xff]
    %v3256 = vld [vmem:[#allocation4 + $0xf0] sm:$0xff]
    %v3257 = vld [vmem:[#allocation4 + $0xf8] sm:$0xff]
    %v3258 = vld [vmem:[%s4] sm:$0x1]
    %v3260 = vlaneseq
    %v3261 = vshrl.u32 %v3260, 7
    %v3262 = vsub.s32 0, %v3261
    %v3263 = vrot.slane %v3258, %v3262
    %v3297 = vunpack.c.l.b16 %v3226
    %v3298 = vunpack.c.h.b16 %v3226
    %v3299 = vunpack.c.l.b16 %v3227
    %v3300 = vunpack.c.h.b16 %v3227
    %v3301 = vunpack.c.l.b16 %v3228
    %v3302 = vunpack.c.h.b16 %v3228
    %v3303 = vunpack.c.l.b16 %v3229
    %v3304 = vunpack.c.h.b16 %v3229
    %v3305 = vunpack.c.l.b16 %v3230
    %v3306 = vunpack.c.h.b16 %v3230
    %v3307 = vunpack.c.l.b16 %v3231
    %v3308 = vunpack.c.h.b16 %v3231
    %v3309 = vunpack.c.l.b16 %v3232
    %v3310 = vunpack.c.h.b16 %v3232
    %v3311 = vunpack.c.l.b16 %v3233
    %v3312 = vunpack.c.h.b16 %v3233
    %v3313 = vunpack.c.l.b16 %v3234
    %v3314 = vunpack.c.h.b16 %v3234
    %v3315 = vunpack.c.l.b16 %v3235
    %v3316 = vunpack.c.h.b16 %v3235
    %v3317 = vunpack.c.l.b16 %v3236
    %v3318 = vunpack.c.h.b16 %v3236
    %v3319 = vunpack.c.l.b16 %v3237
    %v3320 = vunpack.c.h.b16 %v3237
    %v3321 = vunpack.c.l.b16 %v3238
    %v3322 = vunpack.c.h.b16 %v3238
    %v3323 = vunpack.c.l.b16 %v3239
    %v3324 = vunpack.c.h.b16 %v3239
    %v3325 = vunpack.c.l.b16 %v3240
    %v3326 = vunpack.c.h.b16 %v3240
    %v3327 = vunpack.c.l.b16 %v3241
    %v3328 = vunpack.c.h.b16 %v3241
    %v3329 = vunpack.c.l.b16 %v3242
    %v3330 = vunpack.c.h.b16 %v3242
    %v3331 = vunpack.c.l.b16 %v3243
    %v3332 = vunpack.c.h.b16 %v3243
    %v3333 = vunpack.c.l.b16 %v3244
    %v3334 = vunpack.c.h.b16 %v3244
    %v3335 = vunpack.c.l.b16 %v3245
    %v3336 = vunpack.c.h.b16 %v3245
    %v3337 = vunpack.c.l.b16 %v3246
    %v3338 = vunpack.c.h.b16 %v3246
    %v3339 = vunpack.c.l.b16 %v3247
    %v3340 = vunpack.c.h.b16 %v3247
    %v3341 = vunpack.c.l.b16 %v3248
    %v3342 = vunpack.c.h.b16 %v3248
    %v3343 = vunpack.c.l.b16 %v3249
    %v3344 = vunpack.c.h.b16 %v3249
    %v3345 = vunpack.c.l.b16 %v3250
    %v3346 = vunpack.c.h.b16 %v3250
    %v3347 = vunpack.c.l.b16 %v3251
    %v3348 = vunpack.c.h.b16 %v3251
    %v3349 = vunpack.c.l.b16 %v3252
    %v3350 = vunpack.c.h.b16 %v3252
    %v3351 = vunpack.c.l.b16 %v3253
    %v3352 = vunpack.c.h.b16 %v3253
    %v3353 = vunpack.c.l.b16 %v3254
    %v3354 = vunpack.c.h.b16 %v3254
    %v3355 = vunpack.c.l.b16 %v3255
    %v3356 = vunpack.c.h.b16 %v3255
    %v3357 = vunpack.c.l.b16 %v3256
    %v3358 = vunpack.c.h.b16 %v3256
    %v3359 = vunpack.c.l.b16 %v3257
    %v3360 = vunpack.c.h.b16 %v3257
    %v3361 = vpack.c.b16 %v3329, %v3297
    %v3362 = vpack.c.b16 %v3330, %v3298
    %v3363 = vpack.c.b16 %v3331, %v3299
    %v3364 = vpack.c.b16 %v3332, %v3300
    %v3365 = vpack.c.b16 %v3333, %v3301
    %v3366 = vpack.c.b16 %v3334, %v3302
    %v3367 = vpack.c.b16 %v3335, %v3303
    %v3368 = vpack.c.b16 %v3336, %v3304
    %v3369 = vpack.c.b16 %v3337, %v3305
    %v3370 = vpack.c.b16 %v3338, %v3306
    %v3371 = vpack.c.b16 %v3339, %v3307
    %v3372 = vpack.c.b16 %v3340, %v3308
    %v3373 = vpack.c.b16 %v3341, %v3309
    %v3374 = vpack.c.b16 %v3342, %v3310
    %v3375 = vpack.c.b16 %v3343, %v3311
    %v3376 = vpack.c.b16 %v3344, %v3312
    %v3377 = vpack.c.b16 %v3345, %v3313
    %v3378 = vpack.c.b16 %v3346, %v3314
    %v3379 = vpack.c.b16 %v3347, %v3315
    %v3380 = vpack.c.b16 %v3348, %v3316
    %v3381 = vpack.c.b16 %v3349, %v3317
    %v3382 = vpack.c.b16 %v3350, %v3318
    %v3383 = vpack.c.b16 %v3351, %v3319
    %v3384 = vpack.c.b16 %v3352, %v3320
    %v3385 = vpack.c.b16 %v3353, %v3321
    %v3386 = vpack.c.b16 %v3354, %v3322
    %v3387 = vpack.c.b16 %v3355, %v3323
    %v3388 = vpack.c.b16 %v3356, %v3324
    %v3389 = vpack.c.b16 %v3357, %v3325
    %v3390 = vpack.c.b16 %v3358, %v3326
    %v3391 = vpack.c.b16 %v3359, %v3327
    %v3392 = vpack.c.b16 %v3360, %v3328
    %3425 = vmatprep.subr.bf16.mxu0 %v3362
    %3426 = vmatpush1.bf16.xpose.msra.mxu0 %v3361
    %3427 = vmatprep.subr.bf16.mxu0 0
    %3428 = vmatpush1.bf16.xpose.msra.mxu0 0
    %3429 = vmatprep.subr.bf16.mxu0 0
    %3430 = vmatpush1.bf16.xpose.msra.mxu0 0
    %3431 = vmatprep.subr.bf16.mxu0 0
    %3432 = vmatpush1.bf16.xpose.msra.mxu0 0
    %3433 = vmatprep.subr.bf16.mxu0 0
    %3434 = vmatpush1.bf16.xpose.msra.mxu0 0
    %3435 = vmatprep.subr.bf16.mxu0 0
    %3436 = vmatpush1.bf16.xpose.msra.mxu0 0
    %3437 = vmatprep.subr.bf16.mxu0 0
    %3438 = vmatpush1.bf16.xpose.msra.mxu0 0
    %3439 = vmatprep.subr.bf16.mxu0 0
    %3440 = vmatpush1.bf16.xpose.msra.mxu0 0
    %3441 = vmatprep.subr.bf16.mxu0 0
    %3442 = vmatpush1.bf16.xpose.msra.mxu0 0
    %3443 = vmatprep.subr.bf16.mxu0 0
    %3444 = vmatpush1.bf16.xpose.msra.mxu0 0
    %3445 = vmatprep.subr.bf16.mxu0 0
    %3446 = vmatpush1.bf16.xpose.msra.mxu0 0
    %3447 = vmatprep.subr.bf16.mxu0 0
    %3448 = vmatpush1.bf16.xpose.msra.mxu0 0
    %3449 = vmatprep.subr.bf16.mxu0 0
    %3450 = vmatpush1.bf16.xpose.msra.mxu0 0
    %3451 = vmatprep.subr.bf16.mxu0 0
    %3452 = vmatpush1.bf16.xpose.msra.mxu0 0
    %3453 = vmatprep.subr.bf16.mxu0 0
    %3454 = vmatpush1.bf16.xpose.msra.mxu0 0
    %3455 = vmatprep.subr.bf16.mxu0 0
    %3456 = vmatpush1.bf16.xpose.msra.mxu0 0
    %3457 = vmatprep.mubr.bf16.mxu0 %v2971
    %3458 = vmatmul.mubr.bf16.gmra.mrb[0].mxu0 %v2970
    %v3459 = vpop.f32.mrb[0].mxu0
    %v3460 = vadd.f32 %v3263, %v3459
    %v3461 = vpop.f32.mrb[0].mxu0
    %v3462 = vpop.f32.mrb[0].mxu0
    %v3463 = vadd.f32 %v3263, %v3462
    %v3464 = vpop.f32.mrb[0].mxu0
    %3465 = vmatprep.mubr.bf16.mxu0 %v3003
    %3466 = vmatmul.mubr.bf16.gmra.mrb[0].mxu0 %v3002
    %v3467 = vpop.f32.mrb[0].mxu0
    %v3468 = vadd.f32 %v3263, %v3467
    %v3469 = vpop.f32.mrb[0].mxu0
    %v3470 = vpop.f32.mrb[0].mxu0
    %v3471 = vadd.f32 %v3263, %v3470
    %v3472 = vpop.f32.mrb[0].mxu0
    %3473 = vmatprep.mubr.bf16.mxu0 %v3035
    %3474 = vmatmul.mubr.bf16.gmra.mrb[0].mxu0 %v3034
    %v3475 = vpop.f32.mrb[0].mxu0
    %v3476 = vadd.f32 %v3263, %v3475
    %v3477 = vpop.f32.mrb[0].mxu0
    %v3478 = vpop.f32.mrb[0].mxu0
    %v3479 = vadd.f32 %v3263, %v3478
    %v3480 = vpop.f32.mrb[0].mxu0
    %3481 = vmatprep.mubr.bf16.mxu0 %v3067
    %3482 = vmatmul.mubr.bf16.gmra.mrb[0].mxu0 %v3066
    %v3483 = vpop.f32.mrb[0].mxu0
    %v3484 = vadd.f32 %v3263, %v3483
    %v3485 = vpop.f32.mrb[0].mxu0
    %v3486 = vpop.f32.mrb[0].mxu0
    %v3487 = vadd.f32 %v3263, %v3486
    %v3488 = vpop.f32.mrb[0].mxu0
    %3489 = vmatprep.mubr.bf16.mxu0 %v3099
    %3490 = vmatmul.mubr.bf16.gmra.mrb[0].mxu0 %v3098
    %v3491 = vpop.f32.mrb[0].mxu0
    %v3492 = vadd.f32 %v3263, %v3491
    %v3493 = vpop.f32.mrb[0].mxu0
    %v3494 = vpop.f32.mrb[0].mxu0
    %v3495 = vadd.f32 %v3263, %v3494
    %v3496 = vpop.f32.mrb[0].mxu0
    %3497 = vmatprep.mubr.bf16.mxu0 %v3131
    %3498 = vmatmul.mubr.bf16.gmra.mrb[0].mxu0 %v3130
    %v3499 = vpop.f32.mrb[0].mxu0
    %v3500 = vadd.f32 %v3263, %v3499
    %v3501 = vpop.f32.mrb[0].mxu0
    %v3502 = vpop.f32.mrb[0].mxu0
    %v3503 = vadd.f32 %v3263, %v3502
    %v3504 = vpop.f32.mrb[0].mxu0
    %3505 = vmatprep.mubr.bf16.mxu0 %v3163
    %3506 = vmatmul.mubr.bf16.gmra.mrb[0].mxu0 %v3162
    %v3507 = vpop.f32.mrb[0].mxu0
    %v3508 = vadd.f32 %v3263, %v3507
    %v3509 = vpop.f32.mrb[0].mxu0
    %v3510 = vpop.f32.mrb[0].mxu0
    %v3511 = vadd.f32 %v3263, %v3510
    %v3512 = vpop.f32.mrb[0].mxu0
    %3513 = vmatprep.mubr.bf16.mxu0 %v3195
    %3514 = vmatmul.mubr.bf16.gmra.mrb[0].mxu0 %v3194
    %v3515 = vpop.f32.mrb[0].mxu0
    %v3516 = vadd.f32 %v3263, %v3515
    %v3517 = vpop.f32.mrb[0].mxu0
    %v3518 = vpop.f32.mrb[0].mxu0
    %v3519 = vadd.f32 %v3263, %v3518
    %v3520 = vpop.f32.mrb[0].mxu0
    %3521 = vdwg.mxu0
    %3522 = vmatprep.subr.bf16.mxu0 %v3364
    %3523 = vmatpush1.bf16.xpose.msra.mxu0 %v3363
    %3524 = vmatprep.subr.bf16.mxu0 0
    %3525 = vmatpush1.bf16.xpose.msra.mxu0 0
    %3526 = vmatprep.subr.bf16.mxu0 0
    %3527 = vmatpush1.bf16.xpose.msra.mxu0 0
    %3528 = vmatprep.subr.bf16.mxu0 0
    %3529 = vmatpush1.bf16.xpose.msra.mxu0 0
    %3530 = vmatprep.subr.bf16.mxu0 0
    %3531 = vmatpush1.bf16.xpose.msra.mxu0 0
    %3532 = vmatprep.subr.bf16.mxu0 0
    %3533 = vmatpush1.bf16.xpose.msra.mxu0 0
    %3534 = vmatprep.subr.bf16.mxu0 0
    %3535 = vmatpush1.bf16.xpose.msra.mxu0 0
    %3536 = vmatprep.subr.bf16.mxu0 0
    %3537 = vmatpush1.bf16.xpose.msra.mxu0 0
    %3538 = vmatprep.subr.bf16.mxu0 0
    %3539 = vmatpush1.bf16.xpose.msra.mxu0 0
    %3540 = vmatprep.subr.bf16.mxu0 0
    %3541 = vmatpush1.bf16.xpose.msra.mxu0 0
    %3542 = vmatprep.subr.bf16.mxu0 0
    %3543 = vmatpush1.bf16.xpose.msra.mxu0 0
    %3544 = vmatprep.subr.bf16.mxu0 0
    %3545 = vmatpush1.bf16.xpose.msra.mxu0 0
    %3546 = vmatprep.subr.bf16.mxu0 0
    %3547 = vmatpush1.bf16.xpose.msra.mxu0 0
    %3548 = vmatprep.subr.bf16.mxu0 0
    %3549 = vmatpush1.bf16.xpose.msra.mxu0 0
    %3550 = vmatprep.subr.bf16.mxu0 0
    %3551 = vmatpush1.bf16.xpose.msra.mxu0 0
    %3552 = vmatprep.subr.bf16.mxu0 0
    %3553 = vmatpush1.bf16.xpose.msra.mxu0 0
    %3554 = vmatprep.mubr.bf16.mxu0 %v2973
    %3555 = vmatmul.mubr.bf16.gmra.mrb[0].mxu0 %v2972
    %v3556 = vpop.f32.mrb[0].mxu0
    %v3557 = vadd.f32 %v3460, %v3556
    %v3558 = vpop.f32.mrb[0].mxu0
    %v3559 = vpop.f32.mrb[0].mxu0
    %v3560 = vadd.f32 %v3463, %v3559
    %v3561 = vpop.f32.mrb[0].mxu0
    %3562 = vmatprep.mubr.bf16.mxu0 %v3005
    %3563 = vmatmul.mubr.bf16.gmra.mrb[0].mxu0 %v3004
    %v3564 = vpop.f32.mrb[0].mxu0
    %v3565 = vadd.f32 %v3468, %v3564
    %v3566 = vpop.f32.mrb[0].mxu0
    %v3567 = vpop.f32.mrb[0].mxu0
    %v3568 = vadd.f32 %v3471, %v3567
    %v3569 = vpop.f32.mrb[0].mxu0
    %3570 = vmatprep.mubr.bf16.mxu0 %v3037
    %3571 = vmatmul.mubr.bf16.gmra.mrb[0].mxu0 %v3036
    %v3572 = vpop.f32.mrb[0].mxu0
    %v3573 = vadd.f32 %v3476, %v3572
    %v3574 = vpop.f32.mrb[0].mxu0
    %v3575 = vpop.f32.mrb[0].mxu0
    %v3576 = vadd.f32 %v3479, %v3575
    %v3577 = vpop.f32.mrb[0].mxu0
    %3578 = vmatprep.mubr.bf16.mxu0 %v3069
    %3579 = vmatmul.mubr.bf16.gmra.mrb[0].mxu0 %v3068
    %v3580 = vpop.f32.mrb[0].mxu0
    %v3581 = vadd.f32 %v3484, %v3580
    %v3582 = vpop.f32.mrb[0].mxu0
    %v3583 = vpop.f32.mrb[0].mxu0
    %v3584 = vadd.f32 %v3487, %v3583
    %v3585 = vpop.f32.mrb[0].mxu0
    %3586 = vmatprep.mubr.bf16.mxu0 %v3101
    %3587 = vmatmul.mubr.bf16.gmra.mrb[0].mxu0 %v3100
    %v3588 = vpop.f32.mrb[0].mxu0
    %v3589 = vadd.f32 %v3492, %v3588
    %v3590 = vpop.f32.mrb[0].mxu0
    %v3591 = vpop.f32.mrb[0].mxu0
    %v3592 = vadd.f32 %v3495, %v3591
    %v3593 = vpop.f32.mrb[0].mxu0
    %3594 = vmatprep.mubr.bf16.mxu0 %v3133
    %3595 = vmatmul.mubr.bf16.gmra.mrb[0].mxu0 %v3132
    %v3596 = vpop.f32.mrb[0].mxu0
    %v3597 = vadd.f32 %v3500, %v3596
    %v3598 = vpop.f32.mrb[0].mxu0
    %v3599 = vpop.f32.mrb[0].mxu0
    %v3600 = vadd.f32 %v3503, %v3599
    %v3601 = vpop.f32.mrb[0].mxu0
    %3602 = vmatprep.mubr.bf16.mxu0 %v3165
    %3603 = vmatmul.mubr.bf16.gmra.mrb[0].mxu0 %v3164
    %v3604 = vpop.f32.mrb[0].mxu0
    %v3605 = vadd.f32 %v3508, %v3604
    %v3606 = vpop.f32.mrb[0].mxu0
    %v3607 = vpop.f32.mrb[0].mxu0
    %v3608 = vadd.f32 %v3511, %v3607
    %v3609 = vpop.f32.mrb[0].mxu0
    %3610 = vmatprep.mubr.bf16.mxu0 %v3197
    %3611 = vmatmul.mubr.bf16.gmra.mrb[0].mxu0 %v3196
    %v3612 = vpop.f32.mrb[0].mxu0
    %v3613 = vadd.f32 %v3516, %v3612
    %v3614 = vpop.f32.mrb[0].mxu0
    %v3615 = vpop.f32.mrb[0].mxu0
    %v3616 = vadd.f32 %v3519, %v3615
    %v3617 = vpop.f32.mrb[0].mxu0
    %3618 = vdwg.mxu0
    %3619 = vmatprep.subr.bf16.mxu0 %v3366
    %3620 = vmatpush1.bf16.xpose.msra.mxu0 %v3365
    %3621 = vmatprep.subr.bf16.mxu0 0
    %3622 = vmatpush1.bf16.xpose.msra.mxu0 0
    %3623 = vmatprep.subr.bf16.mxu0 0
    %3624 = vmatpush1.bf16.xpose.msra.mxu0 0
    %3625 = vmatprep.subr.bf16.mxu0 0
    %3626 = vmatpush1.bf16.xpose.msra.mxu0 0
    %3627 = vmatprep.subr.bf16.mxu0 0
    %3628 = vmatpush1.bf16.xpose.msra.mxu0 0
    %3629 = vmatprep.subr.bf16.mxu0 0
    %3630 = vmatpush1.bf16.xpose.msra.mxu0 0
    %3631 = vmatprep.subr.bf16.mxu0 0
    %3632 = vmatpush1.bf16.xpose.msra.mxu0 0
    %3633 = vmatprep.subr.bf16.mxu0 0
    %3634 = vmatpush1.bf16.xpose.msra.mxu0 0
    %3635 = vmatprep.subr.bf16.mxu0 0
    %3636 = vmatpush1.bf16.xpose.msra.mxu0 0
    %3637 = vmatprep.subr.bf16.mxu0 0
    %3638 = vmatpush1.bf16.xpose.msra.mxu0 0
    %3639 = vmatprep.subr.bf16.mxu0 0
    %3640 = vmatpush1.bf16.xpose.msra.mxu0 0
    %3641 = vmatprep.subr.bf16.mxu0 0
    %3642 = vmatpush1.bf16.xpose.msra.mxu0 0
    %3643 = vmatprep.subr.bf16.mxu0 0
    %3644 = vmatpush1.bf16.xpose.msra.mxu0 0
    %3645 = vmatprep.subr.bf16.mxu0 0
    %3646 = vmatpush1.bf16.xpose.msra.mxu0 0
    %3647 = vmatprep.subr.bf16.mxu0 0
    %3648 = vmatpush1.bf16.xpose.msra.mxu0 0
    %3649 = vmatprep.subr.bf16.mxu0 0
    %3650 = vmatpush1.bf16.xpose.msra.mxu0 0
    %3651 = vmatprep.mubr.bf16.mxu0 %v2975
    %3652 = vmatmul.mubr.bf16.gmra.mrb[0].mxu0 %v2974
    %v3653 = vpop.f32.mrb[0].mxu0
    %v3654 = vadd.f32 %v3557, %v3653
    %v3655 = vpop.f32.mrb[0].mxu0
    %v3656 = vpop.f32.mrb[0].mxu0
    %v3657 = vadd.f32 %v3560, %v3656
    %v3658 = vpop.f32.mrb[0].mxu0
    %3659 = vmatprep.mubr.bf16.mxu0 %v3007
    %3660 = vmatmul.mubr.bf16.gmra.mrb[0].mxu0 %v3006
    %v3661 = vpop.f32.mrb[0].mxu0
    %v3662 = vadd.f32 %v3565, %v3661
    %v3663 = vpop.f32.mrb[0].mxu0
    %v3664 = vpop.f32.mrb[0].mxu0
    %v3665 = vadd.f32 %v3568, %v3664
    %v3666 = vpop.f32.mrb[0].mxu0
    %3667 = vmatprep.mubr.bf16.mxu0 %v3039
    %3668 = vmatmul.mubr.bf16.gmra.mrb[0].mxu0 %v3038
    %v3669 = vpop.f32.mrb[0].mxu0
    %v3670 = vadd.f32 %v3573, %v3669
    %v3671 = vpop.f32.mrb[0].mxu0
    %v3672 = vpop.f32.mrb[0].mxu0
    %v3673 = vadd.f32 %v3576, %v3672
    %v3674 = vpop.f32.mrb[0].mxu0
    %3675 = vmatprep.mubr.bf16.mxu0 %v3071
    %3676 = vmatmul.mubr.bf16.gmra.mrb[0].mxu0 %v3070
    %v3677 = vpop.f32.mrb[0].mxu0
    %v3678 = vadd.f32 %v3581, %v3677
    %v3679 = vpop.f32.mrb[0].mxu0
    %v3680 = vpop.f32.mrb[0].mxu0
    %v3681 = vadd.f32 %v3584, %v3680
    %v3682 = vpop.f32.mrb[0].mxu0
    %3683 = vmatprep.mubr.bf16.mxu0 %v3103
    %3684 = vmatmul.mubr.bf16.gmra.mrb[0].mxu0 %v3102
    %v3685 = vpop.f32.mrb[0].mxu0
    %v3686 = vadd.f32 %v3589, %v3685
    %v3687 = vpop.f32.mrb[0].mxu0
    %v3688 = vpop.f32.mrb[0].mxu0
    %v3689 = vadd.f32 %v3592, %v3688
    %v3690 = vpop.f32.mrb[0].mxu0
    %3691 = vmatprep.mubr.bf16.mxu0 %v3135
    %3692 = vmatmul.mubr.bf16.gmra.mrb[0].mxu0 %v3134
    %v3693 = vpop.f32.mrb[0].mxu0
    %v3694 = vadd.f32 %v3597, %v3693
    %v3695 = vpop.f32.mrb[0].mxu0
    %v3696 = vpop.f32.mrb[0].mxu0
    %v3697 = vadd.f32 %v3600, %v3696
    %v3698 = vpop.f32.mrb[0].mxu0
    %3699 = vmatprep.mubr.bf16.mxu0 %v3167
    %3700 = vmatmul.mubr.bf16.gmra.mrb[0].mxu0 %v3166
    %v3701 = vpop.f32.mrb[0].mxu0
    %v3702 = vadd.f32 %v3605, %v3701
    %v3703 = vpop.f32.mrb[0].mxu0
    %v3704 = vpop.f32.mrb[0].mxu0
    %v3705 = vadd.f32 %v3608, %v3704
    %v3706 = vpop.f32.mrb[0].mxu0
    %3707 = vmatprep.mubr.bf16.mxu0 %v3199
    %3708 = vmatmul.mubr.bf16.gmra.mrb[0].mxu0 %v3198
    %v3709 = vpop.f32.mrb[0].mxu0
    %v3710 = vadd.f32 %v3613, %v3709
    %v3711 = vpop.f32.mrb[0].mxu0
    %v3712 = vpop.f32.mrb[0].mxu0
    %v3713 = vadd.f32 %v3616, %v3712
    %v3714 = vpop.f32.mrb[0].mxu0
    %3715 = vdwg.mxu0
    %3716 = vmatprep.subr.bf16.mxu0 %v3368
    %3717 = vmatpush1.bf16.xpose.msra.mxu0 %v3367
    %3718 = vmatprep.subr.bf16.mxu0 0
    %3719 = vmatpush1.bf16.xpose.msra.mxu0 0
    %3720 = vmatprep.subr.bf16.mxu0 0
    %3721 = vmatpush1.bf16.xpose.msra.mxu0 0
    %3722 = vmatprep.subr.bf16.mxu0 0
    %3723 = vmatpush1.bf16.xpose.msra.mxu0 0
    %3724 = vmatprep.subr.bf16.mxu0 0
    %3725 = vmatpush1.bf16.xpose.msra.mxu0 0
    %3726 = vmatprep.subr.bf16.mxu0 0
    %3727 = vmatpush1.bf16.xpose.msra.mxu0 0
    %3728 = vmatprep.subr.bf16.mxu0 0
    %3729 = vmatpush1.bf16.xpose.msra.mxu0 0
    %3730 = vmatprep.subr.bf16.mxu0 0
    %3731 = vmatpush1.bf16.xpose.msra.mxu0 0
    %3732 = vmatprep.subr.bf16.mxu0 0
    %3733 = vmatpush1.bf16.xpose.msra.mxu0 0
    %3734 = vmatprep.subr.bf16.mxu0 0
    %3735 = vmatpush1.bf16.xpose.msra.mxu0 0
    %3736 = vmatprep.subr.bf16.mxu0 0
    %3737 = vmatpush1.bf16.xpose.msra.mxu0 0
    %3738 = vmatprep.subr.bf16.mxu0 0
    %3739 = vmatpush1.bf16.xpose.msra.mxu0 0
    %3740 = vmatprep.subr.bf16.mxu0 0
    %3741 = vmatpush1.bf16.xpose.msra.mxu0 0
    %3742 = vmatprep.subr.bf16.mxu0 0
    %3743 = vmatpush1.bf16.xpose.msra.mxu0 0
    %3744 = vmatprep.subr.bf16.mxu0 0
    %3745 = vmatpush1.bf16.xpose.msra.mxu0 0
    %3746 = vmatprep.subr.bf16.mxu0 0
    %3747 = vmatpush1.bf16.xpose.msra.mxu0 0
    %3748 = vmatprep.mubr.bf16.mxu0 %v2977
    %3749 = vmatmul.mubr.bf16.gmra.mrb[0].mxu0 %v2976
    %v3750 = vpop.f32.mrb[0].mxu0
    %v3751 = vadd.f32 %v3654, %v3750
    %v3752 = vpop.f32.mrb[0].mxu0
    %v3753 = vpop.f32.mrb[0].mxu0
    %v3754 = vadd.f32 %v3657, %v3753
    %v3755 = vpop.f32.mrb[0].mxu0
    %3756 = vmatprep.mubr.bf16.mxu0 %v3009
    %3757 = vmatmul.mubr.bf16.gmra.mrb[0].mxu0 %v3008
    %v3758 = vpop.f32.mrb[0].mxu0
    %v3759 = vadd.f32 %v3662, %v3758
    %v3760 = vpop.f32.mrb[0].mxu0
    %v3761 = vpop.f32.mrb[0].mxu0
    %v3762 = vadd.f32 %v3665, %v3761
    %v3763 = vpop.f32.mrb[0].mxu0
    %3764 = vmatprep.mubr.bf16.mxu0 %v3041
    %3765 = vmatmul.mubr.bf16.gmra.mrb[0].mxu0 %v3040
    %v3766 = vpop.f32.mrb[0].mxu0
    %v3767 = vadd.f32 %v3670, %v3766
    %v3768 = vpop.f32.mrb[0].mxu0
    %v3769 = vpop.f32.mrb[0].mxu0
    %v3770 = vadd.f32 %v3673, %v3769
    %v3771 = vpop.f32.mrb[0].mxu0
    %3772 = vmatprep.mubr.bf16.mxu0 %v3073
    %3773 = vmatmul.mubr.bf16.gmra.mrb[0].mxu0 %v3072
    %v3774 = vpop.f32.mrb[0].mxu0
    %v3775 = vadd.f32 %v3678, %v3774
    %v3776 = vpop.f32.mrb[0].mxu0
    %v3777 = vpop.f32.mrb[0].mxu0
    %v3778 = vadd.f32 %v3681, %v3777
    %v3779 = vpop.f32.mrb[0].mxu0
    %3780 = vmatprep.mubr.bf16.mxu0 %v3105
    %3781 = vmatmul.mubr.bf16.gmra.mrb[0].mxu0 %v3104
    %v3782 = vpop.f32.mrb[0].mxu0
    %v3783 = vadd.f32 %v3686, %v3782
    %v3784 = vpop.f32.mrb[0].mxu0
    %v3785 = vpop.f32.mrb[0].mxu0
    %v3786 = vadd.f32 %v3689, %v3785
    %v3787 = vpop.f32.mrb[0].mxu0
    %3788 = vmatprep.mubr.bf16.mxu0 %v3137
    %3789 = vmatmul.mubr.bf16.gmra.mrb[0].mxu0 %v3136
    %v3790 = vpop.f32.mrb[0].mxu0
    %v3791 = vadd.f32 %v3694, %v3790
    %v3792 = vpop.f32.mrb[0].mxu0
    %v3793 = vpop.f32.mrb[0].mxu0
    %v3794 = vadd.f32 %v3697, %v3793
    %v3795 = vpop.f32.mrb[0].mxu0
    %3796 = vmatprep.mubr.bf16.mxu0 %v3169
    %3797 = vmatmul.mubr.bf16.gmra.mrb[0].mxu0 %v3168
    %v3798 = vpop.f32.mrb[0].mxu0
    %v3799 = vadd.f32 %v3702, %v3798
    %v3800 = vpop.f32.mrb[0].mxu0
    %v3801 = vpop.f32.mrb[0].mxu0
    %v3802 = vadd.f32 %v3705, %v3801
    %v3803 = vpop.f32.mrb[0].mxu0
    %3804 = vmatprep.mubr.bf16.mxu0 %v3201
    %3805 = vmatmul.mubr.bf16.gmra.mrb[0].mxu0 %v3200
    %v3806 = vpop.f32.mrb[0].mxu0
    %v3807 = vadd.f32 %v3710, %v3806
    %v3808 = vpop.f32.mrb[0].mxu0
    %v3809 = vpop.f32.mrb[0].mxu0
    %v3810 = vadd.f32 %v3713, %v3809
    %v3811 = vpop.f32.mrb[0].mxu0
    %3812 = vdwg.mxu0
    %3813 = vmatprep.subr.bf16.mxu0 %v3370
    %3814 = vmatpush1.bf16.xpose.msra.mxu0 %v3369
    %3815 = vmatprep.subr.bf16.mxu0 0
    %3816 = vmatpush1.bf16.xpose.msra.mxu0 0
    %3817 = vmatprep.subr.bf16.mxu0 0
    %3818 = vmatpush1.bf16.xpose.msra.mxu0 0
    %3819 = vmatprep.subr.bf16.mxu0 0
    %3820 = vmatpush1.bf16.xpose.msra.mxu0 0
    %3821 = vmatprep.subr.bf16.mxu0 0
    %3822 = vmatpush1.bf16.xpose.msra.mxu0 0
    %3823 = vmatprep.subr.bf16.mxu0 0
    %3824 = vmatpush1.bf16.xpose.msra.mxu0 0
    %3825 = vmatprep.subr.bf16.mxu0 0
    %3826 = vmatpush1.bf16.xpose.msra.mxu0 0
    %3827 = vmatprep.subr.bf16.mxu0 0
    %3828 = vmatpush1.bf16.xpose.msra.mxu0 0
    %3829 = vmatprep.subr.bf16.mxu0 0
    %3830 = vmatpush1.bf16.xpose.msra.mxu0 0
    %3831 = vmatprep.subr.bf16.mxu0 0
    %3832 = vmatpush1.bf16.xpose.msra.mxu0 0
    %3833 = vmatprep.subr.bf16.mxu0 0
    %3834 = vmatpush1.bf16.xpose.msra.mxu0 0
    %3835 = vmatprep.subr.bf16.mxu0 0
    %3836 = vmatpush1.bf16.xpose.msra.mxu0 0
    %3837 = vmatprep.subr.bf16.mxu0 0
    %3838 = vmatpush1.bf16.xpose.msra.mxu0 0
    %3839 = vmatprep.subr.bf16.mxu0 0
    %3840 = vmatpush1.bf16.xpose.msra.mxu0 0
    %3841 = vmatprep.subr.bf16.mxu0 0
    %3842 = vmatpush1.bf16.xpose.msra.mxu0 0
    %3843 = vmatprep.subr.bf16.mxu0 0
    %3844 = vmatpush1.bf16.xpose.msra.mxu0 0
    %3845 = vmatprep.mubr.bf16.mxu0 %v2979
    %3846 = vmatmul.mubr.bf16.gmra.mrb[0].mxu0 %v2978
    %v3847 = vpop.f32.mrb[0].mxu0
    %v3848 = vadd.f32 %v3751, %v3847
    %v3849 = vpop.f32.mrb[0].mxu0
    %v3850 = vpop.f32.mrb[0].mxu0
    %v3851 = vadd.f32 %v3754, %v3850
    %v3852 = vpop.f32.mrb[0].mxu0
    %3853 = vmatprep.mubr.bf16.mxu0 %v3011
    %3854 = vmatmul.mubr.bf16.gmra.mrb[0].mxu0 %v3010
    %v3855 = vpop.f32.mrb[0].mxu0
    %v3856 = vadd.f32 %v3759, %v3855
    %v3857 = vpop.f32.mrb[0].mxu0
    %v3858 = vpop.f32.mrb[0].mxu0
    %v3859 = vadd.f32 %v3762, %v3858
    %v3860 = vpop.f32.mrb[0].mxu0
    %3861 = vmatprep.mubr.bf16.mxu0 %v3043
    %3862 = vmatmul.mubr.bf16.gmra.mrb[0].mxu0 %v3042
    %v3863 = vpop.f32.mrb[0].mxu0
    %v3864 = vadd.f32 %v3767, %v3863
    %v3865 = vpop.f32.mrb[0].mxu0
    %v3866 = vpop.f32.mrb[0].mxu0
    %v3867 = vadd.f32 %v3770, %v3866
    %v3868 = vpop.f32.mrb[0].mxu0
    %3869 = vmatprep.mubr.bf16.mxu0 %v3075
    %3870 = vmatmul.mubr.bf16.gmra.mrb[0].mxu0 %v3074
    %v3871 = vpop.f32.mrb[0].mxu0
    %v3872 = vadd.f32 %v3775, %v3871
    %v3873 = vpop.f32.mrb[0].mxu0
    %v3874 = vpop.f32.mrb[0].mxu0
    %v3875 = vadd.f32 %v3778, %v3874
    %v3876 = vpop.f32.mrb[0].mxu0
    %3877 = vmatprep.mubr.bf16.mxu0 %v3107
    %3878 = vmatmul.mubr.bf16.gmra.mrb[0].mxu0 %v3106
    %v3879 = vpop.f32.mrb[0].mxu0
    %v3880 = vadd.f32 %v3783, %v3879
    %v3881 = vpop.f32.mrb[0].mxu0
    %v3882 = vpop.f32.mrb[0].mxu0
    %v3883 = vadd.f32 %v3786, %v3882
    %v3884 = vpop.f32.mrb[0].mxu0
    %3885 = vmatprep.mubr.bf16.mxu0 %v3139
    %3886 = vmatmul.mubr.bf16.gmra.mrb[0].mxu0 %v3138
    %v3887 = vpop.f32.mrb[0].mxu0
    %v3888 = vadd.f32 %v3791, %v3887
    %v3889 = vpop.f32.mrb[0].mxu0
    %v3890 = vpop.f32.mrb[0].mxu0
    %v3891 = vadd.f32 %v3794, %v3890
    %v3892 = vpop.f32.mrb[0].mxu0
    %3893 = vmatprep.mubr.bf16.mxu0 %v3171
    %3894 = vmatmul.mubr.bf16.gmra.mrb[0].mxu0 %v3170
    %v3895 = vpop.f32.mrb[0].mxu0
    %v3896 = vadd.f32 %v3799, %v3895
    %v3897 = vpop.f32.mrb[0].mxu0
    %v3898 = vpop.f32.mrb[0].mxu0
    %v3899 = vadd.f32 %v3802, %v3898
    %v3900 = vpop.f32.mrb[0].mxu0
    %3901 = vmatprep.mubr.bf16.mxu0 %v3203
    %3902 = vmatmul.mubr.bf16.gmra.mrb[0].mxu0 %v3202
    %v3903 = vpop.f32.mrb[0].mxu0
    %v3904 = vadd.f32 %v3807, %v3903
    %v3905 = vpop.f32.mrb[0].mxu0
    %v3906 = vpop.f32.mrb[0].mxu0
    %v3907 = vadd.f32 %v3810, %v3906
    %v3908 = vpop.f32.mrb[0].mxu0
    %3909 = vdwg.mxu0
    %3910 = vmatprep.subr.bf16.mxu0 %v3372
    %3911 = vmatpush1.bf16.xpose.msra.mxu0 %v3371
    %3912 = vmatprep.subr.bf16.mxu0 0
    %3913 = vmatpush1.bf16.xpose.msra.mxu0 0
    %3914 = vmatprep.subr.bf16.mxu0 0
    %3915 = vmatpush1.bf16.xpose.msra.mxu0 0
    %3916 = vmatprep.subr.bf16.mxu0 0
    %3917 = vmatpush1.bf16.xpose.msra.mxu0 0
    %3918 = vmatprep.subr.bf16.mxu0 0
    %3919 = vmatpush1.bf16.xpose.msra.mxu0 0
    %3920 = vmatprep.subr.bf16.mxu0 0
    %3921 = vmatpush1.bf16.xpose.msra.mxu0 0
    %3922 = vmatprep.subr.bf16.mxu0 0
    %3923 = vmatpush1.bf16.xpose.msra.mxu0 0
    %3924 = vmatprep.subr.bf16.mxu0 0
    %3925 = vmatpush1.bf16.xpose.msra.mxu0 0
    %3926 = vmatprep.subr.bf16.mxu0 0
    %3927 = vmatpush1.bf16.xpose.msra.mxu0 0
    %3928 = vmatprep.subr.bf16.mxu0 0
    %3929 = vmatpush1.bf16.xpose.msra.mxu0 0
    %3930 = vmatprep.subr.bf16.mxu0 0
    %3931 = vmatpush1.bf16.xpose.msra.mxu0 0
    %3932 = vmatprep.subr.bf16.mxu0 0
    %3933 = vmatpush1.bf16.xpose.msra.mxu0 0
    %3934 = vmatprep.subr.bf16.mxu0 0
    %3935 = vmatpush1.bf16.xpose.msra.mxu0 0
    %3936 = vmatprep.subr.bf16.mxu0 0
    %3937 = vmatpush1.bf16.xpose.msra.mxu0 0
    %3938 = vmatprep.subr.bf16.mxu0 0
    %3939 = vmatpush1.bf16.xpose.msra.mxu0 0
    %3940 = vmatprep.subr.bf16.mxu0 0
    %3941 = vmatpush1.bf16.xpose.msra.mxu0 0
    %3942 = vmatprep.mubr.bf16.mxu0 %v2981
    %3943 = vmatmul.mubr.bf16.gmra.mrb[0].mxu0 %v2980
    %v3944 = vpop.f32.mrb[0].mxu0
    %v3945 = vadd.f32 %v3848, %v3944
    %v3946 = vpop.f32.mrb[0].mxu0
    %v3947 = vpop.f32.mrb[0].mxu0
    %v3948 = vadd.f32 %v3851, %v3947
    %v3949 = vpop.f32.mrb[0].mxu0
    %3950 = vmatprep.mubr.bf16.mxu0 %v3013
    %3951 = vmatmul.mubr.bf16.gmra.mrb[0].mxu0 %v3012
    %v3952 = vpop.f32.mrb[0].mxu0
    %v3953 = vadd.f32 %v3856, %v3952
    %v3954 = vpop.f32.mrb[0].mxu0
    %v3955 = vpop.f32.mrb[0].mxu0
    %v3956 = vadd.f32 %v3859, %v3955
    %v3957 = vpop.f32.mrb[0].mxu0
    %3958 = vmatprep.mubr.bf16.mxu0 %v3045
    %3959 = vmatmul.mubr.bf16.gmra.mrb[0].mxu0 %v3044
    %v3960 = vpop.f32.mrb[0].mxu0
    %v3961 = vadd.f32 %v3864, %v3960
    %v3962 = vpop.f32.mrb[0].mxu0
    %v3963 = vpop.f32.mrb[0].mxu0
    %v3964 = vadd.f32 %v3867, %v3963
    %v3965 = vpop.f32.mrb[0].mxu0
    %3966 = vmatprep.mubr.bf16.mxu0 %v3077
    %3967 = vmatmul.mubr.bf16.gmra.mrb[0].mxu0 %v3076
    %v3968 = vpop.f32.mrb[0].mxu0
    %v3969 = vadd.f32 %v3872, %v3968
    %v3970 = vpop.f32.mrb[0].mxu0
    %v3971 = vpop.f32.mrb[0].mxu0
    %v3972 = vadd.f32 %v3875, %v3971
    %v3973 = vpop.f32.mrb[0].mxu0
    %3974 = vmatprep.mubr.bf16.mxu0 %v3109
    %3975 = vmatmul.mubr.bf16.gmra.mrb[0].mxu0 %v3108
    %v3976 = vpop.f32.mrb[0].mxu0
    %v3977 = vadd.f32 %v3880, %v3976
    %v3978 = vpop.f32.mrb[0].mxu0
    %v3979 = vpop.f32.mrb[0].mxu0
    %v3980 = vadd.f32 %v3883, %v3979
    %v3981 = vpop.f32.mrb[0].mxu0
    %3982 = vmatprep.mubr.bf16.mxu0 %v3141
    %3983 = vmatmul.mubr.bf16.gmra.mrb[0].mxu0 %v3140
    %v3984 = vpop.f32.mrb[0].mxu0
    %v3985 = vadd.f32 %v3888, %v3984
    %v3986 = vpop.f32.mrb[0].mxu0
    %v3987 = vpop.f32.mrb[0].mxu0
    %v3988 = vadd.f32 %v3891, %v3987
    %v3989 = vpop.f32.mrb[0].mxu0
    %3990 = vmatprep.mubr.bf16.mxu0 %v3173
    %3991 = vmatmul.mubr.bf16.gmra.mrb[0].mxu0 %v3172
    %v3992 = vpop.f32.mrb[0].mxu0
    %v3993 = vadd.f32 %v3896, %v3992
    %v3994 = vpop.f32.mrb[0].mxu0
    %v3995 = vpop.f32.mrb[0].mxu0
    %v3996 = vadd.f32 %v3899, %v3995
    %v3997 = vpop.f32.mrb[0].mxu0
    %3998 = vmatprep.mubr.bf16.mxu0 %v3205
    %3999 = vmatmul.mubr.bf16.gmra.mrb[0].mxu0 %v3204
    %v4000 = vpop.f32.mrb[0].mxu0
    %v4001 = vadd.f32 %v3904, %v4000
    %v4002 = vpop.f32.mrb[0].mxu0
    %v4003 = vpop.f32.mrb[0].mxu0
    %v4004 = vadd.f32 %v3907, %v4003
    %v4005 = vpop.f32.mrb[0].mxu0
    %4006 = vdwg.mxu0
    %4007 = vmatprep.subr.bf16.mxu0 %v3374
    %4008 = vmatpush1.bf16.xpose.msra.mxu0 %v3373
    %4009 = vmatprep.subr.bf16.mxu0 0
    %4010 = vmatpush1.bf16.xpose.msra.mxu0 0
    %4011 = vmatprep.subr.bf16.mxu0 0
    %4012 = vmatpush1.bf16.xpose.msra.mxu0 0
    %4013 = vmatprep.subr.bf16.mxu0 0
    %4014 = vmatpush1.bf16.xpose.msra.mxu0 0
    %4015 = vmatprep.subr.bf16.mxu0 0
    %4016 = vmatpush1.bf16.xpose.msra.mxu0 0
    %4017 = vmatprep.subr.bf16.mxu0 0
    %4018 = vmatpush1.bf16.xpose.msra.mxu0 0
    %4019 = vmatprep.subr.bf16.mxu0 0
    %4020 = vmatpush1.bf16.xpose.msra.mxu0 0
    %4021 = vmatprep.subr.bf16.mxu0 0
    %4022 = vmatpush1.bf16.xpose.msra.mxu0 0
    %4023 = vmatprep.subr.bf16.mxu0 0
    %4024 = vmatpush1.bf16.xpose.msra.mxu0 0
    %4025 = vmatprep.subr.bf16.mxu0 0
    %4026 = vmatpush1.bf16.xpose.msra.mxu0 0
    %4027 = vmatprep.subr.bf16.mxu0 0
    %4028 = vmatpush1.bf16.xpose.msra.mxu0 0
    %4029 = vmatprep.subr.bf16.mxu0 0
    %4030 = vmatpush1.bf16.xpose.msra.mxu0 0
    %4031 = vmatprep.subr.bf16.mxu0 0
    %4032 = vmatpush1.bf16.xpose.msra.mxu0 0
    %4033 = vmatprep.subr.bf16.mxu0 0
    %4034 = vmatpush1.bf16.xpose.msra.mxu0 0
    %4035 = vmatprep.subr.bf16.mxu0 0
    %4036 = vmatpush1.bf16.xpose.msra.mxu0 0
    %4037 = vmatprep.subr.bf16.mxu0 0
    %4038 = vmatpush1.bf16.xpose.msra.mxu0 0
    %4039 = vmatprep.mubr.bf16.mxu0 %v2983
    %4040 = vmatmul.mubr.bf16.gmra.mrb[0].mxu0 %v2982
    %v4041 = vpop.f32.mrb[0].mxu0
    %v4042 = vadd.f32 %v3945, %v4041
    %v4043 = vpop.f32.mrb[0].mxu0
    %v4044 = vpop.f32.mrb[0].mxu0
    %v4045 = vadd.f32 %v3948, %v4044
    %v4046 = vpop.f32.mrb[0].mxu0
    %4047 = vmatprep.mubr.bf16.mxu0 %v3015
    %4048 = vmatmul.mubr.bf16.gmra.mrb[0].mxu0 %v3014
    %v4049 = vpop.f32.mrb[0].mxu0
    %v4050 = vadd.f32 %v3953, %v4049
    %v4051 = vpop.f32.mrb[0].mxu0
    %v4052 = vpop.f32.mrb[0].mxu0
    %v4053 = vadd.f32 %v3956, %v4052
    %v4054 = vpop.f32.mrb[0].mxu0
    %4055 = vmatprep.mubr.bf16.mxu0 %v3047
    %4056 = vmatmul.mubr.bf16.gmra.mrb[0].mxu0 %v3046
    %v4057 = vpop.f32.mrb[0].mxu0
    %v4058 = vadd.f32 %v3961, %v4057
    %v4059 = vpop.f32.mrb[0].mxu0
    %v4060 = vpop.f32.mrb[0].mxu0
    %v4061 = vadd.f32 %v3964, %v4060
    %v4062 = vpop.f32.mrb[0].mxu0
    %4063 = vmatprep.mubr.bf16.mxu0 %v3079
    %4064 = vmatmul.mubr.bf16.gmra.mrb[0].mxu0 %v3078
    %v4065 = vpop.f32.mrb[0].mxu0
    %v4066 = vadd.f32 %v3969, %v4065
    %v4067 = vpop.f32.mrb[0].mxu0
    %v4068 = vpop.f32.mrb[0].mxu0
    %v4069 = vadd.f32 %v3972, %v4068
    %v4070 = vpop.f32.mrb[0].mxu0
    %4071 = vmatprep.mubr.bf16.mxu0 %v3111
    %4072 = vmatmul.mubr.bf16.gmra.mrb[0].mxu0 %v3110
    %v4073 = vpop.f32.mrb[0].mxu0
    %v4074 = vadd.f32 %v3977, %v4073
    %v4075 = vpop.f32.mrb[0].mxu0
    %v4076 = vpop.f32.mrb[0].mxu0
    %v4077 = vadd.f32 %v3980, %v4076
    %v4078 = vpop.f32.mrb[0].mxu0
    %4079 = vmatprep.mubr.bf16.mxu0 %v3143
    %4080 = vmatmul.mubr.bf16.gmra.mrb[0].mxu0 %v3142
    %v4081 = vpop.f32.mrb[0].mxu0
    %v4082 = vadd.f32 %v3985, %v4081
    %v4083 = vpop.f32.mrb[0].mxu0
    %v4084 = vpop.f32.mrb[0].mxu0
    %v4085 = vadd.f32 %v3988, %v4084
    %v4086 = vpop.f32.mrb[0].mxu0
    %4087 = vmatprep.mubr.bf16.mxu0 %v3175
    %4088 = vmatmul.mubr.bf16.gmra.mrb[0].mxu0 %v3174
    %v4089 = vpop.f32.mrb[0].mxu0
    %v4090 = vadd.f32 %v3993, %v4089
    %v4091 = vpop.f32.mrb[0].mxu0
    %v4092 = vpop.f32.mrb[0].mxu0
    %v4093 = vadd.f32 %v3996, %v4092
    %v4094 = vpop.f32.mrb[0].mxu0
    %4095 = vmatprep.mubr.bf16.mxu0 %v3207
    %4096 = vmatmul.mubr.bf16.gmra.mrb[0].mxu0 %v3206
    %v4097 = vpop.f32.mrb[0].mxu0
    %v4098 = vadd.f32 %v4001, %v4097
    %v4099 = vpop.f32.mrb[0].mxu0
    %v4100 = vpop.f32.mrb[0].mxu0
    %v4101 = vadd.f32 %v4004, %v4100
    %v4102 = vpop.f32.mrb[0].mxu0
    %4103 = vdwg.mxu0
    %4104 = vmatprep.subr.bf16.mxu0 %v3376
    %4105 = vmatpush1.bf16.xpose.msra.mxu0 %v3375
    %4106 = vmatprep.subr.bf16.mxu0 0
    %4107 = vmatpush1.bf16.xpose.msra.mxu0 0
    %4108 = vmatprep.subr.bf16.mxu0 0
    %4109 = vmatpush1.bf16.xpose.msra.mxu0 0
    %4110 = vmatprep.subr.bf16.mxu0 0
    %4111 = vmatpush1.bf16.xpose.msra.mxu0 0
    %4112 = vmatprep.subr.bf16.mxu0 0
    %4113 = vmatpush1.bf16.xpose.msra.mxu0 0
    %4114 = vmatprep.subr.bf16.mxu0 0
    %4115 = vmatpush1.bf16.xpose.msra.mxu0 0
    %4116 = vmatprep.subr.bf16.mxu0 0
    %4117 = vmatpush1.bf16.xpose.msra.mxu0 0
    %4118 = vmatprep.subr.bf16.mxu0 0
    %4119 = vmatpush1.bf16.xpose.msra.mxu0 0
    %4120 = vmatprep.subr.bf16.mxu0 0
    %4121 = vmatpush1.bf16.xpose.msra.mxu0 0
    %4122 = vmatprep.subr.bf16.mxu0 0
    %4123 = vmatpush1.bf16.xpose.msra.mxu0 0
    %4124 = vmatprep.subr.bf16.mxu0 0
    %4125 = vmatpush1.bf16.xpose.msra.mxu0 0
    %4126 = vmatprep.subr.bf16.mxu0 0
    %4127 = vmatpush1.bf16.xpose.msra.mxu0 0
    %4128 = vmatprep.subr.bf16.mxu0 0
    %4129 = vmatpush1.bf16.xpose.msra.mxu0 0
    %4130 = vmatprep.subr.bf16.mxu0 0
    %4131 = vmatpush1.bf16.xpose.msra.mxu0 0
    %4132 = vmatprep.subr.bf16.mxu0 0
    %4133 = vmatpush1.bf16.xpose.msra.mxu0 0
    %4134 = vmatprep.subr.bf16.mxu0 0
    %4135 = vmatpush1.bf16.xpose.msra.mxu0 0
    %4136 = vmatprep.mubr.bf16.mxu0 %v2985
    %4137 = vmatmul.mubr.bf16.gmra.mrb[0].mxu0 %v2984
    %v4138 = vpop.f32.mrb[0].mxu0
    %v4139 = vadd.f32 %v4042, %v4138
    %v4140 = vpop.f32.mrb[0].mxu0
    %v4141 = vpop.f32.mrb[0].mxu0
    %v4142 = vadd.f32 %v4045, %v4141
    %v4143 = vpop.f32.mrb[0].mxu0
    %4144 = vmatprep.mubr.bf16.mxu0 %v3017
    %4145 = vmatmul.mubr.bf16.gmra.mrb[0].mxu0 %v3016
    %v4146 = vpop.f32.mrb[0].mxu0
    %v4147 = vadd.f32 %v4050, %v4146
    %v4148 = vpop.f32.mrb[0].mxu0
    %v4149 = vpop.f32.mrb[0].mxu0
    %v4150 = vadd.f32 %v4053, %v4149
    %v4151 = vpop.f32.mrb[0].mxu0
    %4152 = vmatprep.mubr.bf16.mxu0 %v3049
    %4153 = vmatmul.mubr.bf16.gmra.mrb[0].mxu0 %v3048
    %v4154 = vpop.f32.mrb[0].mxu0
    %v4155 = vadd.f32 %v4058, %v4154
    %v4156 = vpop.f32.mrb[0].mxu0
    %v4157 = vpop.f32.mrb[0].mxu0
    %v4158 = vadd.f32 %v4061, %v4157
    %v4159 = vpop.f32.mrb[0].mxu0
    %4160 = vmatprep.mubr.bf16.mxu0 %v3081
    %4161 = vmatmul.mubr.bf16.gmra.mrb[0].mxu0 %v3080
    %v4162 = vpop.f32.mrb[0].mxu0
    %v4163 = vadd.f32 %v4066, %v4162
    %v4164 = vpop.f32.mrb[0].mxu0
    %v4165 = vpop.f32.mrb[0].mxu0
    %v4166 = vadd.f32 %v4069, %v4165
    %v4167 = vpop.f32.mrb[0].mxu0
    %4168 = vmatprep.mubr.bf16.mxu0 %v3113
    %4169 = vmatmul.mubr.bf16.gmra.mrb[0].mxu0 %v3112
    %v4170 = vpop.f32.mrb[0].mxu0
    %v4171 = vadd.f32 %v4074, %v4170
    %v4172 = vpop.f32.mrb[0].mxu0
    %v4173 = vpop.f32.mrb[0].mxu0
    %v4174 = vadd.f32 %v4077, %v4173
    %v4175 = vpop.f32.mrb[0].mxu0
    %4176 = vmatprep.mubr.bf16.mxu0 %v3145
    %4177 = vmatmul.mubr.bf16.gmra.mrb[0].mxu0 %v3144
    %v4178 = vpop.f32.mrb[0].mxu0
    %v4179 = vadd.f32 %v4082, %v4178
    %v4180 = vpop.f32.mrb[0].mxu0
    %v4181 = vpop.f32.mrb[0].mxu0
    %v4182 = vadd.f32 %v4085, %v4181
    %v4183 = vpop.f32.mrb[0].mxu0
    %4184 = vmatprep.mubr.bf16.mxu0 %v3177
    %4185 = vmatmul.mubr.bf16.gmra.mrb[0].mxu0 %v3176
    %v4186 = vpop.f32.mrb[0].mxu0
    %v4187 = vadd.f32 %v4090, %v4186
    %v4188 = vpop.f32.mrb[0].mxu0
    %v4189 = vpop.f32.mrb[0].mxu0
    %v4190 = vadd.f32 %v4093, %v4189
    %v4191 = vpop.f32.mrb[0].mxu0
    %4192 = vmatprep.mubr.bf16.mxu0 %v3209
    %4193 = vmatmul.mubr.bf16.gmra.mrb[0].mxu0 %v3208
    %v4194 = vpop.f32.mrb[0].mxu0
    %v4195 = vadd.f32 %v4098, %v4194
    %v4196 = vpop.f32.mrb[0].mxu0
    %v4197 = vpop.f32.mrb[0].mxu0
    %v4198 = vadd.f32 %v4101, %v4197
    %v4199 = vpop.f32.mrb[0].mxu0
    %4200 = vdwg.mxu0
    %4201 = vmatprep.subr.bf16.mxu0 %v3378
    %4202 = vmatpush1.bf16.xpose.msra.mxu0 %v3377
    %4203 = vmatprep.subr.bf16.mxu0 0
    %4204 = vmatpush1.bf16.xpose.msra.mxu0 0
    %4205 = vmatprep.subr.bf16.mxu0 0
    %4206 = vmatpush1.bf16.xpose.msra.mxu0 0
    %4207 = vmatprep.subr.bf16.mxu0 0
    %4208 = vmatpush1.bf16.xpose.msra.mxu0 0
    %4209 = vmatprep.subr.bf16.mxu0 0
    %4210 = vmatpush1.bf16.xpose.msra.mxu0 0
    %4211 = vmatprep.subr.bf16.mxu0 0
    %4212 = vmatpush1.bf16.xpose.msra.mxu0 0
    %4213 = vmatprep.subr.bf16.mxu0 0
    %4214 = vmatpush1.bf16.xpose.msra.mxu0 0
    %4215 = vmatprep.subr.bf16.mxu0 0
    %4216 = vmatpush1.bf16.xpose.msra.mxu0 0
    %4217 = vmatprep.subr.bf16.mxu0 0
    %4218 = vmatpush1.bf16.xpose.msra.mxu0 0
    %4219 = vmatprep.subr.bf16.mxu0 0
    %4220 = vmatpush1.bf16.xpose.msra.mxu0 0
    %4221 = vmatprep.subr.bf16.mxu0 0
    %4222 = vmatpush1.bf16.xpose.msra.mxu0 0
    %4223 = vmatprep.subr.bf16.mxu0 0
    %4224 = vmatpush1.bf16.xpose.msra.mxu0 0
    %4225 = vmatprep.subr.bf16.mxu0 0
    %4226 = vmatpush1.bf16.xpose.msra.mxu0 0
    %4227 = vmatprep.subr.bf16.mxu0 0
    %4228 = vmatpush1.bf16.xpose.msra.mxu0 0
    %4229 = vmatprep.subr.bf16.mxu0 0
    %4230 = vmatpush1.bf16.xpose.msra.mxu0 0
    %4231 = vmatprep.subr.bf16.mxu0 0
    %4232 = vmatpush1.bf16.xpose.msra.mxu0 0
    %4233 = vmatprep.mubr.bf16.mxu0 %v2987
    %4234 = vmatmul.mubr.bf16.gmra.mrb[0].mxu0 %v2986
    %v4235 = vpop.f32.mrb[0].mxu0
    %v4236 = vadd.f32 %v4139, %v4235
    %v4237 = vpop.f32.mrb[0].mxu0
    %v4238 = vpop.f32.mrb[0].mxu0
    %v4239 = vadd.f32 %v4142, %v4238
    %v4240 = vpop.f32.mrb[0].mxu0
    %4241 = vmatprep.mubr.bf16.mxu0 %v3019
    %4242 = vmatmul.mubr.bf16.gmra.mrb[0].mxu0 %v3018
    %v4243 = vpop.f32.mrb[0].mxu0
    %v4244 = vadd.f32 %v4147, %v4243
    %v4245 = vpop.f32.mrb[0].mxu0
    %v4246 = vpop.f32.mrb[0].mxu0
    %v4247 = vadd.f32 %v4150, %v4246
    %v4248 = vpop.f32.mrb[0].mxu0
    %4249 = vmatprep.mubr.bf16.mxu0 %v3051
    %4250 = vmatmul.mubr.bf16.gmra.mrb[0].mxu0 %v3050
    %v4251 = vpop.f32.mrb[0].mxu0
    %v4252 = vadd.f32 %v4155, %v4251
    %v4253 = vpop.f32.mrb[0].mxu0
    %v4254 = vpop.f32.mrb[0].mxu0
    %v4255 = vadd.f32 %v4158, %v4254
    %v4256 = vpop.f32.mrb[0].mxu0
    %4257 = vmatprep.mubr.bf16.mxu0 %v3083
    %4258 = vmatmul.mubr.bf16.gmra.mrb[0].mxu0 %v3082
    %v4259 = vpop.f32.mrb[0].mxu0
    %v4260 = vadd.f32 %v4163, %v4259
    %v4261 = vpop.f32.mrb[0].mxu0
    %v4262 = vpop.f32.mrb[0].mxu0
    %v4263 = vadd.f32 %v4166, %v4262
    %v4264 = vpop.f32.mrb[0].mxu0
    %4265 = vmatprep.mubr.bf16.mxu0 %v3115
    %4266 = vmatmul.mubr.bf16.gmra.mrb[0].mxu0 %v3114
    %v4267 = vpop.f32.mrb[0].mxu0
    %v4268 = vadd.f32 %v4171, %v4267
    %v4269 = vpop.f32.mrb[0].mxu0
    %v4270 = vpop.f32.mrb[0].mxu0
    %v4271 = vadd.f32 %v4174, %v4270
    %v4272 = vpop.f32.mrb[0].mxu0
    %4273 = vmatprep.mubr.bf16.mxu0 %v3147
    %4274 = vmatmul.mubr.bf16.gmra.mrb[0].mxu0 %v3146
    %v4275 = vpop.f32.mrb[0].mxu0
    %v4276 = vadd.f32 %v4179, %v4275
    %v4277 = vpop.f32.mrb[0].mxu0
    %v4278 = vpop.f32.mrb[0].mxu0
    %v4279 = vadd.f32 %v4182, %v4278
    %v4280 = vpop.f32.mrb[0].mxu0
    %4281 = vmatprep.mubr.bf16.mxu0 %v3179
    %4282 = vmatmul.mubr.bf16.gmra.mrb[0].mxu0 %v3178
    %v4283 = vpop.f32.mrb[0].mxu0
    %v4284 = vadd.f32 %v4187, %v4283
    %v4285 = vpop.f32.mrb[0].mxu0
    %v4286 = vpop.f32.mrb[0].mxu0
    %v4287 = vadd.f32 %v4190, %v4286
    %v4288 = vpop.f32.mrb[0].mxu0
    %4289 = vmatprep.mubr.bf16.mxu0 %v3211
    %4290 = vmatmul.mubr.bf16.gmra.mrb[0].mxu0 %v3210
    %v4291 = vpop.f32.mrb[0].mxu0
    %v4292 = vadd.f32 %v4195, %v4291
    %v4293 = vpop.f32.mrb[0].mxu0
    %v4294 = vpop.f32.mrb[0].mxu0
    %v4295 = vadd.f32 %v4198, %v4294
    %v4296 = vpop.f32.mrb[0].mxu0
    %4297 = vdwg.mxu0
    %4298 = vmatprep.subr.bf16.mxu0 %v3380
    %4299 = vmatpush1.bf16.xpose.msra.mxu0 %v3379
    %4300 = vmatprep.subr.bf16.mxu0 0
    %4301 = vmatpush1.bf16.xpose.msra.mxu0 0
    %4302 = vmatprep.subr.bf16.mxu0 0
    %4303 = vmatpush1.bf16.xpose.msra.mxu0 0
    %4304 = vmatprep.subr.bf16.mxu0 0
    %4305 = vmatpush1.bf16.xpose.msra.mxu0 0
    %4306 = vmatprep.subr.bf16.mxu0 0
    %4307 = vmatpush1.bf16.xpose.msra.mxu0 0
    %4308 = vmatprep.subr.bf16.mxu0 0
    %4309 = vmatpush1.bf16.xpose.msra.mxu0 0
    %4310 = vmatprep.subr.bf16.mxu0 0
    %4311 = vmatpush1.bf16.xpose.msra.mxu0 0
    %4312 = vmatprep.subr.bf16.mxu0 0
    %4313 = vmatpush1.bf16.xpose.msra.mxu0 0
    %4314 = vmatprep.subr.bf16.mxu0 0
    %4315 = vmatpush1.bf16.xpose.msra.mxu0 0
    %4316 = vmatprep.subr.bf16.mxu0 0
    %4317 = vmatpush1.bf16.xpose.msra.mxu0 0
    %4318 = vmatprep.subr.bf16.mxu0 0
    %4319 = vmatpush1.bf16.xpose.msra.mxu0 0
    %4320 = vmatprep.subr.bf16.mxu0 0
    %4321 = vmatpush1.bf16.xpose.msra.mxu0 0
    %4322 = vmatprep.subr.bf16.mxu0 0
    %4323 = vmatpush1.bf16.xpose.msra.mxu0 0
    %4324 = vmatprep.subr.bf16.mxu0 0
    %4325 = vmatpush1.bf16.xpose.msra.mxu0 0
    %4326 = vmatprep.subr.bf16.mxu0 0
    %4327 = vmatpush1.bf16.xpose.msra.mxu0 0
    %4328 = vmatprep.subr.bf16.mxu0 0
    %4329 = vmatpush1.bf16.xpose.msra.mxu0 0
    %4330 = vmatprep.mubr.bf16.mxu0 %v2989
    %4331 = vmatmul.mubr.bf16.gmra.mrb[0].mxu0 %v2988
    %v4332 = vpop.f32.mrb[0].mxu0
    %v4333 = vadd.f32 %v4236, %v4332
    %v4334 = vpop.f32.mrb[0].mxu0
    %v4335 = vpop.f32.mrb[0].mxu0
    %v4336 = vadd.f32 %v4239, %v4335
    %v4337 = vpop.f32.mrb[0].mxu0
    %4338 = vmatprep.mubr.bf16.mxu0 %v3021
    %4339 = vmatmul.mubr.bf16.gmra.mrb[0].mxu0 %v3020
    %v4340 = vpop.f32.mrb[0].mxu0
    %v4341 = vadd.f32 %v4244, %v4340
    %v4342 = vpop.f32.mrb[0].mxu0
    %v4343 = vpop.f32.mrb[0].mxu0
    %v4344 = vadd.f32 %v4247, %v4343
    %v4345 = vpop.f32.mrb[0].mxu0
    %4346 = vmatprep.mubr.bf16.mxu0 %v3053
    %4347 = vmatmul.mubr.bf16.gmra.mrb[0].mxu0 %v3052
    %v4348 = vpop.f32.mrb[0].mxu0
    %v4349 = vadd.f32 %v4252, %v4348
    %v4350 = vpop.f32.mrb[0].mxu0
    %v4351 = vpop.f32.mrb[0].mxu0
    %v4352 = vadd.f32 %v4255, %v4351
    %v4353 = vpop.f32.mrb[0].mxu0
    %4354 = vmatprep.mubr.bf16.mxu0 %v3085
    %4355 = vmatmul.mubr.bf16.gmra.mrb[0].mxu0 %v3084
    %v4356 = vpop.f32.mrb[0].mxu0
    %v4357 = vadd.f32 %v4260, %v4356
    %v4358 = vpop.f32.mrb[0].mxu0
    %v4359 = vpop.f32.mrb[0].mxu0
    %v4360 = vadd.f32 %v4263, %v4359
    %v4361 = vpop.f32.mrb[0].mxu0
    %4362 = vmatprep.mubr.bf16.mxu0 %v3117
    %4363 = vmatmul.mubr.bf16.gmra.mrb[0].mxu0 %v3116
    %v4364 = vpop.f32.mrb[0].mxu0
    %v4365 = vadd.f32 %v4268, %v4364
    %v4366 = vpop.f32.mrb[0].mxu0
    %v4367 = vpop.f32.mrb[0].mxu0
    %v4368 = vadd.f32 %v4271, %v4367
    %v4369 = vpop.f32.mrb[0].mxu0
    %4370 = vmatprep.mubr.bf16.mxu0 %v3149
    %4371 = vmatmul.mubr.bf16.gmra.mrb[0].mxu0 %v3148
    %v4372 = vpop.f32.mrb[0].mxu0
    %v4373 = vadd.f32 %v4276, %v4372
    %v4374 = vpop.f32.mrb[0].mxu0
    %v4375 = vpop.f32.mrb[0].mxu0
    %v4376 = vadd.f32 %v4279, %v4375
    %v4377 = vpop.f32.mrb[0].mxu0
    %4378 = vmatprep.mubr.bf16.mxu0 %v3181
    %4379 = vmatmul.mubr.bf16.gmra.mrb[0].mxu0 %v3180
    %v4380 = vpop.f32.mrb[0].mxu0
    %v4381 = vadd.f32 %v4284, %v4380
    %v4382 = vpop.f32.mrb[0].mxu0
    %v4383 = vpop.f32.mrb[0].mxu0
    %v4384 = vadd.f32 %v4287, %v4383
    %v4385 = vpop.f32.mrb[0].mxu0
    %4386 = vmatprep.mubr.bf16.mxu0 %v3213
    %4387 = vmatmul.mubr.bf16.gmra.mrb[0].mxu0 %v3212
    %v4388 = vpop.f32.mrb[0].mxu0
    %v4389 = vadd.f32 %v4292, %v4388
    %v4390 = vpop.f32.mrb[0].mxu0
    %v4391 = vpop.f32.mrb[0].mxu0
    %v4392 = vadd.f32 %v4295, %v4391
    %v4393 = vpop.f32.mrb[0].mxu0
    %4394 = vdwg.mxu0
    %4395 = vmatprep.subr.bf16.mxu0 %v3382
    %4396 = vmatpush1.bf16.xpose.msra.mxu0 %v3381
    %4397 = vmatprep.subr.bf16.mxu0 0
    %4398 = vmatpush1.bf16.xpose.msra.mxu0 0
    %4399 = vmatprep.subr.bf16.mxu0 0
    %4400 = vmatpush1.bf16.xpose.msra.mxu0 0
    %4401 = vmatprep.subr.bf16.mxu0 0
    %4402 = vmatpush1.bf16.xpose.msra.mxu0 0
    %4403 = vmatprep.subr.bf16.mxu0 0
    %4404 = vmatpush1.bf16.xpose.msra.mxu0 0
    %4405 = vmatprep.subr.bf16.mxu0 0
    %4406 = vmatpush1.bf16.xpose.msra.mxu0 0
    %4407 = vmatprep.subr.bf16.mxu0 0
    %4408 = vmatpush1.bf16.xpose.msra.mxu0 0
    %4409 = vmatprep.subr.bf16.mxu0 0
    %4410 = vmatpush1.bf16.xpose.msra.mxu0 0
    %4411 = vmatprep.subr.bf16.mxu0 0
    %4412 = vmatpush1.bf16.xpose.msra.mxu0 0
    %4413 = vmatprep.subr.bf16.mxu0 0
    %4414 = vmatpush1.bf16.xpose.msra.mxu0 0
    %4415 = vmatprep.subr.bf16.mxu0 0
    %4416 = vmatpush1.bf16.xpose.msra.mxu0 0
    %4417 = vmatprep.subr.bf16.mxu0 0
    %4418 = vmatpush1.bf16.xpose.msra.mxu0 0
    %4419 = vmatprep.subr.bf16.mxu0 0
    %4420 = vmatpush1.bf16.xpose.msra.mxu0 0
    %4421 = vmatprep.subr.bf16.mxu0 0
    %4422 = vmatpush1.bf16.xpose.msra.mxu0 0
    %4423 = vmatprep.subr.bf16.mxu0 0
    %4424 = vmatpush1.bf16.xpose.msra.mxu0 0
    %4425 = vmatprep.subr.bf16.mxu0 0
    %4426 = vmatpush1.bf16.xpose.msra.mxu0 0
    %4427 = vmatprep.mubr.bf16.mxu0 %v2991
    %4428 = vmatmul.mubr.bf16.gmra.mrb[0].mxu0 %v2990
    %v4429 = vpop.f32.mrb[0].mxu0
    %v4430 = vadd.f32 %v4333, %v4429
    %v4431 = vpop.f32.mrb[0].mxu0
    %v4432 = vpop.f32.mrb[0].mxu0
    %v4433 = vadd.f32 %v4336, %v4432
    %v4434 = vpop.f32.mrb[0].mxu0
    %4435 = vmatprep.mubr.bf16.mxu0 %v3023
    %4436 = vmatmul.mubr.bf16.gmra.mrb[0].mxu0 %v3022
    %v4437 = vpop.f32.mrb[0].mxu0
    %v4438 = vadd.f32 %v4341, %v4437
    %v4439 = vpop.f32.mrb[0].mxu0
    %v4440 = vpop.f32.mrb[0].mxu0
    %v4441 = vadd.f32 %v4344, %v4440
    %v4442 = vpop.f32.mrb[0].mxu0
    %4443 = vmatprep.mubr.bf16.mxu0 %v3055
    %4444 = vmatmul.mubr.bf16.gmra.mrb[0].mxu0 %v3054
    %v4445 = vpop.f32.mrb[0].mxu0
    %v4446 = vadd.f32 %v4349, %v4445
    %v4447 = vpop.f32.mrb[0].mxu0
    %v4448 = vpop.f32.mrb[0].mxu0
    %v4449 = vadd.f32 %v4352, %v4448
    %v4450 = vpop.f32.mrb[0].mxu0
    %4451 = vmatprep.mubr.bf16.mxu0 %v3087
    %4452 = vmatmul.mubr.bf16.gmra.mrb[0].mxu0 %v3086
    %v4453 = vpop.f32.mrb[0].mxu0
    %v4454 = vadd.f32 %v4357, %v4453
    %v4455 = vpop.f32.mrb[0].mxu0
    %v4456 = vpop.f32.mrb[0].mxu0
    %v4457 = vadd.f32 %v4360, %v4456
    %v4458 = vpop.f32.mrb[0].mxu0
    %4459 = vmatprep.mubr.bf16.mxu0 %v3119
    %4460 = vmatmul.mubr.bf16.gmra.mrb[0].mxu0 %v3118
    %v4461 = vpop.f32.mrb[0].mxu0
    %v4462 = vadd.f32 %v4365, %v4461
    %v4463 = vpop.f32.mrb[0].mxu0
    %v4464 = vpop.f32.mrb[0].mxu0
    %v4465 = vadd.f32 %v4368, %v4464
    %v4466 = vpop.f32.mrb[0].mxu0
    %4467 = vmatprep.mubr.bf16.mxu0 %v3151
    %4468 = vmatmul.mubr.bf16.gmra.mrb[0].mxu0 %v3150
    %v4469 = vpop.f32.mrb[0].mxu0
    %v4470 = vadd.f32 %v4373, %v4469
    %v4471 = vpop.f32.mrb[0].mxu0
    %v4472 = vpop.f32.mrb[0].mxu0
    %v4473 = vadd.f32 %v4376, %v4472
    %v4474 = vpop.f32.mrb[0].mxu0
    %4475 = vmatprep.mubr.bf16.mxu0 %v3183
    %4476 = vmatmul.mubr.bf16.gmra.mrb[0].mxu0 %v3182
    %v4477 = vpop.f32.mrb[0].mxu0
    %v4478 = vadd.f32 %v4381, %v4477
    %v4479 = vpop.f32.mrb[0].mxu0
    %v4480 = vpop.f32.mrb[0].mxu0
    %v4481 = vadd.f32 %v4384, %v4480
    %v4482 = vpop.f32.mrb[0].mxu0
    %4483 = vmatprep.mubr.bf16.mxu0 %v3215
    %4484 = vmatmul.mubr.bf16.gmra.mrb[0].mxu0 %v3214
    %v4485 = vpop.f32.mrb[0].mxu0
    %v4486 = vadd.f32 %v4389, %v4485
    %v4487 = vpop.f32.mrb[0].mxu0
    %v4488 = vpop.f32.mrb[0].mxu0
    %v4489 = vadd.f32 %v4392, %v4488
    %v4490 = vpop.f32.mrb[0].mxu0
    %4491 = vdwg.mxu0
    %4492 = vmatprep.subr.bf16.mxu0 %v3384
    %4493 = vmatpush1.bf16.xpose.msra.mxu0 %v3383
    %4494 = vmatprep.subr.bf16.mxu0 0
    %4495 = vmatpush1.bf16.xpose.msra.mxu0 0
    %4496 = vmatprep.subr.bf16.mxu0 0
    %4497 = vmatpush1.bf16.xpose.msra.mxu0 0
    %4498 = vmatprep.subr.bf16.mxu0 0
    %4499 = vmatpush1.bf16.xpose.msra.mxu0 0
    %4500 = vmatprep.subr.bf16.mxu0 0
    %4501 = vmatpush1.bf16.xpose.msra.mxu0 0
    %4502 = vmatprep.subr.bf16.mxu0 0
    %4503 = vmatpush1.bf16.xpose.msra.mxu0 0
    %4504 = vmatprep.subr.bf16.mxu0 0
    %4505 = vmatpush1.bf16.xpose.msra.mxu0 0
    %4506 = vmatprep.subr.bf16.mxu0 0
    %4507 = vmatpush1.bf16.xpose.msra.mxu0 0
    %4508 = vmatprep.subr.bf16.mxu0 0
    %4509 = vmatpush1.bf16.xpose.msra.mxu0 0
    %4510 = vmatprep.subr.bf16.mxu0 0
    %4511 = vmatpush1.bf16.xpose.msra.mxu0 0
    %4512 = vmatprep.subr.bf16.mxu0 0
    %4513 = vmatpush1.bf16.xpose.msra.mxu0 0
    %4514 = vmatprep.subr.bf16.mxu0 0
    %4515 = vmatpush1.bf16.xpose.msra.mxu0 0
    %4516 = vmatprep.subr.bf16.mxu0 0
    %4517 = vmatpush1.bf16.xpose.msra.mxu0 0
    %4518 = vmatprep.subr.bf16.mxu0 0
    %4519 = vmatpush1.bf16.xpose.msra.mxu0 0
    %4520 = vmatprep.subr.bf16.mxu0 0
    %4521 = vmatpush1.bf16.xpose.msra.mxu0 0
    %4522 = vmatprep.subr.bf16.mxu0 0
    %4523 = vmatpush1.bf16.xpose.msra.mxu0 0
    %4524 = vmatprep.mubr.bf16.mxu0 %v2993
    %4525 = vmatmul.mubr.bf16.gmra.mrb[0].mxu0 %v2992
    %v4526 = vpop.f32.mrb[0].mxu0
    %v4527 = vadd.f32 %v4430, %v4526
    %v4528 = vpop.f32.mrb[0].mxu0
    %v4529 = vpop.f32.mrb[0].mxu0
    %v4530 = vadd.f32 %v4433, %v4529
    %v4531 = vpop.f32.mrb[0].mxu0
    %4532 = vmatprep.mubr.bf16.mxu0 %v3025
    %4533 = vmatmul.mubr.bf16.gmra.mrb[0].mxu0 %v3024
    %v4534 = vpop.f32.mrb[0].mxu0
    %v4535 = vadd.f32 %v4438, %v4534
    %v4536 = vpop.f32.mrb[0].mxu0
    %v4537 = vpop.f32.mrb[0].mxu0
    %v4538 = vadd.f32 %v4441, %v4537
    %v4539 = vpop.f32.mrb[0].mxu0
    %4540 = vmatprep.mubr.bf16.mxu0 %v3057
    %4541 = vmatmul.mubr.bf16.gmra.mrb[0].mxu0 %v3056
    %v4542 = vpop.f32.mrb[0].mxu0
    %v4543 = vadd.f32 %v4446, %v4542
    %v4544 = vpop.f32.mrb[0].mxu0
    %v4545 = vpop.f32.mrb[0].mxu0
    %v4546 = vadd.f32 %v4449, %v4545
    %v4547 = vpop.f32.mrb[0].mxu0
    %4548 = vmatprep.mubr.bf16.mxu0 %v3089
    %4549 = vmatmul.mubr.bf16.gmra.mrb[0].mxu0 %v3088
    %v4550 = vpop.f32.mrb[0].mxu0
    %v4551 = vadd.f32 %v4454, %v4550
    %v4552 = vpop.f32.mrb[0].mxu0
    %v4553 = vpop.f32.mrb[0].mxu0
    %v4554 = vadd.f32 %v4457, %v4553
    %v4555 = vpop.f32.mrb[0].mxu0
    %4556 = vmatprep.mubr.bf16.mxu0 %v3121
    %4557 = vmatmul.mubr.bf16.gmra.mrb[0].mxu0 %v3120
    %v4558 = vpop.f32.mrb[0].mxu0
    %v4559 = vadd.f32 %v4462, %v4558
    %v4560 = vpop.f32.mrb[0].mxu0
    %v4561 = vpop.f32.mrb[0].mxu0
    %v4562 = vadd.f32 %v4465, %v4561
    %v4563 = vpop.f32.mrb[0].mxu0
    %4564 = vmatprep.mubr.bf16.mxu0 %v3153
    %4565 = vmatmul.mubr.bf16.gmra.mrb[0].mxu0 %v3152
    %v4566 = vpop.f32.mrb[0].mxu0
    %v4567 = vadd.f32 %v4470, %v4566
    %v4568 = vpop.f32.mrb[0].mxu0
    %v4569 = vpop.f32.mrb[0].mxu0
    %v4570 = vadd.f32 %v4473, %v4569
    %v4571 = vpop.f32.mrb[0].mxu0
    %4572 = vmatprep.mubr.bf16.mxu0 %v3185
    %4573 = vmatmul.mubr.bf16.gmra.mrb[0].mxu0 %v3184
    %v4574 = vpop.f32.mrb[0].mxu0
    %v4575 = vadd.f32 %v4478, %v4574
    %v4576 = vpop.f32.mrb[0].mxu0
    %v4577 = vpop.f32.mrb[0].mxu0
    %v4578 = vadd.f32 %v4481, %v4577
    %v4579 = vpop.f32.mrb[0].mxu0
    %4580 = vmatprep.mubr.bf16.mxu0 %v3217
    %4581 = vmatmul.mubr.bf16.gmra.mrb[0].mxu0 %v3216
    %v4582 = vpop.f32.mrb[0].mxu0
    %v4583 = vadd.f32 %v4486, %v4582
    %v4584 = vpop.f32.mrb[0].mxu0
    %v4585 = vpop.f32.mrb[0].mxu0
    %v4586 = vadd.f32 %v4489, %v4585
    %v4587 = vpop.f32.mrb[0].mxu0
    %4588 = vdwg.mxu0
    %4589 = vmatprep.subr.bf16.mxu0 %v3386
    %4590 = vmatpush1.bf16.xpose.msra.mxu0 %v3385
    %4591 = vmatprep.subr.bf16.mxu0 0
    %4592 = vmatpush1.bf16.xpose.msra.mxu0 0
    %4593 = vmatprep.subr.bf16.mxu0 0
    %4594 = vmatpush1.bf16.xpose.msra.mxu0 0
    %4595 = vmatprep.subr.bf16.mxu0 0
    %4596 = vmatpush1.bf16.xpose.msra.mxu0 0
    %4597 = vmatprep.subr.bf16.mxu0 0
    %4598 = vmatpush1.bf16.xpose.msra.mxu0 0
    %4599 = vmatprep.subr.bf16.mxu0 0
    %4600 = vmatpush1.bf16.xpose.msra.mxu0 0
    %4601 = vmatprep.subr.bf16.mxu0 0
    %4602 = vmatpush1.bf16.xpose.msra.mxu0 0
    %4603 = vmatprep.subr.bf16.mxu0 0
    %4604 = vmatpush1.bf16.xpose.msra.mxu0 0
    %4605 = vmatprep.subr.bf16.mxu0 0
    %4606 = vmatpush1.bf16.xpose.msra.mxu0 0
    %4607 = vmatprep.subr.bf16.mxu0 0
    %4608 = vmatpush1.bf16.xpose.msra.mxu0 0
    %4609 = vmatprep.subr.bf16.mxu0 0
    %4610 = vmatpush1.bf16.xpose.msra.mxu0 0
    %4611 = vmatprep.subr.bf16.mxu0 0
    %4612 = vmatpush1.bf16.xpose.msra.mxu0 0
    %4613 = vmatprep.subr.bf16.mxu0 0
    %4614 = vmatpush1.bf16.xpose.msra.mxu0 0
    %4615 = vmatprep.subr.bf16.mxu0 0
    %4616 = vmatpush1.bf16.xpose.msra.mxu0 0
    %4617 = vmatprep.subr.bf16.mxu0 0
    %4618 = vmatpush1.bf16.xpose.msra.mxu0 0
    %4619 = vmatprep.subr.bf16.mxu0 0
    %4620 = vmatpush1.bf16.xpose.msra.mxu0 0
    %4621 = vmatprep.mubr.bf16.mxu0 %v2995
    %4622 = vmatmul.mubr.bf16.gmra.mrb[0].mxu0 %v2994
    %v4623 = vpop.f32.mrb[0].mxu0
    %v4624 = vadd.f32 %v4527, %v4623
    %v4625 = vpop.f32.mrb[0].mxu0
    %v4626 = vpop.f32.mrb[0].mxu0
    %v4627 = vadd.f32 %v4530, %v4626
    %v4628 = vpop.f32.mrb[0].mxu0
    %4629 = vmatprep.mubr.bf16.mxu0 %v3027
    %4630 = vmatmul.mubr.bf16.gmra.mrb[0].mxu0 %v3026
    %v4631 = vpop.f32.mrb[0].mxu0
    %v4632 = vadd.f32 %v4535, %v4631
    %v4633 = vpop.f32.mrb[0].mxu0
    %v4634 = vpop.f32.mrb[0].mxu0
    %v4635 = vadd.f32 %v4538, %v4634
    %v4636 = vpop.f32.mrb[0].mxu0
    %4637 = vmatprep.mubr.bf16.mxu0 %v3059
    %4638 = vmatmul.mubr.bf16.gmra.mrb[0].mxu0 %v3058
    %v4639 = vpop.f32.mrb[0].mxu0
    %v4640 = vadd.f32 %v4543, %v4639
    %v4641 = vpop.f32.mrb[0].mxu0
    %v4642 = vpop.f32.mrb[0].mxu0
    %v4643 = vadd.f32 %v4546, %v4642
    %v4644 = vpop.f32.mrb[0].mxu0
    %4645 = vmatprep.mubr.bf16.mxu0 %v3091
    %4646 = vmatmul.mubr.bf16.gmra.mrb[0].mxu0 %v3090
    %v4647 = vpop.f32.mrb[0].mxu0
    %v4648 = vadd.f32 %v4551, %v4647
    %v4649 = vpop.f32.mrb[0].mxu0
    %v4650 = vpop.f32.mrb[0].mxu0
    %v4651 = vadd.f32 %v4554, %v4650
    %v4652 = vpop.f32.mrb[0].mxu0
    %4653 = vmatprep.mubr.bf16.mxu0 %v3123
    %4654 = vmatmul.mubr.bf16.gmra.mrb[0].mxu0 %v3122
    %v4655 = vpop.f32.mrb[0].mxu0
    %v4656 = vadd.f32 %v4559, %v4655
    %v4657 = vpop.f32.mrb[0].mxu0
    %v4658 = vpop.f32.mrb[0].mxu0
    %v4659 = vadd.f32 %v4562, %v4658
    %v4660 = vpop.f32.mrb[0].mxu0
    %4661 = vmatprep.mubr.bf16.mxu0 %v3155
    %4662 = vmatmul.mubr.bf16.gmra.mrb[0].mxu0 %v3154
    %v4663 = vpop.f32.mrb[0].mxu0
    %v4664 = vadd.f32 %v4567, %v4663
    %v4665 = vpop.f32.mrb[0].mxu0
    %v4666 = vpop.f32.mrb[0].mxu0
    %v4667 = vadd.f32 %v4570, %v4666
    %v4668 = vpop.f32.mrb[0].mxu0
    %4669 = vmatprep.mubr.bf16.mxu0 %v3187
    %4670 = vmatmul.mubr.bf16.gmra.mrb[0].mxu0 %v3186
    %v4671 = vpop.f32.mrb[0].mxu0
    %v4672 = vadd.f32 %v4575, %v4671
    %v4673 = vpop.f32.mrb[0].mxu0
    %v4674 = vpop.f32.mrb[0].mxu0
    %v4675 = vadd.f32 %v4578, %v4674
    %v4676 = vpop.f32.mrb[0].mxu0
    %4677 = vmatprep.mubr.bf16.mxu0 %v3219
    %4678 = vmatmul.mubr.bf16.gmra.mrb[0].mxu0 %v3218
    %v4679 = vpop.f32.mrb[0].mxu0
    %v4680 = vadd.f32 %v4583, %v4679
    %v4681 = vpop.f32.mrb[0].mxu0
    %v4682 = vpop.f32.mrb[0].mxu0
    %v4683 = vadd.f32 %v4586, %v4682
    %v4684 = vpop.f32.mrb[0].mxu0
    %4685 = vdwg.mxu0
    %4686 = vmatprep.subr.bf16.mxu0 %v3388
    %4687 = vmatpush1.bf16.xpose.msra.mxu0 %v3387
    %4688 = vmatprep.subr.bf16.mxu0 0
    %4689 = vmatpush1.bf16.xpose.msra.mxu0 0
    %4690 = vmatprep.subr.bf16.mxu0 0
    %4691 = vmatpush1.bf16.xpose.msra.mxu0 0
    %4692 = vmatprep.subr.bf16.mxu0 0
    %4693 = vmatpush1.bf16.xpose.msra.mxu0 0
    %4694 = vmatprep.subr.bf16.mxu0 0
    %4695 = vmatpush1.bf16.xpose.msra.mxu0 0
    %4696 = vmatprep.subr.bf16.mxu0 0
    %4697 = vmatpush1.bf16.xpose.msra.mxu0 0
    %4698 = vmatprep.subr.bf16.mxu0 0
    %4699 = vmatpush1.bf16.xpose.msra.mxu0 0
    %4700 = vmatprep.subr.bf16.mxu0 0
    %4701 = vmatpush1.bf16.xpose.msra.mxu0 0
    %4702 = vmatprep.subr.bf16.mxu0 0
    %4703 = vmatpush1.bf16.xpose.msra.mxu0 0
    %4704 = vmatprep.subr.bf16.mxu0 0
    %4705 = vmatpush1.bf16.xpose.msra.mxu0 0
    %4706 = vmatprep.subr.bf16.mxu0 0
    %4707 = vmatpush1.bf16.xpose.msra.mxu0 0
    %4708 = vmatprep.subr.bf16.mxu0 0
    %4709 = vmatpush1.bf16.xpose.msra.mxu0 0
    %4710 = vmatprep.subr.bf16.mxu0 0
    %4711 = vmatpush1.bf16.xpose.msra.mxu0 0
    %4712 = vmatprep.subr.bf16.mxu0 0
    %4713 = vmatpush1.bf16.xpose.msra.mxu0 0
    %4714 = vmatprep.subr.bf16.mxu0 0
    %4715 = vmatpush1.bf16.xpose.msra.mxu0 0
    %4716 = vmatprep.subr.bf16.mxu0 0
    %4717 = vmatpush1.bf16.xpose.msra.mxu0 0
    %4718 = vmatprep.mubr.bf16.mxu0 %v2997
    %4719 = vmatmul.mubr.bf16.gmra.mrb[0].mxu0 %v2996
    %v4720 = vpop.f32.mrb[0].mxu0
    %v4721 = vadd.f32 %v4624, %v4720
    %v4722 = vpop.f32.mrb[0].mxu0
    %v4723 = vpop.f32.mrb[0].mxu0
    %v4724 = vadd.f32 %v4627, %v4723
    %v4725 = vpop.f32.mrb[0].mxu0
    %4726 = vmatprep.mubr.bf16.mxu0 %v3029
    %4727 = vmatmul.mubr.bf16.gmra.mrb[0].mxu0 %v3028
    %v4728 = vpop.f32.mrb[0].mxu0
    %v4729 = vadd.f32 %v4632, %v4728
    %v4730 = vpop.f32.mrb[0].mxu0
    %v4731 = vpop.f32.mrb[0].mxu0
    %v4732 = vadd.f32 %v4635, %v4731
    %v4733 = vpop.f32.mrb[0].mxu0
    %4734 = vmatprep.mubr.bf16.mxu0 %v3061
    %4735 = vmatmul.mubr.bf16.gmra.mrb[0].mxu0 %v3060
    %v4736 = vpop.f32.mrb[0].mxu0
    %v4737 = vadd.f32 %v4640, %v4736
    %v4738 = vpop.f32.mrb[0].mxu0
    %v4739 = vpop.f32.mrb[0].mxu0
    %v4740 = vadd.f32 %v4643, %v4739
    %v4741 = vpop.f32.mrb[0].mxu0
    %4742 = vmatprep.mubr.bf16.mxu0 %v3093
    %4743 = vmatmul.mubr.bf16.gmra.mrb[0].mxu0 %v3092
    %v4744 = vpop.f32.mrb[0].mxu0
    %v4745 = vadd.f32 %v4648, %v4744
    %v4746 = vpop.f32.mrb[0].mxu0
    %v4747 = vpop.f32.mrb[0].mxu0
    %v4748 = vadd.f32 %v4651, %v4747
    %v4749 = vpop.f32.mrb[0].mxu0
    %4750 = vmatprep.mubr.bf16.mxu0 %v3125
    %4751 = vmatmul.mubr.bf16.gmra.mrb[0].mxu0 %v3124
    %v4752 = vpop.f32.mrb[0].mxu0
    %v4753 = vadd.f32 %v4656, %v4752
    %v4754 = vpop.f32.mrb[0].mxu0
    %v4755 = vpop.f32.mrb[0].mxu0
    %v4756 = vadd.f32 %v4659, %v4755
    %v4757 = vpop.f32.mrb[0].mxu0
    %4758 = vmatprep.mubr.bf16.mxu0 %v3157
    %4759 = vmatmul.mubr.bf16.gmra.mrb[0].mxu0 %v3156
    %v4760 = vpop.f32.mrb[0].mxu0
    %v4761 = vadd.f32 %v4664, %v4760
    %v4762 = vpop.f32.mrb[0].mxu0
    %v4763 = vpop.f32.mrb[0].mxu0
    %v4764 = vadd.f32 %v4667, %v4763
    %v4765 = vpop.f32.mrb[0].mxu0
    %4766 = vmatprep.mubr.bf16.mxu0 %v3189
    %4767 = vmatmul.mubr.bf16.gmra.mrb[0].mxu0 %v3188
    %v4768 = vpop.f32.mrb[0].mxu0
    %v4769 = vadd.f32 %v4672, %v4768
    %v4770 = vpop.f32.mrb[0].mxu0
    %v4771 = vpop.f32.mrb[0].mxu0
    %v4772 = vadd.f32 %v4675, %v4771
    %v4773 = vpop.f32.mrb[0].mxu0
    %4774 = vmatprep.mubr.bf16.mxu0 %v3221
    %4775 = vmatmul.mubr.bf16.gmra.mrb[0].mxu0 %v3220
    %v4776 = vpop.f32.mrb[0].mxu0
    %v4777 = vadd.f32 %v4680, %v4776
    %v4778 = vpop.f32.mrb[0].mxu0
    %v4779 = vpop.f32.mrb[0].mxu0
    %v4780 = vadd.f32 %v4683, %v4779
    %v4781 = vpop.f32.mrb[0].mxu0
    %4782 = vdwg.mxu0
    %4783 = vmatprep.subr.bf16.mxu0 %v3390
    %4784 = vmatpush1.bf16.xpose.msra.mxu0 %v3389
    %4785 = vmatprep.subr.bf16.mxu0 0
    %4786 = vmatpush1.bf16.xpose.msra.mxu0 0
    %4787 = vmatprep.subr.bf16.mxu0 0
    %4788 = vmatpush1.bf16.xpose.msra.mxu0 0
    %4789 = vmatprep.subr.bf16.mxu0 0
    %4790 = vmatpush1.bf16.xpose.msra.mxu0 0
    %4791 = vmatprep.subr.bf16.mxu0 0
    %4792 = vmatpush1.bf16.xpose.msra.mxu0 0
    %4793 = vmatprep.subr.bf16.mxu0 0
    %4794 = vmatpush1.bf16.xpose.msra.mxu0 0
    %4795 = vmatprep.subr.bf16.mxu0 0
    %4796 = vmatpush1.bf16.xpose.msra.mxu0 0
    %4797 = vmatprep.subr.bf16.mxu0 0
    %4798 = vmatpush1.bf16.xpose.msra.mxu0 0
    %4799 = vmatprep.subr.bf16.mxu0 0
    %4800 = vmatpush1.bf16.xpose.msra.mxu0 0
    %4801 = vmatprep.subr.bf16.mxu0 0
    %4802 = vmatpush1.bf16.xpose.msra.mxu0 0
    %4803 = vmatprep.subr.bf16.mxu0 0
    %4804 = vmatpush1.bf16.xpose.msra.mxu0 0
    %4805 = vmatprep.subr.bf16.mxu0 0
    %4806 = vmatpush1.bf16.xpose.msra.mxu0 0
    %4807 = vmatprep.subr.bf16.mxu0 0
    %4808 = vmatpush1.bf16.xpose.msra.mxu0 0
    %4809 = vmatprep.subr.bf16.mxu0 0
    %4810 = vmatpush1.bf16.xpose.msra.mxu0 0
    %4811 = vmatprep.subr.bf16.mxu0 0
    %4812 = vmatpush1.bf16.xpose.msra.mxu0 0
    %4813 = vmatprep.subr.bf16.mxu0 0
    %4814 = vmatpush1.bf16.xpose.msra.mxu0 0
    %4815 = vmatprep.mubr.bf16.mxu0 %v2999
    %4816 = vmatmul.mubr.bf16.gmra.mrb[0].mxu0 %v2998
    %v4817 = vpop.f32.mrb[0].mxu0
    %v4818 = vadd.f32 %v4721, %v4817
    %v4819 = vpop.f32.mrb[0].mxu0
    %v4820 = vpop.f32.mrb[0].mxu0
    %v4821 = vadd.f32 %v4724, %v4820
    %v4822 = vpop.f32.mrb[0].mxu0
    %4823 = vmatprep.mubr.bf16.mxu0 %v3031
    %4824 = vmatmul.mubr.bf16.gmra.mrb[0].mxu0 %v3030
    %v4825 = vpop.f32.mrb[0].mxu0
    %v4826 = vadd.f32 %v4729, %v4825
    %v4827 = vpop.f32.mrb[0].mxu0
    %v4828 = vpop.f32.mrb[0].mxu0
    %v4829 = vadd.f32 %v4732, %v4828
    %v4830 = vpop.f32.mrb[0].mxu0
    %4831 = vmatprep.mubr.bf16.mxu0 %v3063
    %4832 = vmatmul.mubr.bf16.gmra.mrb[0].mxu0 %v3062
    %v4833 = vpop.f32.mrb[0].mxu0
    %v4834 = vadd.f32 %v4737, %v4833
    %v4835 = vpop.f32.mrb[0].mxu0
    %v4836 = vpop.f32.mrb[0].mxu0
    %v4837 = vadd.f32 %v4740, %v4836
    %v4838 = vpop.f32.mrb[0].mxu0
    %4839 = vmatprep.mubr.bf16.mxu0 %v3095
    %4840 = vmatmul.mubr.bf16.gmra.mrb[0].mxu0 %v3094
    %v4841 = vpop.f32.mrb[0].mxu0
    %v4842 = vadd.f32 %v4745, %v4841
    %v4843 = vpop.f32.mrb[0].mxu0
    %v4844 = vpop.f32.mrb[0].mxu0
    %v4845 = vadd.f32 %v4748, %v4844
    %v4846 = vpop.f32.mrb[0].mxu0
    %4847 = vmatprep.mubr.bf16.mxu0 %v3127
    %4848 = vmatmul.mubr.bf16.gmra.mrb[0].mxu0 %v3126
    %v4849 = vpop.f32.mrb[0].mxu0
    %v4850 = vadd.f32 %v4753, %v4849
    %v4851 = vpop.f32.mrb[0].mxu0
    %v4852 = vpop.f32.mrb[0].mxu0
    %v4853 = vadd.f32 %v4756, %v4852
    %v4854 = vpop.f32.mrb[0].mxu0
    %4855 = vmatprep.mubr.bf16.mxu0 %v3159
    %4856 = vmatmul.mubr.bf16.gmra.mrb[0].mxu0 %v3158
    %v4857 = vpop.f32.mrb[0].mxu0
    %v4858 = vadd.f32 %v4761, %v4857
    %v4859 = vpop.f32.mrb[0].mxu0
    %v4860 = vpop.f32.mrb[0].mxu0
    %v4861 = vadd.f32 %v4764, %v4860
    %v4862 = vpop.f32.mrb[0].mxu0
    %4863 = vmatprep.mubr.bf16.mxu0 %v3191
    %4864 = vmatmul.mubr.bf16.gmra.mrb[0].mxu0 %v3190
    %v4865 = vpop.f32.mrb[0].mxu0
    %v4866 = vadd.f32 %v4769, %v4865
    %v4867 = vpop.f32.mrb[0].mxu0
    %v4868 = vpop.f32.mrb[0].mxu0
    %v4869 = vadd.f32 %v4772, %v4868
    %v4870 = vpop.f32.mrb[0].mxu0
    %4871 = vmatprep.mubr.bf16.mxu0 %v3223
    %4872 = vmatmul.mubr.bf16.gmra.mrb[0].mxu0 %v3222
    %v4873 = vpop.f32.mrb[0].mxu0
    %v4874 = vadd.f32 %v4777, %v4873
    %v4875 = vpop.f32.mrb[0].mxu0
    %v4876 = vpop.f32.mrb[0].mxu0
    %v4877 = vadd.f32 %v4780, %v4876
    %v4878 = vpop.f32.mrb[0].mxu0
    %4879 = vdwg.mxu0
    %4880 = vmatprep.subr.bf16.mxu0 %v3392
    %4881 = vmatpush1.bf16.xpose.msra.mxu0 %v3391
    %4882 = vmatprep.subr.bf16.mxu0 0
    %4883 = vmatpush1.bf16.xpose.msra.mxu0 0
    %4884 = vmatprep.subr.bf16.mxu0 0
    %4885 = vmatpush1.bf16.xpose.msra.mxu0 0
    %4886 = vmatprep.subr.bf16.mxu0 0
    %4887 = vmatpush1.bf16.xpose.msra.mxu0 0
    %4888 = vmatprep.subr.bf16.mxu0 0
    %4889 = vmatpush1.bf16.xpose.msra.mxu0 0
    %4890 = vmatprep.subr.bf16.mxu0 0
    %4891 = vmatpush1.bf16.xpose.msra.mxu0 0
    %4892 = vmatprep.subr.bf16.mxu0 0
    %4893 = vmatpush1.bf16.xpose.msra.mxu0 0
    %4894 = vmatprep.subr.bf16.mxu0 0
    %4895 = vmatpush1.bf16.xpose.msra.mxu0 0
    %4896 = vmatprep.subr.bf16.mxu0 0
    %4897 = vmatpush1.bf16.xpose.msra.mxu0 0
    %4898 = vmatprep.subr.bf16.mxu0 0
    %4899 = vmatpush1.bf16.xpose.msra.mxu0 0
    %4900 = vmatprep.subr.bf16.mxu0 0
    %4901 = vmatpush1.bf16.xpose.msra.mxu0 0
    %4902 = vmatprep.subr.bf16.mxu0 0
    %4903 = vmatpush1.bf16.xpose.msra.mxu0 0
    %4904 = vmatprep.subr.bf16.mxu0 0
    %4905 = vmatpush1.bf16.xpose.msra.mxu0 0
    %4906 = vmatprep.subr.bf16.mxu0 0
    %4907 = vmatpush1.bf16.xpose.msra.mxu0 0
    %4908 = vmatprep.subr.bf16.mxu0 0
    %4909 = vmatpush1.bf16.xpose.msra.mxu0 0
    %4910 = vmatprep.subr.bf16.mxu0 0
    %4911 = vmatpush1.bf16.xpose.msra.mxu0 0
    %4912 = vmatprep.mubr.bf16.mxu0 %v3001
    %4913 = vmatmul.mubr.bf16.gmra.mrb[0].mxu0 %v3000
    %v4914 = vpop.f32.mrb[0].mxu0
    %v4915 = vadd.f32 %v4818, %v4914
    %v4916 = vpop.f32.mrb[0].mxu0
    %v4917 = vpop.f32.mrb[0].mxu0
    %v4918 = vadd.f32 %v4821, %v4917
    %v4919 = vpop.f32.mrb[0].mxu0
    %4920 = vmatprep.mubr.bf16.mxu0 %v3033
    %4921 = vmatmul.mubr.bf16.gmra.mrb[0].mxu0 %v3032
    %v4922 = vpop.f32.mrb[0].mxu0
    %v4923 = vadd.f32 %v4826, %v4922
    %v4924 = vpop.f32.mrb[0].mxu0
    %v4925 = vpop.f32.mrb[0].mxu0
    %v4926 = vadd.f32 %v4829, %v4925
    %v4927 = vpop.f32.mrb[0].mxu0
    %4928 = vmatprep.mubr.bf16.mxu0 %v3065
    %4929 = vmatmul.mubr.bf16.gmra.mrb[0].mxu0 %v3064
    %v4930 = vpop.f32.mrb[0].mxu0
    %v4931 = vadd.f32 %v4834, %v4930
    %v4932 = vpop.f32.mrb[0].mxu0
    %v4933 = vpop.f32.mrb[0].mxu0
    %v4934 = vadd.f32 %v4837, %v4933
    %v4935 = vpop.f32.mrb[0].mxu0
    %4936 = vmatprep.mubr.bf16.mxu0 %v3097
    %4937 = vmatmul.mubr.bf16.gmra.mrb[0].mxu0 %v3096
    %v4938 = vpop.f32.mrb[0].mxu0
    %v4939 = vadd.f32 %v4842, %v4938
    %v4940 = vpop.f32.mrb[0].mxu0
    %v4941 = vpop.f32.mrb[0].mxu0
    %v4942 = vadd.f32 %v4845, %v4941
    %v4943 = vpop.f32.mrb[0].mxu0
    %4944 = vmatprep.mubr.bf16.mxu0 %v3129
    %4945 = vmatmul.mubr.bf16.gmra.mrb[0].mxu0 %v3128
    %v4946 = vpop.f32.mrb[0].mxu0
    %v4947 = vadd.f32 %v4850, %v4946
    %v4948 = vpop.f32.mrb[0].mxu0
    %v4949 = vpop.f32.mrb[0].mxu0
    %v4950 = vadd.f32 %v4853, %v4949
    %v4951 = vpop.f32.mrb[0].mxu0
    %4952 = vmatprep.mubr.bf16.mxu0 %v3161
    %4953 = vmatmul.mubr.bf16.gmra.mrb[0].mxu0 %v3160
    %v4954 = vpop.f32.mrb[0].mxu0
    %v4955 = vadd.f32 %v4858, %v4954
    %v4956 = vpop.f32.mrb[0].mxu0
    %v4957 = vpop.f32.mrb[0].mxu0
    %v4958 = vadd.f32 %v4861, %v4957
    %v4959 = vpop.f32.mrb[0].mxu0
    %4960 = vmatprep.mubr.bf16.mxu0 %v3193
    %4961 = vmatmul.mubr.bf16.gmra.mrb[0].mxu0 %v3192
    %v4962 = vpop.f32.mrb[0].mxu0
    %v4963 = vadd.f32 %v4866, %v4962
    %v4964 = vpop.f32.mrb[0].mxu0
    %v4965 = vpop.f32.mrb[0].mxu0
    %v4966 = vadd.f32 %v4869, %v4965
    %v4967 = vpop.f32.mrb[0].mxu0
    %4968 = vmatprep.mubr.bf16.mxu0 %v3225
    %4969 = vmatmul.mubr.bf16.gmra.mrb[0].mxu0 %v3224
    %v4970 = vpop.f32.mrb[0].mxu0
    %v4971 = vadd.f32 %v4874, %v4970
    %v4972 = vpop.f32.mrb[0].mxu0
    %v4973 = vpop.f32.mrb[0].mxu0
    %v4974 = vadd.f32 %v4877, %v4973
    %v4975 = vpop.f32.mrb[0].mxu0
    %4976 = vdwg.mxu0
    %v4977 = vmax.f32 %v4915, 0.0
    %v4978 = vmax.f32 %v4918, 0.0
    %v4979 = vmax.f32 %v4923, 0.0
    %v4980 = vmax.f32 %v4926, 0.0
    %v4981 = vmax.f32 %v4931, 0.0
    %v4982 = vmax.f32 %v4934, 0.0
    %v4983 = vmax.f32 %v4939, 0.0
    %v4984 = vmax.f32 %v4942, 0.0
    %v4985 = vmax.f32 %v4947, 0.0
    %v4986 = vmax.f32 %v4950, 0.0
    %v4987 = vmax.f32 %v4955, 0.0
    %v4988 = vmax.f32 %v4958, 0.0
    %v4989 = vmax.f32 %v4963, 0.0
    %v4990 = vmax.f32 %v4966, 0.0
    %v4991 = vmax.f32 %v4971, 0.0
    %v4992 = vmax.f32 %v4974, 0.0
    %vm4993 = vcmask 130048
    %4994 = vst.msk [vmem:[%s5] sm:$0xff] %vm4993, %v4977
    %4995 = vst.msk [vmem:[%s5 + $0x8] sm:$0xff] %vm4993, %v4978
    %4996 = vst.msk [vmem:[%s5 + $0x10] sm:$0xff] %vm4993, %v4979
    %4997 = vst.msk [vmem:[%s5 + $0x18] sm:$0xff] %vm4993, %v4980
    %4998 = vst.msk [vmem:[%s5 + $0x20] sm:$0xff] %vm4993, %v4981
    %4999 = vst.msk [vmem:[%s5 + $0x28] sm:$0xff] %vm4993, %v4982
    %5000 = vst.msk [vmem:[%s5 + $0x30] sm:$0xff] %vm4993, %v4983
    %5001 = vst.msk [vmem:[%s5 + $0x38] sm:$0xff] %vm4993, %v4984
    %5002 = vst.msk [vmem:[%s5 + $0x40] sm:$0xff] %vm4993, %v4985
    %5003 = vst.msk [vmem:[%s5 + $0x48] sm:$0xff] %vm4993, %v4986
    %5004 = vst.msk [vmem:[%s5 + $0x50] sm:$0xff] %vm4993, %v4987
    %5005 = vst.msk [vmem:[%s5 + $0x58] sm:$0xff] %vm4993, %v4988
    %5006 = vst.msk [vmem:[%s5 + $0x60] sm:$0xff] %vm4993, %v4989
    %5007 = vst.msk [vmem:[%s5 + $0x68] sm:$0xff] %vm4993, %v4990
    %5008 = vst.msk [vmem:[%s5 + $0x70] sm:$0xff] %vm4993, %v4991
    %5009 = vst.msk [vmem:[%s5 + $0x78] sm:$0xff] %vm4993, %v4992
    // Predicated region
    $region30: #{semantic_predictor_forward.1} parent=1 // pred_check
      _
    $region31: #{semantic_predictor_forward.1} parent=1 // pred_check_branch
      %5011 = sbr.rel (0) target = $region33
    $region32: #{semantic_predictor_forward.1} parent=1 // pred_region
      _
    $region33: #{semantic_predictor_forward.1} parent=1 // pred_fallthru
      _
    // Predicated region
    $region34: #{semantic_predictor_forward.1} parent=1 // pred_check
      _
    $region35: #{semantic_predictor_forward.1} parent=1 // pred_check_branch
      %5013 = sbr.rel (0) target = $region37
    $region36: #{semantic_predictor_forward.1} parent=1 // pred_region
      _
    $region37: #{semantic_predictor_forward.1} parent=1 // pred_fallthru
      _
    %5014 = vsyncpa [#allocation3], 1
    %5015 = vsyncpa [#allocation5], 1

</llo_original>
